<compile_context>
chip_gen: v6e
topology: v6e:2x2x1
jax: 0.10.0
libtpu: 0.0.40
codegen_flags: <defaults>
</compile_context>

<pallas_src>
import functools

import jax
import jax.numpy as jnp
from jax.experimental import pallas as pl
from jax.experimental.pallas import tpu as pltpu


def _lstm_fused_kernel(x_ref, wih_ref, whh_ref, bias_ref, fcw_ref, fcb_ref,
                       out_ref, xw_ref, *, seq_len, hidden, input_size, out_size):
    """Fused LSTM forward: input projection + recurrence + fc head.

    x_ref   : (T, B, I)    f32  time-major input
    wih_ref : (4, I, H)    f32  per-gate W_ih^T blocks (PyTorch gate order i, f, g, o)
    whh_ref : (4, H, H)    f32  per-gate W_hh^T blocks
    bias_ref: (4, 1, H)    f32  per-gate (b_ih + b_hh)
    fcw_ref : (O, H)       f32  fc weight
    fcb_ref : (1, O)       f32  fc bias
    out_ref : (B, O)       f32  fc(h_T)
    xw_ref  : (4, T, B, H) f32  VMEM scratch: hoisted input projection, per gate
    """
    T, H, I, O = seq_len, hidden, input_size, out_size
    B = out_ref.shape[0]

    # ---- Phase 1: input projection, hoisted out of the recurrence ---------------
    # xw[g, t] = x_t @ W_ih_g^T + b_g, computed as I broadcast-FMAs per gate (K=3, so
    # VPU FMAs beat an MXU pass).  Off the recurrent dependency chain.
    x = x_ref[...]                                           # (T, B, I)
    for g in range(4):
        w = wih_ref[g]                                       # (I, H)
        xw = bias_ref[g] + x[:, :, 0:1] * w[0:1, :]          # (T, B, H)
        for k in range(1, I):
            xw = xw + x[:, :, k:k + 1] * w[k:k + 1, :]
        xw_ref[g] = xw

    # ---- Phase 2: recurrence -----------------------------------------------------
    # 4 per-gate dots per step: each gate is a (B, H) array starting at lane 0, so the
    # sigmoid/tanh/elementwise chain never needs an XLU lane rotate.
    whh = [whh_ref[g] for g in range(4)]                     # 4 x (H, H), hoisted
    h = jnp.zeros((B, H), jnp.float32)
    c = jnp.zeros((B, H), jnp.float32)
    for t in range(T):                                       # static unroll (T small)
        gi = xw_ref[0, t] + jnp.dot(h, whh[0], preferred_element_type=jnp.float32)
        gf = xw_ref[1, t] + jnp.dot(h, whh[1], preferred_element_type=jnp.float32)
        gg = xw_ref[2, t] + jnp.dot(h, whh[2], preferred_element_type=jnp.float32)
        go = xw_ref[3, t] + jnp.dot(h, whh[3], preferred_element_type=jnp.float32)
        i_g = jax.nn.sigmoid(gi)
        f_g = jax.nn.sigmoid(gf)
        g_g = jnp.tanh(gg)
        o_g = jax.nn.sigmoid(go)
        c = f_g * c + i_g * g_g
        h = o_g * jnp.tanh(c)

    # ---- Phase 3: fc head (H -> O), fused ------------------------------------------
    # O = 1, so an elementwise mul + lane reduce is cheaper than an N=1 MXU matmul.
    fcw = fcw_ref[...]                                       # (O, H)
    cols = [jnp.sum(h * fcw[o:o + 1, :], axis=-1, keepdims=True) for o in range(O)]
    out = cols[0] if O == 1 else jnp.concatenate(cols, axis=-1)
    out_ref[...] = out + fcb_ref[...]


def prepare_params(params):
    """One-time parameter prep (gate splitting, transposes). Do NOT call per forward."""
    H = params["w_hh"].shape[1]
    I = params["w_ih"].shape[1]
    O = params["fc_w"].shape[0]
    # PyTorch LSTM gate order along the 4H axis: [i, f, g, o].
    wih_blocks = jnp.transpose(params["w_ih"].astype(jnp.float32).reshape(4, H, I),
                               (0, 2, 1))                            # (4, I, H)
    whh_blocks = jnp.transpose(params["w_hh"].astype(jnp.float32).reshape(4, H, H),
                               (0, 2, 1))                            # (4, H, H)
    bias = (params["b_ih"] + params["b_hh"]).astype(jnp.float32).reshape(4, 1, H)
    return {
        "wih": wih_blocks,
        "whh": whh_blocks,
        "bias": bias,
        "fc_w": params["fc_w"].astype(jnp.float32),                  # (O, H)
        "fc_b": params["fc_b"].astype(jnp.float32).reshape(1, O),    # (1, O)
    }


def uniswap_price_predictor(x, prep):
    """x: (B, T, I) float32 (batch_first, like PyTorch). Returns (B, O)."""
    B, T, I = x.shape
    H = prep["whh"].shape[1]
    O = prep["fc_w"].shape[0]

    # The only per-call XLA op besides the fused kernel: batch_first -> time-major.
    x_tm = jnp.transpose(x, (1, 0, 2)).astype(jnp.float32)           # (T, B, I)

    kernel = functools.partial(_lstm_fused_kernel,
                               seq_len=T, hidden=H, input_size=I, out_size=O)

    return pl.pallas_call(
        kernel,
        out_shape=jax.ShapeDtypeStruct((B, O), jnp.float32),
        # No grid: single invocation, whole arrays resident in VMEM (everything here
        # is tiny); avoids the grid-loop prologue/epilogue entirely.
        scratch_shapes=[pltpu.VMEM((4, T, B, H), jnp.float32)],
    )(x_tm, prep["wih"], prep["whh"], prep["bias"], prep["fc_w"], prep["fc_b"])


def init_params(key, input_size=3, hidden_size=64, output_size=1):
    """Deterministic init matching PyTorch shapes (U(-1/sqrt(H), 1/sqrt(H)))."""
    H = hidden_size
    k = 1.0 / jnp.sqrt(jnp.float32(H))
    keys = jax.random.split(key, 6)
    u = lambda kk, shape: jax.random.uniform(kk, shape, jnp.float32, -k, k)
    return {
        "w_ih": u(keys[0], (4 * H, input_size)),
        "w_hh": u(keys[1], (4 * H, H)),
        "b_ih": u(keys[2], (4 * H,)),
        "b_hh": u(keys[3], (4 * H,)),
        "fc_w": u(keys[4], (output_size, H)),
        "fc_b": u(keys[5], (output_size,)),
    }


def reference_forward(x, params):
    """Pure-JAX LSTM + Linear reference (PyTorch gate order i, f, g, o), full f32."""
    B, T, I = x.shape
    H = params["w_hh"].shape[1]
    wih_t, whh_t = params["w_ih"].T, params["w_hh"].T
    bias = params["b_ih"] + params["b_hh"]

    def step(carry, x_t):
        h, c = carry
        gates = x_t @ wih_t + h @ whh_t + bias
        i = jax.nn.sigmoid(gates[:, 0 * H:1 * H])
        f = jax.nn.sigmoid(gates[:, 1 * H:2 * H])
        g = jnp.tanh(gates[:, 2 * H:3 * H])
        o = jax.nn.sigmoid(gates[:, 3 * H:4 * H])
        c = f * c + i * g
        h = o * jnp.tanh(c)
        return (h, c), None

    h0 = jnp.zeros((B, H), jnp.float32)
    c0 = jnp.zeros((B, H), jnp.float32)
    (h_last, _), _ = jax.lax.scan(step, (h0, c0), jnp.transpose(x, (1, 0, 2)))
    return h_last @ params["fc_w"].T + params["fc_b"]


if __name__ == "__main__":
    B, T, I, H, O = 8, 8, 3, 64, 1
    key = jax.random.PRNGKey(0)
    k_x, k_p = jax.random.split(key)
    x = jax.random.normal(k_x, (B, T, I), jnp.float32)
    params = init_params(k_p, input_size=I, hidden_size=H, output_size=O)

    prep = prepare_params(params)               # one-time parameter prep
    fwd = jax.jit(uniswap_price_predictor)

    out = jax.block_until_ready(fwd(x, prep))
    ref = jax.block_until_ready(reference_forward(x, params))

    assert out.shape == (B, O), out.shape
    # Full-f32 pipeline: only summation-order differences vs the reference.
    assert jnp.allclose(out, ref, atol=1e-4, rtol=1e-4), (out, ref)

    print("KERNEL_OK")
</pallas_src>

<mosaic_0001>
module attributes {stable_mosaic.version = 11 : i64} {
  func.func @_lstm_fused_kernel(%arg0: memref<8x8x3xf32, #tpu.memory_space<vmem>>, %arg1: memref<4x3x64xf32, #tpu.memory_space<vmem>>, %arg2: memref<4x64x64xf32, #tpu.memory_space<vmem>>, %arg3: memref<4x1x64xf32, #tpu.memory_space<vmem>>, %arg4: memref<1x64xf32, #tpu.memory_space<vmem>>, %arg5: memref<1x1xf32, #tpu.memory_space<vmem>>, %arg6: memref<8x1xf32, #tpu.memory_space<vmem>>, %arg7: memref<4x8x8x64xf32, #tpu.memory_space<vmem>>) attributes {dimension_semantics = [], scalar_prefetch = 0 : i64, scratch_operands = 1 : i64, tpu.core_type = #tpu.core_type<tc>} {
    %c0 = arith.constant 0 : index
    %c0_0 = arith.constant 0 : index
    %c0_1 = arith.constant 0 : index
    %0 = vector.load %arg0[%c0, %c0_0, %c0_1] : memref<8x8x3xf32, #tpu.memory_space<vmem>>, vector<8x8x3xf32>
    %c0_2 = arith.constant 0 : index
    %c0_3 = arith.constant 0 : index
    %c0_4 = arith.constant 0 : index
    %1 = vector.load %arg1[%c0_2, %c0_3, %c0_4] : memref<4x3x64xf32, #tpu.memory_space<vmem>>, vector<1x3x64xf32>
    %2 = vector.shape_cast %1 : vector<1x3x64xf32> to vector<3x64xf32>
    %c0_5 = arith.constant 0 : index
    %c0_6 = arith.constant 0 : index
    %c0_7 = arith.constant 0 : index
    %3 = vector.load %arg3[%c0_5, %c0_6, %c0_7] : memref<4x1x64xf32, #tpu.memory_space<vmem>>, vector<1x1x64xf32>
    %4 = vector.shape_cast %3 : vector<1x1x64xf32> to vector<1x64xf32>
    %5 = vector.extract_strided_slice %0 {offsets = [0, 0, 0], sizes = [8, 8, 1], strides = [1, 1, 1]} : vector<8x8x3xf32> to vector<8x8x1xf32>
    %6 = vector.extract_strided_slice %2 {offsets = [0, 0], sizes = [1, 64], strides = [1, 1]} : vector<3x64xf32> to vector<1x64xf32>
    %7 = vector.shape_cast %6 : vector<1x64xf32> to vector<1x1x64xf32>
    %8 = vector.broadcast %5 : vector<8x8x1xf32> to vector<8x8x64xf32>
    %9 = vector.broadcast %7 : vector<1x1x64xf32> to vector<8x8x64xf32>
    %10 = arith.mulf %8, %9 : vector<8x8x64xf32>
    %11 = vector.shape_cast %4 : vector<1x64xf32> to vector<1x1x64xf32>
    %12 = vector.broadcast %11 : vector<1x1x64xf32> to vector<8x8x64xf32>
    %13 = arith.addf %12, %10 : vector<8x8x64xf32>
    %14 = vector.extract_strided_slice %0 {offsets = [0, 0, 1], sizes = [8, 8, 1], strides = [1, 1, 1]} : vector<8x8x3xf32> to vector<8x8x1xf32>
    %15 = vector.extract_strided_slice %2 {offsets = [1, 0], sizes = [1, 64], strides = [1, 1]} : vector<3x64xf32> to vector<1x64xf32>
    %16 = vector.shape_cast %15 : vector<1x64xf32> to vector<1x1x64xf32>
    %17 = vector.broadcast %14 : vector<8x8x1xf32> to vector<8x8x64xf32>
    %18 = vector.broadcast %16 : vector<1x1x64xf32> to vector<8x8x64xf32>
    %19 = arith.mulf %17, %18 : vector<8x8x64xf32>
    %20 = arith.addf %13, %19 : vector<8x8x64xf32>
    %21 = vector.extract_strided_slice %0 {offsets = [0, 0, 2], sizes = [8, 8, 1], strides = [1, 1, 1]} : vector<8x8x3xf32> to vector<8x8x1xf32>
    %22 = vector.extract_strided_slice %2 {offsets = [2, 0], sizes = [1, 64], strides = [1, 1]} : vector<3x64xf32> to vector<1x64xf32>
    %23 = vector.shape_cast %22 : vector<1x64xf32> to vector<1x1x64xf32>
    %24 = vector.broadcast %21 : vector<8x8x1xf32> to vector<8x8x64xf32>
    %25 = vector.broadcast %23 : vector<1x1x64xf32> to vector<8x8x64xf32>
    %26 = arith.mulf %24, %25 : vector<8x8x64xf32>
    %27 = arith.addf %20, %26 : vector<8x8x64xf32>
    %c0_8 = arith.constant 0 : index
    %c0_9 = arith.constant 0 : index
    %c0_10 = arith.constant 0 : index
    %c0_11 = arith.constant 0 : index
    %28 = vector.load %arg7[%c0_8, %c0_9, %c0_10, %c0_11] : memref<4x8x8x64xf32, #tpu.memory_space<vmem>>, vector<1x8x8x64xf32>
    %29 = vector.shape_cast %28 : vector<1x8x8x64xf32> to vector<8x8x64xf32>
    %30 = vector.shape_cast %27 : vector<8x8x64xf32> to vector<1x8x8x64xf32>
    tpu.vector_store %arg7[%c0_8, %c0_9, %c0_10, %c0_11], %30 {strides = array<i32>} : memref<4x8x8x64xf32, #tpu.memory_space<vmem>>, vector<1x8x8x64xf32>,
    %c1 = arith.constant 1 : index
    %c0_12 = arith.constant 0 : index
    %c0_13 = arith.constant 0 : index
    %31 = vector.load %arg1[%c1, %c0_12, %c0_13] : memref<4x3x64xf32, #tpu.memory_space<vmem>>, vector<1x3x64xf32>
    %32 = vector.shape_cast %31 : vector<1x3x64xf32> to vector<3x64xf32>
    %c1_14 = arith.constant 1 : index
    %c0_15 = arith.constant 0 : index
    %c0_16 = arith.constant 0 : index
    %33 = vector.load %arg3[%c1_14, %c0_15, %c0_16] : memref<4x1x64xf32, #tpu.memory_space<vmem>>, vector<1x1x64xf32>
    %34 = vector.shape_cast %33 : vector<1x1x64xf32> to vector<1x64xf32>
    %35 = vector.extract_strided_slice %0 {offsets = [0, 0, 0], sizes = [8, 8, 1], strides = [1, 1, 1]} : vector<8x8x3xf32> to vector<8x8x1xf32>
    %36 = vector.extract_strided_slice %32 {offsets = [0, 0], sizes = [1, 64], strides = [1, 1]} : vector<3x64xf32> to vector<1x64xf32>
    %37 = vector.shape_cast %36 : vector<1x64xf32> to vector<1x1x64xf32>
    %38 = vector.broadcast %35 : vector<8x8x1xf32> to vector<8x8x64xf32>
    %39 = vector.broadcast %37 : vector<1x1x64xf32> to vector<8x8x64xf32>
    %40 = arith.mulf %38, %39 : vector<8x8x64xf32>
    %41 = vector.shape_cast %34 : vector<1x64xf32> to vector<1x1x64xf32>
    %42 = vector.broadcast %41 : vector<1x1x64xf32> to vector<8x8x64xf32>
    %43 = arith.addf %42, %40 : vector<8x8x64xf32>
    %44 = vector.extract_strided_slice %0 {offsets = [0, 0, 1], sizes = [8, 8, 1], strides = [1, 1, 1]} : vector<8x8x3xf32> to vector<8x8x1xf32>
    %45 = vector.extract_strided_slice %32 {offsets = [1, 0], sizes = [1, 64], strides = [1, 1]} : vector<3x64xf32> to vector<1x64xf32>
    %46 = vector.shape_cast %45 : vector<1x64xf32> to vector<1x1x64xf32>
    %47 = vector.broadcast %44 : vector<8x8x1xf32> to vector<8x8x64xf32>
    %48 = vector.broadcast %46 : vector<1x1x64xf32> to vector<8x8x64xf32>
    %49 = arith.mulf %47, %48 : vector<8x8x64xf32>
    %50 = arith.addf %43, %49 : vector<8x8x64xf32>
    %51 = vector.extract_strided_slice %0 {offsets = [0, 0, 2], sizes = [8, 8, 1], strides = [1, 1, 1]} : vector<8x8x3xf32> to vector<8x8x1xf32>
    %52 = vector.extract_strided_slice %32 {offsets = [2, 0], sizes = [1, 64], strides = [1, 1]} : vector<3x64xf32> to vector<1x64xf32>
    %53 = vector.shape_cast %52 : vector<1x64xf32> to vector<1x1x64xf32>
    %54 = vector.broadcast %51 : vector<8x8x1xf32> to vector<8x8x64xf32>
    %55 = vector.broadcast %53 : vector<1x1x64xf32> to vector<8x8x64xf32>
    %56 = arith.mulf %54, %55 : vector<8x8x64xf32>
    %57 = arith.addf %50, %56 : vector<8x8x64xf32>
    %c1_17 = arith.constant 1 : index
    %c0_18 = arith.constant 0 : index
    %c0_19 = arith.constant 0 : index
    %c0_20 = arith.constant 0 : index
    %58 = vector.load %arg7[%c1_17, %c0_18, %c0_19, %c0_20] : memref<4x8x8x64xf32, #tpu.memory_space<vmem>>, vector<1x8x8x64xf32>
    %59 = vector.shape_cast %58 : vector<1x8x8x64xf32> to vector<8x8x64xf32>
    %60 = vector.shape_cast %57 : vector<8x8x64xf32> to vector<1x8x8x64xf32>
    tpu.vector_store %arg7[%c1_17, %c0_18, %c0_19, %c0_20], %60 {strides = array<i32>} : memref<4x8x8x64xf32, #tpu.memory_space<vmem>>, vector<1x8x8x64xf32>,
    %c2 = arith.constant 2 : index
    %c0_21 = arith.constant 0 : index
    %c0_22 = arith.constant 0 : index
    %61 = vector.load %arg1[%c2, %c0_21, %c0_22] : memref<4x3x64xf32, #tpu.memory_space<vmem>>, vector<1x3x64xf32>
    %62 = vector.shape_cast %61 : vector<1x3x64xf32> to vector<3x64xf32>
    %c2_23 = arith.constant 2 : index
    %c0_24 = arith.constant 0 : index
    %c0_25 = arith.constant 0 : index
    %63 = vector.load %arg3[%c2_23, %c0_24, %c0_25] : memref<4x1x64xf32, #tpu.memory_space<vmem>>, vector<1x1x64xf32>
    %64 = vector.shape_cast %63 : vector<1x1x64xf32> to vector<1x64xf32>
    %65 = vector.extract_strided_slice %0 {offsets = [0, 0, 0], sizes = [8, 8, 1], strides = [1, 1, 1]} : vector<8x8x3xf32> to vector<8x8x1xf32>
    %66 = vector.extract_strided_slice %62 {offsets = [0, 0], sizes = [1, 64], strides = [1, 1]} : vector<3x64xf32> to vector<1x64xf32>
    %67 = vector.shape_cast %66 : vector<1x64xf32> to vector<1x1x64xf32>
    %68 = vector.broadcast %65 : vector<8x8x1xf32> to vector<8x8x64xf32>
    %69 = vector.broadcast %67 : vector<1x1x64xf32> to vector<8x8x64xf32>
    %70 = arith.mulf %68, %69 : vector<8x8x64xf32>
    %71 = vector.shape_cast %64 : vector<1x64xf32> to vector<1x1x64xf32>
    %72 = vector.broadcast %71 : vector<1x1x64xf32> to vector<8x8x64xf32>
    %73 = arith.addf %72, %70 : vector<8x8x64xf32>
    %74 = vector.extract_strided_slice %0 {offsets = [0, 0, 1], sizes = [8, 8, 1], strides = [1, 1, 1]} : vector<8x8x3xf32> to vector<8x8x1xf32>
    %75 = vector.extract_strided_slice %62 {offsets = [1, 0], sizes = [1, 64], strides = [1, 1]} : vector<3x64xf32> to vector<1x64xf32>
    %76 = vector.shape_cast %75 : vector<1x64xf32> to vector<1x1x64xf32>
    %77 = vector.broadcast %74 : vector<8x8x1xf32> to vector<8x8x64xf32>
    %78 = vector.broadcast %76 : vector<1x1x64xf32> to vector<8x8x64xf32>
    %79 = arith.mulf %77, %78 : vector<8x8x64xf32>
    %80 = arith.addf %73, %79 : vector<8x8x64xf32>
    %81 = vector.extract_strided_slice %0 {offsets = [0, 0, 2], sizes = [8, 8, 1], strides = [1, 1, 1]} : vector<8x8x3xf32> to vector<8x8x1xf32>
    %82 = vector.extract_strided_slice %62 {offsets = [2, 0], sizes = [1, 64], strides = [1, 1]} : vector<3x64xf32> to vector<1x64xf32>
    %83 = vector.shape_cast %82 : vector<1x64xf32> to vector<1x1x64xf32>
    %84 = vector.broadcast %81 : vector<8x8x1xf32> to vector<8x8x64xf32>
    %85 = vector.broadcast %83 : vector<1x1x64xf32> to vector<8x8x64xf32>
    %86 = arith.mulf %84, %85 : vector<8x8x64xf32>
    %87 = arith.addf %80, %86 : vector<8x8x64xf32>
    %c2_26 = arith.constant 2 : index
    %c0_27 = arith.constant 0 : index
    %c0_28 = arith.constant 0 : index
    %c0_29 = arith.constant 0 : index
    %88 = vector.load %arg7[%c2_26, %c0_27, %c0_28, %c0_29] : memref<4x8x8x64xf32, #tpu.memory_space<vmem>>, vector<1x8x8x64xf32>
    %89 = vector.shape_cast %88 : vector<1x8x8x64xf32> to vector<8x8x64xf32>
    %90 = vector.shape_cast %87 : vector<8x8x64xf32> to vector<1x8x8x64xf32>
    tpu.vector_store %arg7[%c2_26, %c0_27, %c0_28, %c0_29], %90 {strides = array<i32>} : memref<4x8x8x64xf32, #tpu.memory_space<vmem>>, vector<1x8x8x64xf32>,
    %c3 = arith.constant 3 : index
    %c0_30 = arith.constant 0 : index
    %c0_31 = arith.constant 0 : index
    %91 = vector.load %arg1[%c3, %c0_30, %c0_31] : memref<4x3x64xf32, #tpu.memory_space<vmem>>, vector<1x3x64xf32>
    %92 = vector.shape_cast %91 : vector<1x3x64xf32> to vector<3x64xf32>
    %c3_32 = arith.constant 3 : index
    %c0_33 = arith.constant 0 : index
    %c0_34 = arith.constant 0 : index
    %93 = vector.load %arg3[%c3_32, %c0_33, %c0_34] : memref<4x1x64xf32, #tpu.memory_space<vmem>>, vector<1x1x64xf32>
    %94 = vector.shape_cast %93 : vector<1x1x64xf32> to vector<1x64xf32>
    %95 = vector.extract_strided_slice %0 {offsets = [0, 0, 0], sizes = [8, 8, 1], strides = [1, 1, 1]} : vector<8x8x3xf32> to vector<8x8x1xf32>
    %96 = vector.extract_strided_slice %92 {offsets = [0, 0], sizes = [1, 64], strides = [1, 1]} : vector<3x64xf32> to vector<1x64xf32>
    %97 = vector.shape_cast %96 : vector<1x64xf32> to vector<1x1x64xf32>
    %98 = vector.broadcast %95 : vector<8x8x1xf32> to vector<8x8x64xf32>
    %99 = vector.broadcast %97 : vector<1x1x64xf32> to vector<8x8x64xf32>
    %100 = arith.mulf %98, %99 : vector<8x8x64xf32>
    %101 = vector.shape_cast %94 : vector<1x64xf32> to vector<1x1x64xf32>
    %102 = vector.broadcast %101 : vector<1x1x64xf32> to vector<8x8x64xf32>
    %103 = arith.addf %102, %100 : vector<8x8x64xf32>
    %104 = vector.extract_strided_slice %0 {offsets = [0, 0, 1], sizes = [8, 8, 1], strides = [1, 1, 1]} : vector<8x8x3xf32> to vector<8x8x1xf32>
    %105 = vector.extract_strided_slice %92 {offsets = [1, 0], sizes = [1, 64], strides = [1, 1]} : vector<3x64xf32> to vector<1x64xf32>
    %106 = vector.shape_cast %105 : vector<1x64xf32> to vector<1x1x64xf32>
    %107 = vector.broadcast %104 : vector<8x8x1xf32> to vector<8x8x64xf32>
    %108 = vector.broadcast %106 : vector<1x1x64xf32> to vector<8x8x64xf32>
    %109 = arith.mulf %107, %108 : vector<8x8x64xf32>
    %110 = arith.addf %103, %109 : vector<8x8x64xf32>
    %111 = vector.extract_strided_slice %0 {offsets = [0, 0, 2], sizes = [8, 8, 1], strides = [1, 1, 1]} : vector<8x8x3xf32> to vector<8x8x1xf32>
    %112 = vector.extract_strided_slice %92 {offsets = [2, 0], sizes = [1, 64], strides = [1, 1]} : vector<3x64xf32> to vector<1x64xf32>
    %113 = vector.shape_cast %112 : vector<1x64xf32> to vector<1x1x64xf32>
    %114 = vector.broadcast %111 : vector<8x8x1xf32> to vector<8x8x64xf32>
    %115 = vector.broadcast %113 : vector<1x1x64xf32> to vector<8x8x64xf32>
    %116 = arith.mulf %114, %115 : vector<8x8x64xf32>
    %117 = arith.addf %110, %116 : vector<8x8x64xf32>
    %c3_35 = arith.constant 3 : index
    %c0_36 = arith.constant 0 : index
    %c0_37 = arith.constant 0 : index
    %c0_38 = arith.constant 0 : index
    %118 = vector.load %arg7[%c3_35, %c0_36, %c0_37, %c0_38] : memref<4x8x8x64xf32, #tpu.memory_space<vmem>>, vector<1x8x8x64xf32>
    %119 = vector.shape_cast %118 : vector<1x8x8x64xf32> to vector<8x8x64xf32>
    %120 = vector.shape_cast %117 : vector<8x8x64xf32> to vector<1x8x8x64xf32>
    tpu.vector_store %arg7[%c3_35, %c0_36, %c0_37, %c0_38], %120 {strides = array<i32>} : memref<4x8x8x64xf32, #tpu.memory_space<vmem>>, vector<1x8x8x64xf32>,
    %c0_39 = arith.constant 0 : index
    %c0_40 = arith.constant 0 : index
    %c0_41 = arith.constant 0 : index
    %121 = vector.load %arg2[%c0_39, %c0_40, %c0_41] : memref<4x64x64xf32, #tpu.memory_space<vmem>>, vector<1x64x64xf32>
    %122 = vector.shape_cast %121 : vector<1x64x64xf32> to vector<64x64xf32>
    %c1_42 = arith.constant 1 : index
    %c0_43 = arith.constant 0 : index
    %c0_44 = arith.constant 0 : index
    %123 = vector.load %arg2[%c1_42, %c0_43, %c0_44] : memref<4x64x64xf32, #tpu.memory_space<vmem>>, vector<1x64x64xf32>
    %124 = vector.shape_cast %123 : vector<1x64x64xf32> to vector<64x64xf32>
    %c2_45 = arith.constant 2 : index
    %c0_46 = arith.constant 0 : index
    %c0_47 = arith.constant 0 : index
    %125 = vector.load %arg2[%c2_45, %c0_46, %c0_47] : memref<4x64x64xf32, #tpu.memory_space<vmem>>, vector<1x64x64xf32>
    %126 = vector.shape_cast %125 : vector<1x64x64xf32> to vector<64x64xf32>
    %c3_48 = arith.constant 3 : index
    %c0_49 = arith.constant 0 : index
    %c0_50 = arith.constant 0 : index
    %127 = vector.load %arg2[%c3_48, %c0_49, %c0_50] : memref<4x64x64xf32, #tpu.memory_space<vmem>>, vector<1x64x64xf32>
    %128 = vector.shape_cast %127 : vector<1x64x64xf32> to vector<64x64xf32>
    %cst = arith.constant 0.000000e+00 : f32
    %129 = vector.broadcast %cst : f32 to vector<8x64xf32>
    %cst_51 = arith.constant 0.000000e+00 : f32
    %130 = vector.broadcast %cst_51 : f32 to vector<8x64xf32>
    %c0_52 = arith.constant 0 : index
    %c0_53 = arith.constant 0 : index
    %c0_54 = arith.constant 0 : index
    %c0_55 = arith.constant 0 : index
    %131 = vector.load %arg7[%c0_52, %c0_53, %c0_54, %c0_55] : memref<4x8x8x64xf32, #tpu.memory_space<vmem>>, vector<1x1x8x64xf32>
    %132 = vector.shape_cast %131 : vector<1x1x8x64xf32> to vector<8x64xf32>
    %cst_56 = arith.constant dense<0.000000e+00> : vector<8x64xf32>
    %133 = tpu.matmul %129, %122, %cst_56 {dimension_numbers = #tpu.dot_dimension_numbers<[1], [0], [0], [1], [0, 0, 1, 1], [], []>} : vector<8x64xf32>, vector<64x64xf32>, vector<8x64xf32> -> vector<8x64xf32>
    %134 = arith.addf %132, %133 : vector<8x64xf32>
    %c1_57 = arith.constant 1 : index
    %c0_58 = arith.constant 0 : index
    %c0_59 = arith.constant 0 : index
    %c0_60 = arith.constant 0 : index
    %135 = vector.load %arg7[%c1_57, %c0_58, %c0_59, %c0_60] : memref<4x8x8x64xf32, #tpu.memory_space<vmem>>, vector<1x1x8x64xf32>
    %136 = vector.shape_cast %135 : vector<1x1x8x64xf32> to vector<8x64xf32>
    %cst_61 = arith.constant dense<0.000000e+00> : vector<8x64xf32>
    %137 = tpu.matmul %129, %124, %cst_61 {dimension_numbers = #tpu.dot_dimension_numbers<[1], [0], [0], [1], [0, 0, 1, 1], [], []>} : vector<8x64xf32>, vector<64x64xf32>, vector<8x64xf32> -> vector<8x64xf32>
    %138 = arith.addf %136, %137 : vector<8x64xf32>
    %c2_62 = arith.constant 2 : index
    %c0_63 = arith.constant 0 : index
    %c0_64 = arith.constant 0 : index
    %c0_65 = arith.constant 0 : index
    %139 = vector.load %arg7[%c2_62, %c0_63, %c0_64, %c0_65] : memref<4x8x8x64xf32, #tpu.memory_space<vmem>>, vector<1x1x8x64xf32>
    %140 = vector.shape_cast %139 : vector<1x1x8x64xf32> to vector<8x64xf32>
    %cst_66 = arith.constant dense<0.000000e+00> : vector<8x64xf32>
    %141 = tpu.matmul %129, %126, %cst_66 {dimension_numbers = #tpu.dot_dimension_numbers<[1], [0], [0], [1], [0, 0, 1, 1], [], []>} : vector<8x64xf32>, vector<64x64xf32>, vector<8x64xf32> -> vector<8x64xf32>
    %142 = arith.addf %140, %141 : vector<8x64xf32>
    %c3_67 = arith.constant 3 : index
    %c0_68 = arith.constant 0 : index
    %c0_69 = arith.constant 0 : index
    %c0_70 = arith.constant 0 : index
    %143 = vector.load %arg7[%c3_67, %c0_68, %c0_69, %c0_70] : memref<4x8x8x64xf32, #tpu.memory_space<vmem>>, vector<1x1x8x64xf32>
    %144 = vector.shape_cast %143 : vector<1x1x8x64xf32> to vector<8x64xf32>
    %cst_71 = arith.constant dense<0.000000e+00> : vector<8x64xf32>
    %145 = tpu.matmul %129, %128, %cst_71 {dimension_numbers = #tpu.dot_dimension_numbers<[1], [0], [0], [1], [0, 0, 1, 1], [], []>} : vector<8x64xf32>, vector<64x64xf32>, vector<8x64xf32> -> vector<8x64xf32>
    %146 = arith.addf %144, %145 : vector<8x64xf32>
    %147 = arith.negf %134 : vector<8x64xf32>
    %148 = math.exp %147 : vector<8x64xf32>
    %cst_72 = arith.constant 1.000000e+00 : f32
    %149 = vector.broadcast %cst_72 : f32 to vector<8x64xf32>
    %150 = arith.addf %149, %148 : vector<8x64xf32>
    %151 = arith.divf %149, %150 : vector<8x64xf32>
    %152 = arith.negf %138 : vector<8x64xf32>
    %153 = math.exp %152 : vector<8x64xf32>
    %cst_73 = arith.constant 1.000000e+00 : f32
    %154 = vector.broadcast %cst_73 : f32 to vector<8x64xf32>
    %155 = arith.addf %154, %153 : vector<8x64xf32>
    %156 = arith.divf %154, %155 : vector<8x64xf32>
    %157 = math.tanh %142 : vector<8x64xf32>
    %158 = arith.negf %146 : vector<8x64xf32>
    %159 = math.exp %158 : vector<8x64xf32>
    %cst_74 = arith.constant 1.000000e+00 : f32
    %160 = vector.broadcast %cst_74 : f32 to vector<8x64xf32>
    %161 = arith.addf %160, %159 : vector<8x64xf32>
    %162 = arith.divf %160, %161 : vector<8x64xf32>
    %163 = arith.mulf %156, %130 : vector<8x64xf32>
    %164 = arith.mulf %151, %157 : vector<8x64xf32>
    %165 = arith.addf %163, %164 : vector<8x64xf32>
    %166 = math.tanh %165 : vector<8x64xf32>
    %167 = arith.mulf %162, %166 : vector<8x64xf32>
    %c0_75 = arith.constant 0 : index
    %c1_76 = arith.constant 1 : index
    %c0_77 = arith.constant 0 : index
    %c0_78 = arith.constant 0 : index
    %168 = vector.load %arg7[%c0_75, %c1_76, %c0_77, %c0_78] : memref<4x8x8x64xf32, #tpu.memory_space<vmem>>, vector<1x1x8x64xf32>
    %169 = vector.shape_cast %168 : vector<1x1x8x64xf32> to vector<8x64xf32>
    %cst_79 = arith.constant dense<0.000000e+00> : vector<8x64xf32>
    %170 = tpu.matmul %167, %122, %cst_79 {dimension_numbers = #tpu.dot_dimension_numbers<[1], [0], [0], [1], [0, 0, 1, 1], [], []>} : vector<8x64xf32>, vector<64x64xf32>, vector<8x64xf32> -> vector<8x64xf32>
    %171 = arith.addf %169, %170 : vector<8x64xf32>
    %c1_80 = arith.constant 1 : index
    %c1_81 = arith.constant 1 : index
    %c0_82 = arith.constant 0 : index
    %c0_83 = arith.constant 0 : index
    %172 = vector.load %arg7[%c1_80, %c1_81, %c0_82, %c0_83] : memref<4x8x8x64xf32, #tpu.memory_space<vmem>>, vector<1x1x8x64xf32>
    %173 = vector.shape_cast %172 : vector<1x1x8x64xf32> to vector<8x64xf32>
    %cst_84 = arith.constant dense<0.000000e+00> : vector<8x64xf32>
    %174 = tpu.matmul %167, %124, %cst_84 {dimension_numbers = #tpu.dot_dimension_numbers<[1], [0], [0], [1], [0, 0, 1, 1], [], []>} : vector<8x64xf32>, vector<64x64xf32>, vector<8x64xf32> -> vector<8x64xf32>
    %175 = arith.addf %173, %174 : vector<8x64xf32>
    %c2_85 = arith.constant 2 : index
    %c1_86 = arith.constant 1 : index
    %c0_87 = arith.constant 0 : index
    %c0_88 = arith.constant 0 : index
    %176 = vector.load %arg7[%c2_85, %c1_86, %c0_87, %c0_88] : memref<4x8x8x64xf32, #tpu.memory_space<vmem>>, vector<1x1x8x64xf32>
    %177 = vector.shape_cast %176 : vector<1x1x8x64xf32> to vector<8x64xf32>
    %cst_89 = arith.constant dense<0.000000e+00> : vector<8x64xf32>
    %178 = tpu.matmul %167, %126, %cst_89 {dimension_numbers = #tpu.dot_dimension_numbers<[1], [0], [0], [1], [0, 0, 1, 1], [], []>} : vector<8x64xf32>, vector<64x64xf32>, vector<8x64xf32> -> vector<8x64xf32>
    %179 = arith.addf %177, %178 : vector<8x64xf32>
    %c3_90 = arith.constant 3 : index
    %c1_91 = arith.constant 1 : index
    %c0_92 = arith.constant 0 : index
    %c0_93 = arith.constant 0 : index
    %180 = vector.load %arg7[%c3_90, %c1_91, %c0_92, %c0_93] : memref<4x8x8x64xf32, #tpu.memory_space<vmem>>, vector<1x1x8x64xf32>
    %181 = vector.shape_cast %180 : vector<1x1x8x64xf32> to vector<8x64xf32>
    %cst_94 = arith.constant dense<0.000000e+00> : vector<8x64xf32>
    %182 = tpu.matmul %167, %128, %cst_94 {dimension_numbers = #tpu.dot_dimension_numbers<[1], [0], [0], [1], [0, 0, 1, 1], [], []>} : vector<8x64xf32>, vector<64x64xf32>, vector<8x64xf32> -> vector<8x64xf32>
    %183 = arith.addf %181, %182 : vector<8x64xf32>
    %184 = arith.negf %171 : vector<8x64xf32>
    %185 = math.exp %184 : vector<8x64xf32>
    %cst_95 = arith.constant 1.000000e+00 : f32
    %186 = vector.broadcast %cst_95 : f32 to vector<8x64xf32>
    %187 = arith.addf %186, %185 : vector<8x64xf32>
    %188 = arith.divf %186, %187 : vector<8x64xf32>
    %189 = arith.negf %175 : vector<8x64xf32>
    %190 = math.exp %189 : vector<8x64xf32>
    %cst_96 = arith.constant 1.000000e+00 : f32
    %191 = vector.broadcast %cst_96 : f32 to vector<8x64xf32>
    %192 = arith.addf %191, %190 : vector<8x64xf32>
    %193 = arith.divf %191, %192 : vector<8x64xf32>
    %194 = math.tanh %179 : vector<8x64xf32>
    %195 = arith.negf %183 : vector<8x64xf32>
    %196 = math.exp %195 : vector<8x64xf32>
    %cst_97 = arith.constant 1.000000e+00 : f32
    %197 = vector.broadcast %cst_97 : f32 to vector<8x64xf32>
    %198 = arith.addf %197, %196 : vector<8x64xf32>
    %199 = arith.divf %197, %198 : vector<8x64xf32>
    %200 = arith.mulf %193, %165 : vector<8x64xf32>
    %201 = arith.mulf %188, %194 : vector<8x64xf32>
    %202 = arith.addf %200, %201 : vector<8x64xf32>
    %203 = math.tanh %202 : vector<8x64xf32>
    %204 = arith.mulf %199, %203 : vector<8x64xf32>
    %c0_98 = arith.constant 0 : index
    %c2_99 = arith.constant 2 : index
    %c0_100 = arith.constant 0 : index
    %c0_101 = arith.constant 0 : index
    %205 = vector.load %arg7[%c0_98, %c2_99, %c0_100, %c0_101] : memref<4x8x8x64xf32, #tpu.memory_space<vmem>>, vector<1x1x8x64xf32>
    %206 = vector.shape_cast %205 : vector<1x1x8x64xf32> to vector<8x64xf32>
    %cst_102 = arith.constant dense<0.000000e+00> : vector<8x64xf32>
    %207 = tpu.matmul %204, %122, %cst_102 {dimension_numbers = #tpu.dot_dimension_numbers<[1], [0], [0], [1], [0, 0, 1, 1], [], []>} : vector<8x64xf32>, vector<64x64xf32>, vector<8x64xf32> -> vector<8x64xf32>
    %208 = arith.addf %206, %207 : vector<8x64xf32>
    %c1_103 = arith.constant 1 : index
    %c2_104 = arith.constant 2 : index
    %c0_105 = arith.constant 0 : index
    %c0_106 = arith.constant 0 : index
    %209 = vector.load %arg7[%c1_103, %c2_104, %c0_105, %c0_106] : memref<4x8x8x64xf32, #tpu.memory_space<vmem>>, vector<1x1x8x64xf32>
    %210 = vector.shape_cast %209 : vector<1x1x8x64xf32> to vector<8x64xf32>
    %cst_107 = arith.constant dense<0.000000e+00> : vector<8x64xf32>
    %211 = tpu.matmul %204, %124, %cst_107 {dimension_numbers = #tpu.dot_dimension_numbers<[1], [0], [0], [1], [0, 0, 1, 1], [], []>} : vector<8x64xf32>, vector<64x64xf32>, vector<8x64xf32> -> vector<8x64xf32>
    %212 = arith.addf %210, %211 : vector<8x64xf32>
    %c2_108 = arith.constant 2 : index
    %c2_109 = arith.constant 2 : index
    %c0_110 = arith.constant 0 : index
    %c0_111 = arith.constant 0 : index
    %213 = vector.load %arg7[%c2_108, %c2_109, %c0_110, %c0_111] : memref<4x8x8x64xf32, #tpu.memory_space<vmem>>, vector<1x1x8x64xf32>
    %214 = vector.shape_cast %213 : vector<1x1x8x64xf32> to vector<8x64xf32>
    %cst_112 = arith.constant dense<0.000000e+00> : vector<8x64xf32>
    %215 = tpu.matmul %204, %126, %cst_112 {dimension_numbers = #tpu.dot_dimension_numbers<[1], [0], [0], [1], [0, 0, 1, 1], [], []>} : vector<8x64xf32>, vector<64x64xf32>, vector<8x64xf32> -> vector<8x64xf32>
    %216 = arith.addf %214, %215 : vector<8x64xf32>
    %c3_113 = arith.constant 3 : index
    %c2_114 = arith.constant 2 : index
    %c0_115 = arith.constant 0 : index
    %c0_116 = arith.constant 0 : index
    %217 = vector.load %arg7[%c3_113, %c2_114, %c0_115, %c0_116] : memref<4x8x8x64xf32, #tpu.memory_space<vmem>>, vector<1x1x8x64xf32>
    %218 = vector.shape_cast %217 : vector<1x1x8x64xf32> to vector<8x64xf32>
    %cst_117 = arith.constant dense<0.000000e+00> : vector<8x64xf32>
    %219 = tpu.matmul %204, %128, %cst_117 {dimension_numbers = #tpu.dot_dimension_numbers<[1], [0], [0], [1], [0, 0, 1, 1], [], []>} : vector<8x64xf32>, vector<64x64xf32>, vector<8x64xf32> -> vector<8x64xf32>
    %220 = arith.addf %218, %219 : vector<8x64xf32>
    %221 = arith.negf %208 : vector<8x64xf32>
    %222 = math.exp %221 : vector<8x64xf32>
    %cst_118 = arith.constant 1.000000e+00 : f32
    %223 = vector.broadcast %cst_118 : f32 to vector<8x64xf32>
    %224 = arith.addf %223, %222 : vector<8x64xf32>
    %225 = arith.divf %223, %224 : vector<8x64xf32>
    %226 = arith.negf %212 : vector<8x64xf32>
    %227 = math.exp %226 : vector<8x64xf32>
    %cst_119 = arith.constant 1.000000e+00 : f32
    %228 = vector.broadcast %cst_119 : f32 to vector<8x64xf32>
    %229 = arith.addf %228, %227 : vector<8x64xf32>
    %230 = arith.divf %228, %229 : vector<8x64xf32>
    %231 = math.tanh %216 : vector<8x64xf32>
    %232 = arith.negf %220 : vector<8x64xf32>
    %233 = math.exp %232 : vector<8x64xf32>
    %cst_120 = arith.constant 1.000000e+00 : f32
    %234 = vector.broadcast %cst_120 : f32 to vector<8x64xf32>
    %235 = arith.addf %234, %233 : vector<8x64xf32>
    %236 = arith.divf %234, %235 : vector<8x64xf32>
    %237 = arith.mulf %230, %202 : vector<8x64xf32>
    %238 = arith.mulf %225, %231 : vector<8x64xf32>
    %239 = arith.addf %237, %238 : vector<8x64xf32>
    %240 = math.tanh %239 : vector<8x64xf32>
    %241 = arith.mulf %236, %240 : vector<8x64xf32>
    %c0_121 = arith.constant 0 : index
    %c3_122 = arith.constant 3 : index
    %c0_123 = arith.constant 0 : index
    %c0_124 = arith.constant 0 : index
    %242 = vector.load %arg7[%c0_121, %c3_122, %c0_123, %c0_124] : memref<4x8x8x64xf32, #tpu.memory_space<vmem>>, vector<1x1x8x64xf32>
    %243 = vector.shape_cast %242 : vector<1x1x8x64xf32> to vector<8x64xf32>
    %cst_125 = arith.constant dense<0.000000e+00> : vector<8x64xf32>
    %244 = tpu.matmul %241, %122, %cst_125 {dimension_numbers = #tpu.dot_dimension_numbers<[1], [0], [0], [1], [0, 0, 1, 1], [], []>} : vector<8x64xf32>, vector<64x64xf32>, vector<8x64xf32> -> vector<8x64xf32>
    %245 = arith.addf %243, %244 : vector<8x64xf32>
    %c1_126 = arith.constant 1 : index
    %c3_127 = arith.constant 3 : index
    %c0_128 = arith.constant 0 : index
    %c0_129 = arith.constant 0 : index
    %246 = vector.load %arg7[%c1_126, %c3_127, %c0_128, %c0_129] : memref<4x8x8x64xf32, #tpu.memory_space<vmem>>, vector<1x1x8x64xf32>
    %247 = vector.shape_cast %246 : vector<1x1x8x64xf32> to vector<8x64xf32>
    %cst_130 = arith.constant dense<0.000000e+00> : vector<8x64xf32>
    %248 = tpu.matmul %241, %124, %cst_130 {dimension_numbers = #tpu.dot_dimension_numbers<[1], [0], [0], [1], [0, 0, 1, 1], [], []>} : vector<8x64xf32>, vector<64x64xf32>, vector<8x64xf32> -> vector<8x64xf32>
    %249 = arith.addf %247, %248 : vector<8x64xf32>
    %c2_131 = arith.constant 2 : index
    %c3_132 = arith.constant 3 : index
    %c0_133 = arith.constant 0 : index
    %c0_134 = arith.constant 0 : index
    %250 = vector.load %arg7[%c2_131, %c3_132, %c0_133, %c0_134] : memref<4x8x8x64xf32, #tpu.memory_space<vmem>>, vector<1x1x8x64xf32>
    %251 = vector.shape_cast %250 : vector<1x1x8x64xf32> to vector<8x64xf32>
    %cst_135 = arith.constant dense<0.000000e+00> : vector<8x64xf32>
    %252 = tpu.matmul %241, %126, %cst_135 {dimension_numbers = #tpu.dot_dimension_numbers<[1], [0], [0], [1], [0, 0, 1, 1], [], []>} : vector<8x64xf32>, vector<64x64xf32>, vector<8x64xf32> -> vector<8x64xf32>
    %253 = arith.addf %251, %252 : vector<8x64xf32>
    %c3_136 = arith.constant 3 : index
    %c3_137 = arith.constant 3 : index
    %c0_138 = arith.constant 0 : index
    %c0_139 = arith.constant 0 : index
    %254 = vector.load %arg7[%c3_136, %c3_137, %c0_138, %c0_139] : memref<4x8x8x64xf32, #tpu.memory_space<vmem>>, vector<1x1x8x64xf32>
    %255 = vector.shape_cast %254 : vector<1x1x8x64xf32> to vector<8x64xf32>
    %cst_140 = arith.constant dense<0.000000e+00> : vector<8x64xf32>
    %256 = tpu.matmul %241, %128, %cst_140 {dimension_numbers = #tpu.dot_dimension_numbers<[1], [0], [0], [1], [0, 0, 1, 1], [], []>} : vector<8x64xf32>, vector<64x64xf32>, vector<8x64xf32> -> vector<8x64xf32>
    %257 = arith.addf %255, %256 : vector<8x64xf32>
    %258 = arith.negf %245 : vector<8x64xf32>
    %259 = math.exp %258 : vector<8x64xf32>
    %cst_141 = arith.constant 1.000000e+00 : f32
    %260 = vector.broadcast %cst_141 : f32 to vector<8x64xf32>
    %261 = arith.addf %260, %259 : vector<8x64xf32>
    %262 = arith.divf %260, %261 : vector<8x64xf32>
    %263 = arith.negf %249 : vector<8x64xf32>
    %264 = math.exp %263 : vector<8x64xf32>
    %cst_142 = arith.constant 1.000000e+00 : f32
    %265 = vector.broadcast %cst_142 : f32 to vector<8x64xf32>
    %266 = arith.addf %265, %264 : vector<8x64xf32>
    %267 = arith.divf %265, %266 : vector<8x64xf32>
    %268 = math.tanh %253 : vector<8x64xf32>
    %269 = arith.negf %257 : vector<8x64xf32>
    %270 = math.exp %269 : vector<8x64xf32>
    %cst_143 = arith.constant 1.000000e+00 : f32
    %271 = vector.broadcast %cst_143 : f32 to vector<8x64xf32>
    %272 = arith.addf %271, %270 : vector<8x64xf32>
    %273 = arith.divf %271, %272 : vector<8x64xf32>
    %274 = arith.mulf %267, %239 : vector<8x64xf32>
    %275 = arith.mulf %262, %268 : vector<8x64xf32>
    %276 = arith.addf %274, %275 : vector<8x64xf32>
    %277 = math.tanh %276 : vector<8x64xf32>
    %278 = arith.mulf %273, %277 : vector<8x64xf32>
    %c0_144 = arith.constant 0 : index
    %c4 = arith.constant 4 : index
    %c0_145 = arith.constant 0 : index
    %c0_146 = arith.constant 0 : index
    %279 = vector.load %arg7[%c0_144, %c4, %c0_145, %c0_146] : memref<4x8x8x64xf32, #tpu.memory_space<vmem>>, vector<1x1x8x64xf32>
    %280 = vector.shape_cast %279 : vector<1x1x8x64xf32> to vector<8x64xf32>
    %cst_147 = arith.constant dense<0.000000e+00> : vector<8x64xf32>
    %281 = tpu.matmul %278, %122, %cst_147 {dimension_numbers = #tpu.dot_dimension_numbers<[1], [0], [0], [1], [0, 0, 1, 1], [], []>} : vector<8x64xf32>, vector<64x64xf32>, vector<8x64xf32> -> vector<8x64xf32>
    %282 = arith.addf %280, %281 : vector<8x64xf32>
    %c1_148 = arith.constant 1 : index
    %c4_149 = arith.constant 4 : index
    %c0_150 = arith.constant 0 : index
    %c0_151 = arith.constant 0 : index
    %283 = vector.load %arg7[%c1_148, %c4_149, %c0_150, %c0_151] : memref<4x8x8x64xf32, #tpu.memory_space<vmem>>, vector<1x1x8x64xf32>
    %284 = vector.shape_cast %283 : vector<1x1x8x64xf32> to vector<8x64xf32>
    %cst_152 = arith.constant dense<0.000000e+00> : vector<8x64xf32>
    %285 = tpu.matmul %278, %124, %cst_152 {dimension_numbers = #tpu.dot_dimension_numbers<[1], [0], [0], [1], [0, 0, 1, 1], [], []>} : vector<8x64xf32>, vector<64x64xf32>, vector<8x64xf32> -> vector<8x64xf32>
    %286 = arith.addf %284, %285 : vector<8x64xf32>
    %c2_153 = arith.constant 2 : index
    %c4_154 = arith.constant 4 : index
    %c0_155 = arith.constant 0 : index
    %c0_156 = arith.constant 0 : index
    %287 = vector.load %arg7[%c2_153, %c4_154, %c0_155, %c0_156] : memref<4x8x8x64xf32, #tpu.memory_space<vmem>>, vector<1x1x8x64xf32>
    %288 = vector.shape_cast %287 : vector<1x1x8x64xf32> to vector<8x64xf32>
    %cst_157 = arith.constant dense<0.000000e+00> : vector<8x64xf32>
    %289 = tpu.matmul %278, %126, %cst_157 {dimension_numbers = #tpu.dot_dimension_numbers<[1], [0], [0], [1], [0, 0, 1, 1], [], []>} : vector<8x64xf32>, vector<64x64xf32>, vector<8x64xf32> -> vector<8x64xf32>
    %290 = arith.addf %288, %289 : vector<8x64xf32>
    %c3_158 = arith.constant 3 : index
    %c4_159 = arith.constant 4 : index
    %c0_160 = arith.constant 0 : index
    %c0_161 = arith.constant 0 : index
    %291 = vector.load %arg7[%c3_158, %c4_159, %c0_160, %c0_161] : memref<4x8x8x64xf32, #tpu.memory_space<vmem>>, vector<1x1x8x64xf32>
    %292 = vector.shape_cast %291 : vector<1x1x8x64xf32> to vector<8x64xf32>
    %cst_162 = arith.constant dense<0.000000e+00> : vector<8x64xf32>
    %293 = tpu.matmul %278, %128, %cst_162 {dimension_numbers = #tpu.dot_dimension_numbers<[1], [0], [0], [1], [0, 0, 1, 1], [], []>} : vector<8x64xf32>, vector<64x64xf32>, vector<8x64xf32> -> vector<8x64xf32>
    %294 = arith.addf %292, %293 : vector<8x64xf32>
    %295 = arith.negf %282 : vector<8x64xf32>
    %296 = math.exp %295 : vector<8x64xf32>
    %cst_163 = arith.constant 1.000000e+00 : f32
    %297 = vector.broadcast %cst_163 : f32 to vector<8x64xf32>
    %298 = arith.addf %297, %296 : vector<8x64xf32>
    %299 = arith.divf %297, %298 : vector<8x64xf32>
    %300 = arith.negf %286 : vector<8x64xf32>
    %301 = math.exp %300 : vector<8x64xf32>
    %cst_164 = arith.constant 1.000000e+00 : f32
    %302 = vector.broadcast %cst_164 : f32 to vector<8x64xf32>
    %303 = arith.addf %302, %301 : vector<8x64xf32>
    %304 = arith.divf %302, %303 : vector<8x64xf32>
    %305 = math.tanh %290 : vector<8x64xf32>
    %306 = arith.negf %294 : vector<8x64xf32>
    %307 = math.exp %306 : vector<8x64xf32>
    %cst_165 = arith.constant 1.000000e+00 : f32
    %308 = vector.broadcast %cst_165 : f32 to vector<8x64xf32>
    %309 = arith.addf %308, %307 : vector<8x64xf32>
    %310 = arith.divf %308, %309 : vector<8x64xf32>
    %311 = arith.mulf %304, %276 : vector<8x64xf32>
    %312 = arith.mulf %299, %305 : vector<8x64xf32>
    %313 = arith.addf %311, %312 : vector<8x64xf32>
    %314 = math.tanh %313 : vector<8x64xf32>
    %315 = arith.mulf %310, %314 : vector<8x64xf32>
    %c0_166 = arith.constant 0 : index
    %c5 = arith.constant 5 : index
    %c0_167 = arith.constant 0 : index
    %c0_168 = arith.constant 0 : index
    %316 = vector.load %arg7[%c0_166, %c5, %c0_167, %c0_168] : memref<4x8x8x64xf32, #tpu.memory_space<vmem>>, vector<1x1x8x64xf32>
    %317 = vector.shape_cast %316 : vector<1x1x8x64xf32> to vector<8x64xf32>
    %cst_169 = arith.constant dense<0.000000e+00> : vector<8x64xf32>
    %318 = tpu.matmul %315, %122, %cst_169 {dimension_numbers = #tpu.dot_dimension_numbers<[1], [0], [0], [1], [0, 0, 1, 1], [], []>} : vector<8x64xf32>, vector<64x64xf32>, vector<8x64xf32> -> vector<8x64xf32>
    %319 = arith.addf %317, %318 : vector<8x64xf32>
    %c1_170 = arith.constant 1 : index
    %c5_171 = arith.constant 5 : index
    %c0_172 = arith.constant 0 : index
    %c0_173 = arith.constant 0 : index
    %320 = vector.load %arg7[%c1_170, %c5_171, %c0_172, %c0_173] : memref<4x8x8x64xf32, #tpu.memory_space<vmem>>, vector<1x1x8x64xf32>
    %321 = vector.shape_cast %320 : vector<1x1x8x64xf32> to vector<8x64xf32>
    %cst_174 = arith.constant dense<0.000000e+00> : vector<8x64xf32>
    %322 = tpu.matmul %315, %124, %cst_174 {dimension_numbers = #tpu.dot_dimension_numbers<[1], [0], [0], [1], [0, 0, 1, 1], [], []>} : vector<8x64xf32>, vector<64x64xf32>, vector<8x64xf32> -> vector<8x64xf32>
    %323 = arith.addf %321, %322 : vector<8x64xf32>
    %c2_175 = arith.constant 2 : index
    %c5_176 = arith.constant 5 : index
    %c0_177 = arith.constant 0 : index
    %c0_178 = arith.constant 0 : index
    %324 = vector.load %arg7[%c2_175, %c5_176, %c0_177, %c0_178] : memref<4x8x8x64xf32, #tpu.memory_space<vmem>>, vector<1x1x8x64xf32>
    %325 = vector.shape_cast %324 : vector<1x1x8x64xf32> to vector<8x64xf32>
    %cst_179 = arith.constant dense<0.000000e+00> : vector<8x64xf32>
    %326 = tpu.matmul %315, %126, %cst_179 {dimension_numbers = #tpu.dot_dimension_numbers<[1], [0], [0], [1], [0, 0, 1, 1], [], []>} : vector<8x64xf32>, vector<64x64xf32>, vector<8x64xf32> -> vector<8x64xf32>
    %327 = arith.addf %325, %326 : vector<8x64xf32>
    %c3_180 = arith.constant 3 : index
    %c5_181 = arith.constant 5 : index
    %c0_182 = arith.constant 0 : index
    %c0_183 = arith.constant 0 : index
    %328 = vector.load %arg7[%c3_180, %c5_181, %c0_182, %c0_183] : memref<4x8x8x64xf32, #tpu.memory_space<vmem>>, vector<1x1x8x64xf32>
    %329 = vector.shape_cast %328 : vector<1x1x8x64xf32> to vector<8x64xf32>
    %cst_184 = arith.constant dense<0.000000e+00> : vector<8x64xf32>
    %330 = tpu.matmul %315, %128, %cst_184 {dimension_numbers = #tpu.dot_dimension_numbers<[1], [0], [0], [1], [0, 0, 1, 1], [], []>} : vector<8x64xf32>, vector<64x64xf32>, vector<8x64xf32> -> vector<8x64xf32>
    %331 = arith.addf %329, %330 : vector<8x64xf32>
    %332 = arith.negf %319 : vector<8x64xf32>
    %333 = math.exp %332 : vector<8x64xf32>
    %cst_185 = arith.constant 1.000000e+00 : f32
    %334 = vector.broadcast %cst_185 : f32 to vector<8x64xf32>
    %335 = arith.addf %334, %333 : vector<8x64xf32>
    %336 = arith.divf %334, %335 : vector<8x64xf32>
    %337 = arith.negf %323 : vector<8x64xf32>
    %338 = math.exp %337 : vector<8x64xf32>
    %cst_186 = arith.constant 1.000000e+00 : f32
    %339 = vector.broadcast %cst_186 : f32 to vector<8x64xf32>
    %340 = arith.addf %339, %338 : vector<8x64xf32>
    %341 = arith.divf %339, %340 : vector<8x64xf32>
    %342 = math.tanh %327 : vector<8x64xf32>
    %343 = arith.negf %331 : vector<8x64xf32>
    %344 = math.exp %343 : vector<8x64xf32>
    %cst_187 = arith.constant 1.000000e+00 : f32
    %345 = vector.broadcast %cst_187 : f32 to vector<8x64xf32>
    %346 = arith.addf %345, %344 : vector<8x64xf32>
    %347 = arith.divf %345, %346 : vector<8x64xf32>
    %348 = arith.mulf %341, %313 : vector<8x64xf32>
    %349 = arith.mulf %336, %342 : vector<8x64xf32>
    %350 = arith.addf %348, %349 : vector<8x64xf32>
    %351 = math.tanh %350 : vector<8x64xf32>
    %352 = arith.mulf %347, %351 : vector<8x64xf32>
    %c0_188 = arith.constant 0 : index
    %c6 = arith.constant 6 : index
    %c0_189 = arith.constant 0 : index
    %c0_190 = arith.constant 0 : index
    %353 = vector.load %arg7[%c0_188, %c6, %c0_189, %c0_190] : memref<4x8x8x64xf32, #tpu.memory_space<vmem>>, vector<1x1x8x64xf32>
    %354 = vector.shape_cast %353 : vector<1x1x8x64xf32> to vector<8x64xf32>
    %cst_191 = arith.constant dense<0.000000e+00> : vector<8x64xf32>
    %355 = tpu.matmul %352, %122, %cst_191 {dimension_numbers = #tpu.dot_dimension_numbers<[1], [0], [0], [1], [0, 0, 1, 1], [], []>} : vector<8x64xf32>, vector<64x64xf32>, vector<8x64xf32> -> vector<8x64xf32>
    %356 = arith.addf %354, %355 : vector<8x64xf32>
    %c1_192 = arith.constant 1 : index
    %c6_193 = arith.constant 6 : index
    %c0_194 = arith.constant 0 : index
    %c0_195 = arith.constant 0 : index
    %357 = vector.load %arg7[%c1_192, %c6_193, %c0_194, %c0_195] : memref<4x8x8x64xf32, #tpu.memory_space<vmem>>, vector<1x1x8x64xf32>
    %358 = vector.shape_cast %357 : vector<1x1x8x64xf32> to vector<8x64xf32>
    %cst_196 = arith.constant dense<0.000000e+00> : vector<8x64xf32>
    %359 = tpu.matmul %352, %124, %cst_196 {dimension_numbers = #tpu.dot_dimension_numbers<[1], [0], [0], [1], [0, 0, 1, 1], [], []>} : vector<8x64xf32>, vector<64x64xf32>, vector<8x64xf32> -> vector<8x64xf32>
    %360 = arith.addf %358, %359 : vector<8x64xf32>
    %c2_197 = arith.constant 2 : index
    %c6_198 = arith.constant 6 : index
    %c0_199 = arith.constant 0 : index
    %c0_200 = arith.constant 0 : index
    %361 = vector.load %arg7[%c2_197, %c6_198, %c0_199, %c0_200] : memref<4x8x8x64xf32, #tpu.memory_space<vmem>>, vector<1x1x8x64xf32>
    %362 = vector.shape_cast %361 : vector<1x1x8x64xf32> to vector<8x64xf32>
    %cst_201 = arith.constant dense<0.000000e+00> : vector<8x64xf32>
    %363 = tpu.matmul %352, %126, %cst_201 {dimension_numbers = #tpu.dot_dimension_numbers<[1], [0], [0], [1], [0, 0, 1, 1], [], []>} : vector<8x64xf32>, vector<64x64xf32>, vector<8x64xf32> -> vector<8x64xf32>
    %364 = arith.addf %362, %363 : vector<8x64xf32>
    %c3_202 = arith.constant 3 : index
    %c6_203 = arith.constant 6 : index
    %c0_204 = arith.constant 0 : index
    %c0_205 = arith.constant 0 : index
    %365 = vector.load %arg7[%c3_202, %c6_203, %c0_204, %c0_205] : memref<4x8x8x64xf32, #tpu.memory_space<vmem>>, vector<1x1x8x64xf32>
    %366 = vector.shape_cast %365 : vector<1x1x8x64xf32> to vector<8x64xf32>
    %cst_206 = arith.constant dense<0.000000e+00> : vector<8x64xf32>
    %367 = tpu.matmul %352, %128, %cst_206 {dimension_numbers = #tpu.dot_dimension_numbers<[1], [0], [0], [1], [0, 0, 1, 1], [], []>} : vector<8x64xf32>, vector<64x64xf32>, vector<8x64xf32> -> vector<8x64xf32>
    %368 = arith.addf %366, %367 : vector<8x64xf32>
    %369 = arith.negf %356 : vector<8x64xf32>
    %370 = math.exp %369 : vector<8x64xf32>
    %cst_207 = arith.constant 1.000000e+00 : f32
    %371 = vector.broadcast %cst_207 : f32 to vector<8x64xf32>
    %372 = arith.addf %371, %370 : vector<8x64xf32>
    %373 = arith.divf %371, %372 : vector<8x64xf32>
    %374 = arith.negf %360 : vector<8x64xf32>
    %375 = math.exp %374 : vector<8x64xf32>
    %cst_208 = arith.constant 1.000000e+00 : f32
    %376 = vector.broadcast %cst_208 : f32 to vector<8x64xf32>
    %377 = arith.addf %376, %375 : vector<8x64xf32>
    %378 = arith.divf %376, %377 : vector<8x64xf32>
    %379 = math.tanh %364 : vector<8x64xf32>
    %380 = arith.negf %368 : vector<8x64xf32>
    %381 = math.exp %380 : vector<8x64xf32>
    %cst_209 = arith.constant 1.000000e+00 : f32
    %382 = vector.broadcast %cst_209 : f32 to vector<8x64xf32>
    %383 = arith.addf %382, %381 : vector<8x64xf32>
    %384 = arith.divf %382, %383 : vector<8x64xf32>
    %385 = arith.mulf %378, %350 : vector<8x64xf32>
    %386 = arith.mulf %373, %379 : vector<8x64xf32>
    %387 = arith.addf %385, %386 : vector<8x64xf32>
    %388 = math.tanh %387 : vector<8x64xf32>
    %389 = arith.mulf %384, %388 : vector<8x64xf32>
    %c0_210 = arith.constant 0 : index
    %c7 = arith.constant 7 : index
    %c0_211 = arith.constant 0 : index
    %c0_212 = arith.constant 0 : index
    %390 = vector.load %arg7[%c0_210, %c7, %c0_211, %c0_212] : memref<4x8x8x64xf32, #tpu.memory_space<vmem>>, vector<1x1x8x64xf32>
    %391 = vector.shape_cast %390 : vector<1x1x8x64xf32> to vector<8x64xf32>
    %cst_213 = arith.constant dense<0.000000e+00> : vector<8x64xf32>
    %392 = tpu.matmul %389, %122, %cst_213 {dimension_numbers = #tpu.dot_dimension_numbers<[1], [0], [0], [1], [0, 0, 1, 1], [], []>} : vector<8x64xf32>, vector<64x64xf32>, vector<8x64xf32> -> vector<8x64xf32>
    %393 = arith.addf %391, %392 : vector<8x64xf32>
    %c1_214 = arith.constant 1 : index
    %c7_215 = arith.constant 7 : index
    %c0_216 = arith.constant 0 : index
    %c0_217 = arith.constant 0 : index
    %394 = vector.load %arg7[%c1_214, %c7_215, %c0_216, %c0_217] : memref<4x8x8x64xf32, #tpu.memory_space<vmem>>, vector<1x1x8x64xf32>
    %395 = vector.shape_cast %394 : vector<1x1x8x64xf32> to vector<8x64xf32>
    %cst_218 = arith.constant dense<0.000000e+00> : vector<8x64xf32>
    %396 = tpu.matmul %389, %124, %cst_218 {dimension_numbers = #tpu.dot_dimension_numbers<[1], [0], [0], [1], [0, 0, 1, 1], [], []>} : vector<8x64xf32>, vector<64x64xf32>, vector<8x64xf32> -> vector<8x64xf32>
    %397 = arith.addf %395, %396 : vector<8x64xf32>
    %c2_219 = arith.constant 2 : index
    %c7_220 = arith.constant 7 : index
    %c0_221 = arith.constant 0 : index
    %c0_222 = arith.constant 0 : index
    %398 = vector.load %arg7[%c2_219, %c7_220, %c0_221, %c0_222] : memref<4x8x8x64xf32, #tpu.memory_space<vmem>>, vector<1x1x8x64xf32>
    %399 = vector.shape_cast %398 : vector<1x1x8x64xf32> to vector<8x64xf32>
    %cst_223 = arith.constant dense<0.000000e+00> : vector<8x64xf32>
    %400 = tpu.matmul %389, %126, %cst_223 {dimension_numbers = #tpu.dot_dimension_numbers<[1], [0], [0], [1], [0, 0, 1, 1], [], []>} : vector<8x64xf32>, vector<64x64xf32>, vector<8x64xf32> -> vector<8x64xf32>
    %401 = arith.addf %399, %400 : vector<8x64xf32>
    %c3_224 = arith.constant 3 : index
    %c7_225 = arith.constant 7 : index
    %c0_226 = arith.constant 0 : index
    %c0_227 = arith.constant 0 : index
    %402 = vector.load %arg7[%c3_224, %c7_225, %c0_226, %c0_227] : memref<4x8x8x64xf32, #tpu.memory_space<vmem>>, vector<1x1x8x64xf32>
    %403 = vector.shape_cast %402 : vector<1x1x8x64xf32> to vector<8x64xf32>
    %cst_228 = arith.constant dense<0.000000e+00> : vector<8x64xf32>
    %404 = tpu.matmul %389, %128, %cst_228 {dimension_numbers = #tpu.dot_dimension_numbers<[1], [0], [0], [1], [0, 0, 1, 1], [], []>} : vector<8x64xf32>, vector<64x64xf32>, vector<8x64xf32> -> vector<8x64xf32>
    %405 = arith.addf %403, %404 : vector<8x64xf32>
    %406 = arith.negf %393 : vector<8x64xf32>
    %407 = math.exp %406 : vector<8x64xf32>
    %cst_229 = arith.constant 1.000000e+00 : f32
    %408 = vector.broadcast %cst_229 : f32 to vector<8x64xf32>
    %409 = arith.addf %408, %407 : vector<8x64xf32>
    %410 = arith.divf %408, %409 : vector<8x64xf32>
    %411 = arith.negf %397 : vector<8x64xf32>
    %412 = math.exp %411 : vector<8x64xf32>
    %cst_230 = arith.constant 1.000000e+00 : f32
    %413 = vector.broadcast %cst_230 : f32 to vector<8x64xf32>
    %414 = arith.addf %413, %412 : vector<8x64xf32>
    %415 = arith.divf %413, %414 : vector<8x64xf32>
    %416 = math.tanh %401 : vector<8x64xf32>
    %417 = arith.negf %405 : vector<8x64xf32>
    %418 = math.exp %417 : vector<8x64xf32>
    %cst_231 = arith.constant 1.000000e+00 : f32
    %419 = vector.broadcast %cst_231 : f32 to vector<8x64xf32>
    %420 = arith.addf %419, %418 : vector<8x64xf32>
    %421 = arith.divf %419, %420 : vector<8x64xf32>
    %422 = arith.mulf %415, %387 : vector<8x64xf32>
    %423 = arith.mulf %410, %416 : vector<8x64xf32>
    %424 = arith.addf %422, %423 : vector<8x64xf32>
    %425 = math.tanh %424 : vector<8x64xf32>
    %426 = arith.mulf %421, %425 : vector<8x64xf32>
    %c0_232 = arith.constant 0 : index
    %c0_233 = arith.constant 0 : index
    %427 = vector.load %arg4[%c0_232, %c0_233] : memref<1x64xf32, #tpu.memory_space<vmem>>, vector<1x64xf32>
    %428 = vector.broadcast %427 : vector<1x64xf32> to vector<8x64xf32>
    %429 = arith.mulf %426, %428 : vector<8x64xf32>
    %cst_234 = arith.constant dense<0.000000e+00> : vector<8xf32>
    %430 = vector.multi_reduction <add>, %429, %cst_234 [1] : vector<8x64xf32> to vector<8xf32>
    %431 = vector.shape_cast %430 : vector<8xf32> to vector<8x1xf32>
    %c0_235 = arith.constant 0 : index
    %c0_236 = arith.constant 0 : index
    %432 = vector.load %arg5[%c0_235, %c0_236] : memref<1x1xf32, #tpu.memory_space<vmem>>, vector<1x1xf32>
    %433 = vector.broadcast %432 : vector<1x1xf32> to vector<8x1xf32>
    %434 = arith.addf %431, %433 : vector<8x1xf32>
    %c0_237 = arith.constant 0 : index
    %c0_238 = arith.constant 0 : index
    %435 = vector.load %arg6[%c0_237, %c0_238] : memref<8x1xf32, #tpu.memory_space<vmem>>, vector<8x1xf32>
    tpu.vector_store %arg6[%c0_237, %c0_238], %434 {strides = array<i32>} : memref<8x1xf32, #tpu.memory_space<vmem>>, vector<8x1xf32>,
    return
  }
}

</mosaic_0001>

<llo_original>
// kernel: uniswap_price_predictor.1
$region0: #{uniswap_price_predictor.1}
  #allocation0 [shape = 'u32[]', space=smem, size = 0x4, offset = 0x4, fixed_abs, tag = 'smem constant byte address 0x4 - core index']
  #allocation1 [shape = 'u32[144,128]{1,0:T(1,128)}', space=vmem, size = 0x12000, scoped, tag = 'internal scratch']
  #allocation2 [shape = 'f32[4,8,8,64]{3,2,1,0:T(8,128)}', space=vmem, size = 0x20000, scoped, tag = 'scratch operand']
  #allocation3 [shape = 'f32[1,1]{1,0:T(1,128)S(1)}', space=vmem, size = 0x200, scoped, tag = 'scoped memory for uniswap_price_predictor.1']
  %s0 = inlined_call_operand.vmem [shape: f32[8,8,3], index: 0, kind: input, shape index: {}]
  %s1 = inlined_call_operand.vmem [shape: f32[4,3,64], index: 1, kind: input, shape index: {}]
  %s2 = inlined_call_operand.hbm [shape: f32[4,64,64], index: 2, kind: input, shape index: {}]
  %s3 = inlined_call_operand.vmem [shape: f32[4,1,64], index: 3, kind: input, shape index: {}]
  %s4 = inlined_call_operand.vmem [shape: f32[1,64], index: 4, kind: input, shape index: {}]
  %s5 = inlined_call_operand.<no memory space> [shape: f32[1,1], index: 5, kind: input, shape index: {}]
  %s6 = inlined_call_operand.vmem [shape: f32[8,1], index: 6, kind: output, shape index: {}]
  %s7 = sld [smem:[#allocation0]]
  $region38: #{uniswap_price_predictor.1} parent=0
    _
  %s9 = ssub.s32 1, %s7
  %s10 = scalar_select 0, %s9, %s7
  %v11 = vstv %s5
  %12 = vst [vmem:[#allocation3] sm:$0x1] %v11
  $region1: #{uniswap_price_predictor.1} parent=0
    #allocation4 [shape = 'u8[131072]{0}', space=vmem, size = 0x20000, scoped, tag = 'input window, operand 2, single buffered']
    #allocation5 [shape = 's32[1]{0}', space=sflag, size = 0x4, scoped, tag = 'scoped memory for uniswap_price_predictor.1']
    %13 = vsyncpa [#allocation5], 0
    // Predicated region
    $region2: #{uniswap_price_predictor.1} parent=1 // pred_check
      _
    $region3: #{uniswap_price_predictor.1} parent=1 // pred_check_branch
      %15 = sbr.rel (0) target = $region5
    $region4: #{uniswap_price_predictor.1} parent=1 // pred_region
      _
    $region5: #{uniswap_price_predictor.1} parent=1 // pred_fallthru
      _
    // Predicated region
    $region6: #{uniswap_price_predictor.1} parent=1 // pred_check
      _
    $region7: #{uniswap_price_predictor.1} parent=1 // pred_check_branch
      %17 = sbr.rel (0) target = $region9
    $region8: #{uniswap_price_predictor.1} parent=1 // pred_region
      _
    $region9: #{uniswap_price_predictor.1} parent=1 // pred_fallthru
      _
    // Predicated region
    $region10: #{uniswap_price_predictor.1} parent=1 // pred_check
      _
    $region11: #{uniswap_price_predictor.1} parent=1 // pred_check_branch
      %19 = sbr.rel (0) target = $region13
    $region12: #{uniswap_price_predictor.1} parent=1 // pred_region
      %s21 = ssub.s32 4096, 4096
      %22 = vsyncadd [#allocation5], %s21
      %s23 = sshll.u32 [#allocation4], 4
      %s24 = int_to_ptr.vmem [resolvable:$true] %s23
      %29 = dma.hbm_to_vmem [thread:$0]  %s2, 4096, %s24, [#allocation5], 128, 128, 8
    $region13: #{uniswap_price_predictor.1} parent=1 // pred_fallthru
      _
    // Predicated region
    $region14: #{uniswap_price_predictor.1} parent=1 // pred_check
      _
    $region15: #{uniswap_price_predictor.1} parent=1 // pred_check_branch
      %31 = sbr.rel (0) target = $region17
    $region16: #{uniswap_price_predictor.1} parent=1 // pred_region
      _
    $region17: #{uniswap_price_predictor.1} parent=1 // pred_fallthru
      _
    // Predicated region
    $region18: #{uniswap_price_predictor.1} parent=1 // pred_check
      _
    $region19: #{uniswap_price_predictor.1} parent=1 // pred_check_branch
      %33 = sbr.rel (0) target = $region21
    $region20: #{uniswap_price_predictor.1} parent=1 // pred_region
      _
    $region21: #{uniswap_price_predictor.1} parent=1 // pred_fallthru
      _
    // Predicated region
    $region22: #{uniswap_price_predictor.1} parent=1 // pred_check
      _
    $region23: #{uniswap_price_predictor.1} parent=1 // pred_check_branch
      %35 = sbr.rel (0) target = $region25
    $region24: #{uniswap_price_predictor.1} parent=1 // pred_region
      _
    $region25: #{uniswap_price_predictor.1} parent=1 // pred_fallthru
      _
    // Predicated region
    $region26: #{uniswap_price_predictor.1} parent=1 // pred_check
      _
    $region27: #{uniswap_price_predictor.1} parent=1 // pred_check_branch
      %37 = sbr.rel (0) target = $region29
    $region28: #{uniswap_price_predictor.1} parent=1 // pred_region
      %38 = dma.done [#allocation5], 4096
    $region29: #{uniswap_price_predictor.1} parent=1 // pred_fallthru
      _
    %v39 = vld [vmem:[%s0] sm:$0xff]
    %v40 = vld [vmem:[%s0 + $0x8] sm:$0xff]
    %v41 = vld [vmem:[%s0 + $0x10] sm:$0xff]
    %v42 = vld [vmem:[%s0 + $0x18] sm:$0xff]
    %v43 = vld [vmem:[%s0 + $0x20] sm:$0xff]
    %v44 = vld [vmem:[%s0 + $0x28] sm:$0xff]
    %v45 = vld [vmem:[%s0 + $0x30] sm:$0xff]
    %v46 = vld [vmem:[%s0 + $0x38] sm:$0xff]
    %v47 = vld [vmem:[%s1] sm:$0x7]
    %v48 = vld [vmem:[%s3] sm:$0x1]
    %50 = vset.pattern.permute.xlu0 0
    %51 = vperm.xlu0 %50, %v39
    %v52 = vpop.permute.xlu0 %51
    %55 = vset.pattern.permute.xlu0 0
    %56 = vperm.xlu0 %55, %v40
    %v57 = vpop.permute.xlu0 %56
    %60 = vset.pattern.permute.xlu0 0
    %61 = vperm.xlu0 %60, %v41
    %v62 = vpop.permute.xlu0 %61
    %65 = vset.pattern.permute.xlu0 0
    %66 = vperm.xlu0 %65, %v42
    %v67 = vpop.permute.xlu0 %66
    %70 = vset.pattern.permute.xlu0 0
    %71 = vperm.xlu0 %70, %v43
    %v72 = vpop.permute.xlu0 %71
    %75 = vset.pattern.permute.xlu0 0
    %76 = vperm.xlu0 %75, %v44
    %v77 = vpop.permute.xlu0 %76
    %80 = vset.pattern.permute.xlu0 0
    %81 = vperm.xlu0 %80, %v45
    %v82 = vpop.permute.xlu0 %81
    %85 = vset.pattern.permute.xlu0 0
    %86 = vperm.xlu0 %85, %v46
    %v87 = vpop.permute.xlu0 %86
    %v89 = vlaneseq
    %v90 = vshrl.u32 %v89, 7
    %v91 = vsub.s32 0, %v90
    %v92 = vrot.slane %v47, %v91
    %v93 = vmul.f32 %v52, %v92
    %v94 = vmul.f32 %v57, %v92
    %v95 = vmul.f32 %v62, %v92
    %v96 = vmul.f32 %v67, %v92
    %v97 = vmul.f32 %v72, %v92
    %v98 = vmul.f32 %v77, %v92
    %v99 = vmul.f32 %v82, %v92
    %v100 = vmul.f32 %v87, %v92
    %v102 = vlaneseq
    %v103 = vshrl.u32 %v102, 7
    %v104 = vsub.s32 0, %v103
    %v105 = vrot.slane %v48, %v104
    %v107 = vadd.f32 %v105, %v93
    %v108 = vadd.f32 %v105, %v94
    %v109 = vadd.f32 %v105, %v95
    %v110 = vadd.f32 %v105, %v96
    %v111 = vadd.f32 %v105, %v97
    %v112 = vadd.f32 %v105, %v98
    %v113 = vadd.f32 %v105, %v99
    %v114 = vadd.f32 %v105, %v100
    %115 = vset.pattern.permute.xlu0 1
    %116 = vperm.xlu0 %115, %v39
    %v117 = vpop.permute.xlu0 %116
    %119 = vset.pattern.permute.xlu0 1
    %120 = vperm.xlu0 %119, %v40
    %v121 = vpop.permute.xlu0 %120
    %123 = vset.pattern.permute.xlu0 1
    %124 = vperm.xlu0 %123, %v41
    %v125 = vpop.permute.xlu0 %124
    %127 = vset.pattern.permute.xlu0 1
    %128 = vperm.xlu0 %127, %v42
    %v129 = vpop.permute.xlu0 %128
    %131 = vset.pattern.permute.xlu0 1
    %132 = vperm.xlu0 %131, %v43
    %v133 = vpop.permute.xlu0 %132
    %135 = vset.pattern.permute.xlu0 1
    %136 = vperm.xlu0 %135, %v44
    %v137 = vpop.permute.xlu0 %136
    %139 = vset.pattern.permute.xlu0 1
    %140 = vperm.xlu0 %139, %v45
    %v141 = vpop.permute.xlu0 %140
    %143 = vset.pattern.permute.xlu0 1
    %144 = vperm.xlu0 %143, %v46
    %v145 = vpop.permute.xlu0 %144
    %v147 = vlaneseq
    %v148 = vshrl.u32 %v147, 7
    %v149 = vsub.s32 1, %v148
    %v150 = vrot.slane %v47, %v149
    %v151 = vmul.f32 %v117, %v150
    %v152 = vmul.f32 %v121, %v150
    %v153 = vmul.f32 %v125, %v150
    %v154 = vmul.f32 %v129, %v150
    %v155 = vmul.f32 %v133, %v150
    %v156 = vmul.f32 %v137, %v150
    %v157 = vmul.f32 %v141, %v150
    %v158 = vmul.f32 %v145, %v150
    %v159 = vadd.f32 %v107, %v151
    %v160 = vadd.f32 %v108, %v152
    %v161 = vadd.f32 %v109, %v153
    %v162 = vadd.f32 %v110, %v154
    %v163 = vadd.f32 %v111, %v155
    %v164 = vadd.f32 %v112, %v156
    %v165 = vadd.f32 %v113, %v157
    %v166 = vadd.f32 %v114, %v158
    %167 = vset.pattern.permute.xlu0 2
    %168 = vperm.xlu0 %167, %v39
    %v169 = vpop.permute.xlu0 %168
    %171 = vset.pattern.permute.xlu0 2
    %172 = vperm.xlu0 %171, %v40
    %v173 = vpop.permute.xlu0 %172
    %175 = vset.pattern.permute.xlu0 2
    %176 = vperm.xlu0 %175, %v41
    %v177 = vpop.permute.xlu0 %176
    %179 = vset.pattern.permute.xlu0 2
    %180 = vperm.xlu0 %179, %v42
    %v181 = vpop.permute.xlu0 %180
    %183 = vset.pattern.permute.xlu0 2
    %184 = vperm.xlu0 %183, %v43
    %v185 = vpop.permute.xlu0 %184
    %187 = vset.pattern.permute.xlu0 2
    %188 = vperm.xlu0 %187, %v44
    %v189 = vpop.permute.xlu0 %188
    %191 = vset.pattern.permute.xlu0 2
    %192 = vperm.xlu0 %191, %v45
    %v193 = vpop.permute.xlu0 %192
    %195 = vset.pattern.permute.xlu0 2
    %196 = vperm.xlu0 %195, %v46
    %v197 = vpop.permute.xlu0 %196
    %v199 = vlaneseq
    %v200 = vshrl.u32 %v199, 7
    %v201 = vsub.s32 2, %v200
    %v202 = vrot.slane %v47, %v201
    %v203 = vmul.f32 %v169, %v202
    %v204 = vmul.f32 %v173, %v202
    %v205 = vmul.f32 %v177, %v202
    %v206 = vmul.f32 %v181, %v202
    %v207 = vmul.f32 %v185, %v202
    %v208 = vmul.f32 %v189, %v202
    %v209 = vmul.f32 %v193, %v202
    %v210 = vmul.f32 %v197, %v202
    %v211 = vadd.f32 %v159, %v203
    %v212 = vadd.f32 %v160, %v204
    %v213 = vadd.f32 %v161, %v205
    %v214 = vadd.f32 %v162, %v206
    %v215 = vadd.f32 %v163, %v207
    %v216 = vadd.f32 %v164, %v208
    %v217 = vadd.f32 %v165, %v209
    %v218 = vadd.f32 %v166, %v210
    %vm219 = vcmask 523264
    %220 = vst.msk [vmem:[#allocation2] sm:$0xff] %vm219, %v211
    %221 = vst.msk [vmem:[#allocation2 + $0x8] sm:$0xff] %vm219, %v212
    %222 = vst.msk [vmem:[#allocation2 + $0x10] sm:$0xff] %vm219, %v213
    %223 = vst.msk [vmem:[#allocation2 + $0x18] sm:$0xff] %vm219, %v214
    %224 = vst.msk [vmem:[#allocation2 + $0x20] sm:$0xff] %vm219, %v215
    %225 = vst.msk [vmem:[#allocation2 + $0x28] sm:$0xff] %vm219, %v216
    %226 = vst.msk [vmem:[#allocation2 + $0x30] sm:$0xff] %vm219, %v217
    %227 = vst.msk [vmem:[#allocation2 + $0x38] sm:$0xff] %vm219, %v218
    %s228 = scalar_lea.vmem %s1, 4
    %v229 = vld [vmem:[%s228] sm:$0x7]
    %s230 = scalar_lea.vmem %s3, 1
    %v231 = vld [vmem:[%s230] sm:$0x1]
    %v232 = vlaneseq
    %v233 = vshrl.u32 %v232, 7
    %v234 = vsub.s32 0, %v233
    %v235 = vrot.slane %v229, %v234
    %v236 = vmul.f32 %v52, %v235
    %v237 = vmul.f32 %v57, %v235
    %v238 = vmul.f32 %v62, %v235
    %v239 = vmul.f32 %v67, %v235
    %v240 = vmul.f32 %v72, %v235
    %v241 = vmul.f32 %v77, %v235
    %v242 = vmul.f32 %v82, %v235
    %v243 = vmul.f32 %v87, %v235
    %v245 = vlaneseq
    %v246 = vshrl.u32 %v245, 7
    %v247 = vsub.s32 0, %v246
    %v248 = vrot.slane %v231, %v247
    %v250 = vadd.f32 %v248, %v236
    %v251 = vadd.f32 %v248, %v237
    %v252 = vadd.f32 %v248, %v238
    %v253 = vadd.f32 %v248, %v239
    %v254 = vadd.f32 %v248, %v240
    %v255 = vadd.f32 %v248, %v241
    %v256 = vadd.f32 %v248, %v242
    %v257 = vadd.f32 %v248, %v243
    %v258 = vlaneseq
    %v259 = vshrl.u32 %v258, 7
    %v260 = vsub.s32 1, %v259
    %v261 = vrot.slane %v229, %v260
    %v262 = vmul.f32 %v117, %v261
    %v263 = vmul.f32 %v121, %v261
    %v264 = vmul.f32 %v125, %v261
    %v265 = vmul.f32 %v129, %v261
    %v266 = vmul.f32 %v133, %v261
    %v267 = vmul.f32 %v137, %v261
    %v268 = vmul.f32 %v141, %v261
    %v269 = vmul.f32 %v145, %v261
    %v270 = vadd.f32 %v250, %v262
    %v271 = vadd.f32 %v251, %v263
    %v272 = vadd.f32 %v252, %v264
    %v273 = vadd.f32 %v253, %v265
    %v274 = vadd.f32 %v254, %v266
    %v275 = vadd.f32 %v255, %v267
    %v276 = vadd.f32 %v256, %v268
    %v277 = vadd.f32 %v257, %v269
    %v278 = vlaneseq
    %v279 = vshrl.u32 %v278, 7
    %v280 = vsub.s32 2, %v279
    %v281 = vrot.slane %v229, %v280
    %v282 = vmul.f32 %v169, %v281
    %v283 = vmul.f32 %v173, %v281
    %v284 = vmul.f32 %v177, %v281
    %v285 = vmul.f32 %v181, %v281
    %v286 = vmul.f32 %v185, %v281
    %v287 = vmul.f32 %v189, %v281
    %v288 = vmul.f32 %v193, %v281
    %v289 = vmul.f32 %v197, %v281
    %v290 = vadd.f32 %v270, %v282
    %v291 = vadd.f32 %v271, %v283
    %v292 = vadd.f32 %v272, %v284
    %v293 = vadd.f32 %v273, %v285
    %v294 = vadd.f32 %v274, %v286
    %v295 = vadd.f32 %v275, %v287
    %v296 = vadd.f32 %v276, %v288
    %v297 = vadd.f32 %v277, %v289
    %s298 = scalar_lea.vmem [#allocation2], 64
    %299 = vst.msk [vmem:[%s298] sm:$0xff] %vm219, %v290
    %300 = vst.msk [vmem:[%s298 + $0x8] sm:$0xff] %vm219, %v291
    %301 = vst.msk [vmem:[%s298 + $0x10] sm:$0xff] %vm219, %v292
    %302 = vst.msk [vmem:[%s298 + $0x18] sm:$0xff] %vm219, %v293
    %303 = vst.msk [vmem:[%s298 + $0x20] sm:$0xff] %vm219, %v294
    %304 = vst.msk [vmem:[%s298 + $0x28] sm:$0xff] %vm219, %v295
    %305 = vst.msk [vmem:[%s298 + $0x30] sm:$0xff] %vm219, %v296
    %306 = vst.msk [vmem:[%s298 + $0x38] sm:$0xff] %vm219, %v297
    %s307 = scalar_lea.vmem %s1, 8
    %v308 = vld [vmem:[%s307] sm:$0x7]
    %s309 = scalar_lea.vmem %s3, 2
    %v310 = vld [vmem:[%s309] sm:$0x1]
    %v311 = vlaneseq
    %v312 = vshrl.u32 %v311, 7
    %v313 = vsub.s32 0, %v312
    %v314 = vrot.slane %v308, %v313
    %v315 = vmul.f32 %v52, %v314
    %v316 = vmul.f32 %v57, %v314
    %v317 = vmul.f32 %v62, %v314
    %v318 = vmul.f32 %v67, %v314
    %v319 = vmul.f32 %v72, %v314
    %v320 = vmul.f32 %v77, %v314
    %v321 = vmul.f32 %v82, %v314
    %v322 = vmul.f32 %v87, %v314
    %v324 = vlaneseq
    %v325 = vshrl.u32 %v324, 7
    %v326 = vsub.s32 0, %v325
    %v327 = vrot.slane %v310, %v326
    %v329 = vadd.f32 %v327, %v315
    %v330 = vadd.f32 %v327, %v316
    %v331 = vadd.f32 %v327, %v317
    %v332 = vadd.f32 %v327, %v318
    %v333 = vadd.f32 %v327, %v319
    %v334 = vadd.f32 %v327, %v320
    %v335 = vadd.f32 %v327, %v321
    %v336 = vadd.f32 %v327, %v322
    %v337 = vlaneseq
    %v338 = vshrl.u32 %v337, 7
    %v339 = vsub.s32 1, %v338
    %v340 = vrot.slane %v308, %v339
    %v341 = vmul.f32 %v117, %v340
    %v342 = vmul.f32 %v121, %v340
    %v343 = vmul.f32 %v125, %v340
    %v344 = vmul.f32 %v129, %v340
    %v345 = vmul.f32 %v133, %v340
    %v346 = vmul.f32 %v137, %v340
    %v347 = vmul.f32 %v141, %v340
    %v348 = vmul.f32 %v145, %v340
    %v349 = vadd.f32 %v329, %v341
    %v350 = vadd.f32 %v330, %v342
    %v351 = vadd.f32 %v331, %v343
    %v352 = vadd.f32 %v332, %v344
    %v353 = vadd.f32 %v333, %v345
    %v354 = vadd.f32 %v334, %v346
    %v355 = vadd.f32 %v335, %v347
    %v356 = vadd.f32 %v336, %v348
    %v357 = vlaneseq
    %v358 = vshrl.u32 %v357, 7
    %v359 = vsub.s32 2, %v358
    %v360 = vrot.slane %v308, %v359
    %v361 = vmul.f32 %v169, %v360
    %v362 = vmul.f32 %v173, %v360
    %v363 = vmul.f32 %v177, %v360
    %v364 = vmul.f32 %v181, %v360
    %v365 = vmul.f32 %v185, %v360
    %v366 = vmul.f32 %v189, %v360
    %v367 = vmul.f32 %v193, %v360
    %v368 = vmul.f32 %v197, %v360
    %v369 = vadd.f32 %v349, %v361
    %v370 = vadd.f32 %v350, %v362
    %v371 = vadd.f32 %v351, %v363
    %v372 = vadd.f32 %v352, %v364
    %v373 = vadd.f32 %v353, %v365
    %v374 = vadd.f32 %v354, %v366
    %v375 = vadd.f32 %v355, %v367
    %v376 = vadd.f32 %v356, %v368
    %s377 = scalar_lea.vmem [#allocation2], 128
    %378 = vst.msk [vmem:[%s377] sm:$0xff] %vm219, %v369
    %379 = vst.msk [vmem:[%s377 + $0x8] sm:$0xff] %vm219, %v370
    %380 = vst.msk [vmem:[%s377 + $0x10] sm:$0xff] %vm219, %v371
    %381 = vst.msk [vmem:[%s377 + $0x18] sm:$0xff] %vm219, %v372
    %382 = vst.msk [vmem:[%s377 + $0x20] sm:$0xff] %vm219, %v373
    %383 = vst.msk [vmem:[%s377 + $0x28] sm:$0xff] %vm219, %v374
    %384 = vst.msk [vmem:[%s377 + $0x30] sm:$0xff] %vm219, %v375
    %385 = vst.msk [vmem:[%s377 + $0x38] sm:$0xff] %vm219, %v376
    %s386 = scalar_lea.vmem %s1, 12
    %v387 = vld [vmem:[%s386] sm:$0x7]
    %s388 = scalar_lea.vmem %s3, 3
    %v389 = vld [vmem:[%s388] sm:$0x1]
    %v390 = vlaneseq
    %v391 = vshrl.u32 %v390, 7
    %v392 = vsub.s32 0, %v391
    %v393 = vrot.slane %v387, %v392
    %v394 = vmul.f32 %v52, %v393
    %v395 = vmul.f32 %v57, %v393
    %v396 = vmul.f32 %v62, %v393
    %v397 = vmul.f32 %v67, %v393
    %v398 = vmul.f32 %v72, %v393
    %v399 = vmul.f32 %v77, %v393
    %v400 = vmul.f32 %v82, %v393
    %v401 = vmul.f32 %v87, %v393
    %v403 = vlaneseq
    %v404 = vshrl.u32 %v403, 7
    %v405 = vsub.s32 0, %v404
    %v406 = vrot.slane %v389, %v405
    %v408 = vadd.f32 %v406, %v394
    %v409 = vadd.f32 %v406, %v395
    %v410 = vadd.f32 %v406, %v396
    %v411 = vadd.f32 %v406, %v397
    %v412 = vadd.f32 %v406, %v398
    %v413 = vadd.f32 %v406, %v399
    %v414 = vadd.f32 %v406, %v400
    %v415 = vadd.f32 %v406, %v401
    %v416 = vlaneseq
    %v417 = vshrl.u32 %v416, 7
    %v418 = vsub.s32 1, %v417
    %v419 = vrot.slane %v387, %v418
    %v420 = vmul.f32 %v117, %v419
    %v421 = vmul.f32 %v121, %v419
    %v422 = vmul.f32 %v125, %v419
    %v423 = vmul.f32 %v129, %v419
    %v424 = vmul.f32 %v133, %v419
    %v425 = vmul.f32 %v137, %v419
    %v426 = vmul.f32 %v141, %v419
    %v427 = vmul.f32 %v145, %v419
    %v428 = vadd.f32 %v408, %v420
    %v429 = vadd.f32 %v409, %v421
    %v430 = vadd.f32 %v410, %v422
    %v431 = vadd.f32 %v411, %v423
    %v432 = vadd.f32 %v412, %v424
    %v433 = vadd.f32 %v413, %v425
    %v434 = vadd.f32 %v414, %v426
    %v435 = vadd.f32 %v415, %v427
    %v436 = vlaneseq
    %v437 = vshrl.u32 %v436, 7
    %v438 = vsub.s32 2, %v437
    %v439 = vrot.slane %v387, %v438
    %v440 = vmul.f32 %v169, %v439
    %v441 = vmul.f32 %v173, %v439
    %v442 = vmul.f32 %v177, %v439
    %v443 = vmul.f32 %v181, %v439
    %v444 = vmul.f32 %v185, %v439
    %v445 = vmul.f32 %v189, %v439
    %v446 = vmul.f32 %v193, %v439
    %v447 = vmul.f32 %v197, %v439
    %v448 = vadd.f32 %v428, %v440
    %v449 = vadd.f32 %v429, %v441
    %v450 = vadd.f32 %v430, %v442
    %v451 = vadd.f32 %v431, %v443
    %v452 = vadd.f32 %v432, %v444
    %v453 = vadd.f32 %v433, %v445
    %v454 = vadd.f32 %v434, %v446
    %v455 = vadd.f32 %v435, %v447
    %s456 = scalar_lea.vmem [#allocation2], 192
    %457 = vst.msk [vmem:[%s456] sm:$0xff] %vm219, %v448
    %458 = vst.msk [vmem:[%s456 + $0x8] sm:$0xff] %vm219, %v449
    %459 = vst.msk [vmem:[%s456 + $0x10] sm:$0xff] %vm219, %v450
    %460 = vst.msk [vmem:[%s456 + $0x18] sm:$0xff] %vm219, %v451
    %461 = vst.msk [vmem:[%s456 + $0x20] sm:$0xff] %vm219, %v452
    %462 = vst.msk [vmem:[%s456 + $0x28] sm:$0xff] %vm219, %v453
    %463 = vst.msk [vmem:[%s456 + $0x30] sm:$0xff] %vm219, %v454
    %464 = vst.msk [vmem:[%s456 + $0x38] sm:$0xff] %vm219, %v455
    %v465 = vld [vmem:[#allocation4] sm:$0xff]
    %v466 = vld [vmem:[#allocation4 + $0x8] sm:$0xff]
    %v467 = vld [vmem:[#allocation4 + $0x10] sm:$0xff]
    %v468 = vld [vmem:[#allocation4 + $0x18] sm:$0xff]
    %v469 = vld [vmem:[#allocation4 + $0x20] sm:$0xff]
    %v470 = vld [vmem:[#allocation4 + $0x28] sm:$0xff]
    %v471 = vld [vmem:[#allocation4 + $0x30] sm:$0xff]
    %v472 = vld [vmem:[#allocation4 + $0x38] sm:$0xff]
    %s473 = scalar_lea.vmem [#allocation4], 64
    %v474 = vld [vmem:[%s473] sm:$0xff]
    %v475 = vld [vmem:[%s473 + $0x8] sm:$0xff]
    %v476 = vld [vmem:[%s473 + $0x10] sm:$0xff]
    %v477 = vld [vmem:[%s473 + $0x18] sm:$0xff]
    %v478 = vld [vmem:[%s473 + $0x20] sm:$0xff]
    %v479 = vld [vmem:[%s473 + $0x28] sm:$0xff]
    %v480 = vld [vmem:[%s473 + $0x30] sm:$0xff]
    %v481 = vld [vmem:[%s473 + $0x38] sm:$0xff]
    %s482 = scalar_lea.vmem [#allocation4], 128
    %v483 = vld [vmem:[%s482] sm:$0xff]
    %v484 = vld [vmem:[%s482 + $0x8] sm:$0xff]
    %v485 = vld [vmem:[%s482 + $0x10] sm:$0xff]
    %v486 = vld [vmem:[%s482 + $0x18] sm:$0xff]
    %v487 = vld [vmem:[%s482 + $0x20] sm:$0xff]
    %v488 = vld [vmem:[%s482 + $0x28] sm:$0xff]
    %v489 = vld [vmem:[%s482 + $0x30] sm:$0xff]
    %v490 = vld [vmem:[%s482 + $0x38] sm:$0xff]
    %s491 = scalar_lea.vmem [#allocation4], 192
    %v492 = vld [vmem:[%s491] sm:$0xff]
    %v493 = vld [vmem:[%s491 + $0x8] sm:$0xff]
    %v494 = vld [vmem:[%s491 + $0x10] sm:$0xff]
    %v495 = vld [vmem:[%s491 + $0x18] sm:$0xff]
    %v496 = vld [vmem:[%s491 + $0x20] sm:$0xff]
    %v497 = vld [vmem:[%s491 + $0x28] sm:$0xff]
    %v498 = vld [vmem:[%s491 + $0x30] sm:$0xff]
    %v499 = vld [vmem:[%s491 + $0x38] sm:$0xff]
    %v500 = vld [vmem:[#allocation2] sm:$0xff]
    %v502 = vsel %vm219, 0.0, 0
    %504 = vmatprep.subr.mxu0 0.0
    %505 = vmatpush1.msra.mxu0 0.0
    %506 = vmatprep.subr.mxu0 0.0
    %507 = vmatpush1.msra.mxu0 0.0
    %508 = vmatprep.subr.mxu0 0.0
    %509 = vmatpush1.msra.mxu0 0.0
    %510 = vmatprep.subr.mxu0 0.0
    %511 = vmatpush1.msra.mxu0 0.0
    %512 = vmatprep.subr.mxu0 0.0
    %513 = vmatpush1.msra.mxu0 0.0
    %514 = vmatprep.subr.mxu0 0.0
    %515 = vmatpush1.msra.mxu0 0.0
    %516 = vmatprep.subr.mxu0 0.0
    %517 = vmatpush1.msra.mxu0 0.0
    %518 = vmatprep.subr.mxu0 0.0
    %519 = vmatpush1.msra.mxu0 0.0
    %520 = vmatprep.subr.mxu0 0.0
    %521 = vmatpush1.msra.mxu0 %v472
    %522 = vmatprep.subr.mxu0 0.0
    %523 = vmatpush1.msra.mxu0 %v471
    %524 = vmatprep.subr.mxu0 0.0
    %525 = vmatpush1.msra.mxu0 %v470
    %526 = vmatprep.subr.mxu0 0.0
    %527 = vmatpush1.msra.mxu0 %v469
    %528 = vmatprep.subr.mxu0 0.0
    %529 = vmatpush1.msra.mxu0 %v468
    %530 = vmatprep.subr.mxu0 0.0
    %531 = vmatpush1.msra.mxu0 %v467
    %532 = vmatprep.subr.mxu0 0.0
    %533 = vmatpush1.msra.mxu0 %v466
    %534 = vmatprep.subr.mxu0 0.0
    %535 = vmatpush1.msra.mxu0 %v465
    %536 = vmatprep.subr.mxu0 0.0
    %537 = vmatpush2.msra.mxu0 0.0
    %538 = vmatprep.subr.mxu0 0.0
    %539 = vmatpush2.msra.mxu0 0.0
    %540 = vmatprep.subr.mxu0 0.0
    %541 = vmatpush2.msra.mxu0 0.0
    %542 = vmatprep.subr.mxu0 0.0
    %543 = vmatpush2.msra.mxu0 0.0
    %544 = vmatprep.subr.mxu0 0.0
    %545 = vmatpush2.msra.mxu0 0.0
    %546 = vmatprep.subr.mxu0 0.0
    %547 = vmatpush2.msra.mxu0 0.0
    %548 = vmatprep.subr.mxu0 0.0
    %549 = vmatpush2.msra.mxu0 0.0
    %550 = vmatprep.subr.mxu0 0.0
    %551 = vmatpush2.msra.mxu0 0.0
    %552 = vmatprep.subr.mxu0 0.0
    %553 = vmatpush2.msra.mxu0 0.0
    %554 = vmatprep.subr.mxu0 0.0
    %555 = vmatpush2.msra.mxu0 0.0
    %556 = vmatprep.subr.mxu0 0.0
    %557 = vmatpush2.msra.mxu0 0.0
    %558 = vmatprep.subr.mxu0 0.0
    %559 = vmatpush2.msra.mxu0 0.0
    %560 = vmatprep.subr.mxu0 0.0
    %561 = vmatpush2.msra.mxu0 0.0
    %562 = vmatprep.subr.mxu0 0.0
    %563 = vmatpush2.msra.mxu0 0.0
    %564 = vmatprep.subr.mxu0 0.0
    %565 = vmatpush2.msra.mxu0 0.0
    %566 = vmatprep.subr.mxu0 0.0
    %567 = vmatpush2.msra.mxu0 0.0
    %568 = vmatprep.mubr.f32.mxu0 0.0
    %569 = vmatmul.mubr.f32.gmra.mxu0 %v502
    %v570 = vpop.f32.mrf.mxu0
    %v571 = vadd.f32 0.0, %v570
    %v572 = vpop.f32.mrf.mxu0
    %573 = vdwg.mxu0
    %v574 = vadd.f32 %v500, %v571
    %v575 = vld [vmem:[%s298] sm:$0xff]
    %576 = vmatprep.subr.mxu0 0.0
    %577 = vmatpush1.msra.mxu0 0.0
    %578 = vmatprep.subr.mxu0 0.0
    %579 = vmatpush1.msra.mxu0 0.0
    %580 = vmatprep.subr.mxu0 0.0
    %581 = vmatpush1.msra.mxu0 0.0
    %582 = vmatprep.subr.mxu0 0.0
    %583 = vmatpush1.msra.mxu0 0.0
    %584 = vmatprep.subr.mxu0 0.0
    %585 = vmatpush1.msra.mxu0 0.0
    %586 = vmatprep.subr.mxu0 0.0
    %587 = vmatpush1.msra.mxu0 0.0
    %588 = vmatprep.subr.mxu0 0.0
    %589 = vmatpush1.msra.mxu0 0.0
    %590 = vmatprep.subr.mxu0 0.0
    %591 = vmatpush1.msra.mxu0 0.0
    %592 = vmatprep.subr.mxu0 0.0
    %593 = vmatpush1.msra.mxu0 %v481
    %594 = vmatprep.subr.mxu0 0.0
    %595 = vmatpush1.msra.mxu0 %v480
    %596 = vmatprep.subr.mxu0 0.0
    %597 = vmatpush1.msra.mxu0 %v479
    %598 = vmatprep.subr.mxu0 0.0
    %599 = vmatpush1.msra.mxu0 %v478
    %600 = vmatprep.subr.mxu0 0.0
    %601 = vmatpush1.msra.mxu0 %v477
    %602 = vmatprep.subr.mxu0 0.0
    %603 = vmatpush1.msra.mxu0 %v476
    %604 = vmatprep.subr.mxu0 0.0
    %605 = vmatpush1.msra.mxu0 %v475
    %606 = vmatprep.subr.mxu0 0.0
    %607 = vmatpush1.msra.mxu0 %v474
    %608 = vmatprep.subr.mxu0 0.0
    %609 = vmatpush2.msra.mxu0 0.0
    %610 = vmatprep.subr.mxu0 0.0
    %611 = vmatpush2.msra.mxu0 0.0
    %612 = vmatprep.subr.mxu0 0.0
    %613 = vmatpush2.msra.mxu0 0.0
    %614 = vmatprep.subr.mxu0 0.0
    %615 = vmatpush2.msra.mxu0 0.0
    %616 = vmatprep.subr.mxu0 0.0
    %617 = vmatpush2.msra.mxu0 0.0
    %618 = vmatprep.subr.mxu0 0.0
    %619 = vmatpush2.msra.mxu0 0.0
    %620 = vmatprep.subr.mxu0 0.0
    %621 = vmatpush2.msra.mxu0 0.0
    %622 = vmatprep.subr.mxu0 0.0
    %623 = vmatpush2.msra.mxu0 0.0
    %624 = vmatprep.subr.mxu0 0.0
    %625 = vmatpush2.msra.mxu0 0.0
    %626 = vmatprep.subr.mxu0 0.0
    %627 = vmatpush2.msra.mxu0 0.0
    %628 = vmatprep.subr.mxu0 0.0
    %629 = vmatpush2.msra.mxu0 0.0
    %630 = vmatprep.subr.mxu0 0.0
    %631 = vmatpush2.msra.mxu0 0.0
    %632 = vmatprep.subr.mxu0 0.0
    %633 = vmatpush2.msra.mxu0 0.0
    %634 = vmatprep.subr.mxu0 0.0
    %635 = vmatpush2.msra.mxu0 0.0
    %636 = vmatprep.subr.mxu0 0.0
    %637 = vmatpush2.msra.mxu0 0.0
    %638 = vmatprep.subr.mxu0 0.0
    %639 = vmatpush2.msra.mxu0 0.0
    %640 = vmatprep.mubr.f32.mxu0 0.0
    %641 = vmatmul.mubr.f32.gmra.mxu0 %v502
    %v642 = vpop.f32.mrf.mxu0
    %v643 = vadd.f32 0.0, %v642
    %v644 = vpop.f32.mrf.mxu0
    %645 = vdwg.mxu0
    %v646 = vadd.f32 %v575, %v643
    %v647 = vld [vmem:[%s377] sm:$0xff]
    %648 = vmatprep.subr.mxu0 0.0
    %649 = vmatpush1.msra.mxu0 0.0
    %650 = vmatprep.subr.mxu0 0.0
    %651 = vmatpush1.msra.mxu0 0.0
    %652 = vmatprep.subr.mxu0 0.0
    %653 = vmatpush1.msra.mxu0 0.0
    %654 = vmatprep.subr.mxu0 0.0
    %655 = vmatpush1.msra.mxu0 0.0
    %656 = vmatprep.subr.mxu0 0.0
    %657 = vmatpush1.msra.mxu0 0.0
    %658 = vmatprep.subr.mxu0 0.0
    %659 = vmatpush1.msra.mxu0 0.0
    %660 = vmatprep.subr.mxu0 0.0
    %661 = vmatpush1.msra.mxu0 0.0
    %662 = vmatprep.subr.mxu0 0.0
    %663 = vmatpush1.msra.mxu0 0.0
    %664 = vmatprep.subr.mxu0 0.0
    %665 = vmatpush1.msra.mxu0 %v490
    %666 = vmatprep.subr.mxu0 0.0
    %667 = vmatpush1.msra.mxu0 %v489
    %668 = vmatprep.subr.mxu0 0.0
    %669 = vmatpush1.msra.mxu0 %v488
    %670 = vmatprep.subr.mxu0 0.0
    %671 = vmatpush1.msra.mxu0 %v487
    %672 = vmatprep.subr.mxu0 0.0
    %673 = vmatpush1.msra.mxu0 %v486
    %674 = vmatprep.subr.mxu0 0.0
    %675 = vmatpush1.msra.mxu0 %v485
    %676 = vmatprep.subr.mxu0 0.0
    %677 = vmatpush1.msra.mxu0 %v484
    %678 = vmatprep.subr.mxu0 0.0
    %679 = vmatpush1.msra.mxu0 %v483
    %680 = vmatprep.subr.mxu0 0.0
    %681 = vmatpush2.msra.mxu0 0.0
    %682 = vmatprep.subr.mxu0 0.0
    %683 = vmatpush2.msra.mxu0 0.0
    %684 = vmatprep.subr.mxu0 0.0
    %685 = vmatpush2.msra.mxu0 0.0
    %686 = vmatprep.subr.mxu0 0.0
    %687 = vmatpush2.msra.mxu0 0.0
    %688 = vmatprep.subr.mxu0 0.0
    %689 = vmatpush2.msra.mxu0 0.0
    %690 = vmatprep.subr.mxu0 0.0
    %691 = vmatpush2.msra.mxu0 0.0
    %692 = vmatprep.subr.mxu0 0.0
    %693 = vmatpush2.msra.mxu0 0.0
    %694 = vmatprep.subr.mxu0 0.0
    %695 = vmatpush2.msra.mxu0 0.0
    %696 = vmatprep.subr.mxu0 0.0
    %697 = vmatpush2.msra.mxu0 0.0
    %698 = vmatprep.subr.mxu0 0.0
    %699 = vmatpush2.msra.mxu0 0.0
    %700 = vmatprep.subr.mxu0 0.0
    %701 = vmatpush2.msra.mxu0 0.0
    %702 = vmatprep.subr.mxu0 0.0
    %703 = vmatpush2.msra.mxu0 0.0
    %704 = vmatprep.subr.mxu0 0.0
    %705 = vmatpush2.msra.mxu0 0.0
    %706 = vmatprep.subr.mxu0 0.0
    %707 = vmatpush2.msra.mxu0 0.0
    %708 = vmatprep.subr.mxu0 0.0
    %709 = vmatpush2.msra.mxu0 0.0
    %710 = vmatprep.subr.mxu0 0.0
    %711 = vmatpush2.msra.mxu0 0.0
    %712 = vmatprep.mubr.f32.mxu0 0.0
    %713 = vmatmul.mubr.f32.gmra.mxu0 %v502
    %v714 = vpop.f32.mrf.mxu0
    %v715 = vadd.f32 0.0, %v714
    %v716 = vpop.f32.mrf.mxu0
    %717 = vdwg.mxu0
    %v718 = vadd.f32 %v647, %v715
    %v719 = vld [vmem:[%s456] sm:$0xff]
    %720 = vmatprep.subr.mxu0 0.0
    %721 = vmatpush1.msra.mxu0 0.0
    %722 = vmatprep.subr.mxu0 0.0
    %723 = vmatpush1.msra.mxu0 0.0
    %724 = vmatprep.subr.mxu0 0.0
    %725 = vmatpush1.msra.mxu0 0.0
    %726 = vmatprep.subr.mxu0 0.0
    %727 = vmatpush1.msra.mxu0 0.0
    %728 = vmatprep.subr.mxu0 0.0
    %729 = vmatpush1.msra.mxu0 0.0
    %730 = vmatprep.subr.mxu0 0.0
    %731 = vmatpush1.msra.mxu0 0.0
    %732 = vmatprep.subr.mxu0 0.0
    %733 = vmatpush1.msra.mxu0 0.0
    %734 = vmatprep.subr.mxu0 0.0
    %735 = vmatpush1.msra.mxu0 0.0
    %736 = vmatprep.subr.mxu0 0.0
    %737 = vmatpush1.msra.mxu0 %v499
    %738 = vmatprep.subr.mxu0 0.0
    %739 = vmatpush1.msra.mxu0 %v498
    %740 = vmatprep.subr.mxu0 0.0
    %741 = vmatpush1.msra.mxu0 %v497
    %742 = vmatprep.subr.mxu0 0.0
    %743 = vmatpush1.msra.mxu0 %v496
    %744 = vmatprep.subr.mxu0 0.0
    %745 = vmatpush1.msra.mxu0 %v495
    %746 = vmatprep.subr.mxu0 0.0
    %747 = vmatpush1.msra.mxu0 %v494
    %748 = vmatprep.subr.mxu0 0.0
    %749 = vmatpush1.msra.mxu0 %v493
    %750 = vmatprep.subr.mxu0 0.0
    %751 = vmatpush1.msra.mxu0 %v492
    %752 = vmatprep.subr.mxu0 0.0
    %753 = vmatpush2.msra.mxu0 0.0
    %754 = vmatprep.subr.mxu0 0.0
    %755 = vmatpush2.msra.mxu0 0.0
    %756 = vmatprep.subr.mxu0 0.0
    %757 = vmatpush2.msra.mxu0 0.0
    %758 = vmatprep.subr.mxu0 0.0
    %759 = vmatpush2.msra.mxu0 0.0
    %760 = vmatprep.subr.mxu0 0.0
    %761 = vmatpush2.msra.mxu0 0.0
    %762 = vmatprep.subr.mxu0 0.0
    %763 = vmatpush2.msra.mxu0 0.0
    %764 = vmatprep.subr.mxu0 0.0
    %765 = vmatpush2.msra.mxu0 0.0
    %766 = vmatprep.subr.mxu0 0.0
    %767 = vmatpush2.msra.mxu0 0.0
    %768 = vmatprep.subr.mxu0 0.0
    %769 = vmatpush2.msra.mxu0 0.0
    %770 = vmatprep.subr.mxu0 0.0
    %771 = vmatpush2.msra.mxu0 0.0
    %772 = vmatprep.subr.mxu0 0.0
    %773 = vmatpush2.msra.mxu0 0.0
    %774 = vmatprep.subr.mxu0 0.0
    %775 = vmatpush2.msra.mxu0 0.0
    %776 = vmatprep.subr.mxu0 0.0
    %777 = vmatpush2.msra.mxu0 0.0
    %778 = vmatprep.subr.mxu0 0.0
    %779 = vmatpush2.msra.mxu0 0.0
    %780 = vmatprep.subr.mxu0 0.0
    %781 = vmatpush2.msra.mxu0 0.0
    %782 = vmatprep.subr.mxu0 0.0
    %783 = vmatpush2.msra.mxu0 0.0
    %784 = vmatprep.mubr.f32.mxu0 0.0
    %785 = vmatmul.mubr.f32.gmra.mxu0 %v502
    %v786 = vpop.f32.mrf.mxu0
    %v787 = vadd.f32 0.0, %v786
    %v788 = vpop.f32.mrf.mxu0
    %789 = vdwg.mxu0
    %v790 = vadd.f32 %v719, %v787
    %v791 = vxor.u32 %v574, 2147483648
    %v792 = vmul.f32 %v791, 1.442695
    %v793 = vpow.pop %v792
    %v794 = vadd.f32 %v793, 1.0
    %v795 = vrcp.pop %v794
    %v796 = vmul.f32 1.0, %v795
    %v797 = vxor.u32 %v646, 2147483648
    %v798 = vmul.f32 %v797, 1.442695
    %v799 = vpow.pop %v798
    %v800 = vadd.f32 %v799, 1.0
    %v801 = vrcp.pop %v800
    %v802 = vmul.f32 1.0, %v801
    %v803 = vtanh.pop %v718
    %v804 = vxor.u32 %v790, 2147483648
    %v805 = vmul.f32 %v804, 1.442695
    %v806 = vpow.pop %v805
    %v807 = vadd.f32 %v806, 1.0
    %v808 = vrcp.pop %v807
    %v809 = vmul.f32 1.0, %v808
    %v810 = vmul.f32 %v802, 0.0
    %v811 = vmul.f32 %v796, %v803
    %v812 = vadd.f32 %v810, %v811
    %v813 = vtanh.pop %v812
    %v814 = vmul.f32 %v809, %v813
    %s815 = scalar_lea.vmem [#allocation2], 8
    %v816 = vld [vmem:[%s815] sm:$0xff]
    %v818 = vsel %vm219, %v814, 0
    %820 = vmatprep.subr.mxu0 0.0
    %821 = vmatpush1.msra.mxu0 0.0
    %822 = vmatprep.subr.mxu0 0.0
    %823 = vmatpush1.msra.mxu0 0.0
    %824 = vmatprep.subr.mxu0 0.0
    %825 = vmatpush1.msra.mxu0 0.0
    %826 = vmatprep.subr.mxu0 0.0
    %827 = vmatpush1.msra.mxu0 0.0
    %828 = vmatprep.subr.mxu0 0.0
    %829 = vmatpush1.msra.mxu0 0.0
    %830 = vmatprep.subr.mxu0 0.0
    %831 = vmatpush1.msra.mxu0 0.0
    %832 = vmatprep.subr.mxu0 0.0
    %833 = vmatpush1.msra.mxu0 0.0
    %834 = vmatprep.subr.mxu0 0.0
    %835 = vmatpush1.msra.mxu0 0.0
    %836 = vmatprep.subr.mxu0 0.0
    %837 = vmatpush1.msra.mxu0 %v472
    %838 = vmatprep.subr.mxu0 0.0
    %839 = vmatpush1.msra.mxu0 %v471
    %840 = vmatprep.subr.mxu0 0.0
    %841 = vmatpush1.msra.mxu0 %v470
    %842 = vmatprep.subr.mxu0 0.0
    %843 = vmatpush1.msra.mxu0 %v469
    %844 = vmatprep.subr.mxu0 0.0
    %845 = vmatpush1.msra.mxu0 %v468
    %846 = vmatprep.subr.mxu0 0.0
    %847 = vmatpush1.msra.mxu0 %v467
    %848 = vmatprep.subr.mxu0 0.0
    %849 = vmatpush1.msra.mxu0 %v466
    %850 = vmatprep.subr.mxu0 0.0
    %851 = vmatpush1.msra.mxu0 %v465
    %852 = vmatprep.subr.mxu0 0.0
    %853 = vmatpush2.msra.mxu0 0.0
    %854 = vmatprep.subr.mxu0 0.0
    %855 = vmatpush2.msra.mxu0 0.0
    %856 = vmatprep.subr.mxu0 0.0
    %857 = vmatpush2.msra.mxu0 0.0
    %858 = vmatprep.subr.mxu0 0.0
    %859 = vmatpush2.msra.mxu0 0.0
    %860 = vmatprep.subr.mxu0 0.0
    %861 = vmatpush2.msra.mxu0 0.0
    %862 = vmatprep.subr.mxu0 0.0
    %863 = vmatpush2.msra.mxu0 0.0
    %864 = vmatprep.subr.mxu0 0.0
    %865 = vmatpush2.msra.mxu0 0.0
    %866 = vmatprep.subr.mxu0 0.0
    %867 = vmatpush2.msra.mxu0 0.0
    %868 = vmatprep.subr.mxu0 0.0
    %869 = vmatpush2.msra.mxu0 0.0
    %870 = vmatprep.subr.mxu0 0.0
    %871 = vmatpush2.msra.mxu0 0.0
    %872 = vmatprep.subr.mxu0 0.0
    %873 = vmatpush2.msra.mxu0 0.0
    %874 = vmatprep.subr.mxu0 0.0
    %875 = vmatpush2.msra.mxu0 0.0
    %876 = vmatprep.subr.mxu0 0.0
    %877 = vmatpush2.msra.mxu0 0.0
    %878 = vmatprep.subr.mxu0 0.0
    %879 = vmatpush2.msra.mxu0 0.0
    %880 = vmatprep.subr.mxu0 0.0
    %881 = vmatpush2.msra.mxu0 0.0
    %882 = vmatprep.subr.mxu0 0.0
    %883 = vmatpush2.msra.mxu0 0.0
    %884 = vmatprep.mubr.f32.mxu0 0.0
    %885 = vmatmul.mubr.f32.gmra.mxu0 %v818
    %v886 = vpop.f32.mrf.mxu0
    %v887 = vadd.f32 0.0, %v886
    %v888 = vpop.f32.mrf.mxu0
    %889 = vdwg.mxu0
    %v890 = vadd.f32 %v816, %v887
    %s891 = scalar_lea.vmem [#allocation2], 72
    %v892 = vld [vmem:[%s891] sm:$0xff]
    %893 = vmatprep.subr.mxu0 0.0
    %894 = vmatpush1.msra.mxu0 0.0
    %895 = vmatprep.subr.mxu0 0.0
    %896 = vmatpush1.msra.mxu0 0.0
    %897 = vmatprep.subr.mxu0 0.0
    %898 = vmatpush1.msra.mxu0 0.0
    %899 = vmatprep.subr.mxu0 0.0
    %900 = vmatpush1.msra.mxu0 0.0
    %901 = vmatprep.subr.mxu0 0.0
    %902 = vmatpush1.msra.mxu0 0.0
    %903 = vmatprep.subr.mxu0 0.0
    %904 = vmatpush1.msra.mxu0 0.0
    %905 = vmatprep.subr.mxu0 0.0
    %906 = vmatpush1.msra.mxu0 0.0
    %907 = vmatprep.subr.mxu0 0.0
    %908 = vmatpush1.msra.mxu0 0.0
    %909 = vmatprep.subr.mxu0 0.0
    %910 = vmatpush1.msra.mxu0 %v481
    %911 = vmatprep.subr.mxu0 0.0
    %912 = vmatpush1.msra.mxu0 %v480
    %913 = vmatprep.subr.mxu0 0.0
    %914 = vmatpush1.msra.mxu0 %v479
    %915 = vmatprep.subr.mxu0 0.0
    %916 = vmatpush1.msra.mxu0 %v478
    %917 = vmatprep.subr.mxu0 0.0
    %918 = vmatpush1.msra.mxu0 %v477
    %919 = vmatprep.subr.mxu0 0.0
    %920 = vmatpush1.msra.mxu0 %v476
    %921 = vmatprep.subr.mxu0 0.0
    %922 = vmatpush1.msra.mxu0 %v475
    %923 = vmatprep.subr.mxu0 0.0
    %924 = vmatpush1.msra.mxu0 %v474
    %925 = vmatprep.subr.mxu0 0.0
    %926 = vmatpush2.msra.mxu0 0.0
    %927 = vmatprep.subr.mxu0 0.0
    %928 = vmatpush2.msra.mxu0 0.0
    %929 = vmatprep.subr.mxu0 0.0
    %930 = vmatpush2.msra.mxu0 0.0
    %931 = vmatprep.subr.mxu0 0.0
    %932 = vmatpush2.msra.mxu0 0.0
    %933 = vmatprep.subr.mxu0 0.0
    %934 = vmatpush2.msra.mxu0 0.0
    %935 = vmatprep.subr.mxu0 0.0
    %936 = vmatpush2.msra.mxu0 0.0
    %937 = vmatprep.subr.mxu0 0.0
    %938 = vmatpush2.msra.mxu0 0.0
    %939 = vmatprep.subr.mxu0 0.0
    %940 = vmatpush2.msra.mxu0 0.0
    %941 = vmatprep.subr.mxu0 0.0
    %942 = vmatpush2.msra.mxu0 0.0
    %943 = vmatprep.subr.mxu0 0.0
    %944 = vmatpush2.msra.mxu0 0.0
    %945 = vmatprep.subr.mxu0 0.0
    %946 = vmatpush2.msra.mxu0 0.0
    %947 = vmatprep.subr.mxu0 0.0
    %948 = vmatpush2.msra.mxu0 0.0
    %949 = vmatprep.subr.mxu0 0.0
    %950 = vmatpush2.msra.mxu0 0.0
    %951 = vmatprep.subr.mxu0 0.0
    %952 = vmatpush2.msra.mxu0 0.0
    %953 = vmatprep.subr.mxu0 0.0
    %954 = vmatpush2.msra.mxu0 0.0
    %955 = vmatprep.subr.mxu0 0.0
    %956 = vmatpush2.msra.mxu0 0.0
    %957 = vmatprep.mubr.f32.mxu0 0.0
    %958 = vmatmul.mubr.f32.gmra.mxu0 %v818
    %v959 = vpop.f32.mrf.mxu0
    %v960 = vadd.f32 0.0, %v959
    %v961 = vpop.f32.mrf.mxu0
    %962 = vdwg.mxu0
    %v963 = vadd.f32 %v892, %v960
    %s964 = scalar_lea.vmem [#allocation2], 136
    %v965 = vld [vmem:[%s964] sm:$0xff]
    %966 = vmatprep.subr.mxu0 0.0
    %967 = vmatpush1.msra.mxu0 0.0
    %968 = vmatprep.subr.mxu0 0.0
    %969 = vmatpush1.msra.mxu0 0.0
    %970 = vmatprep.subr.mxu0 0.0
    %971 = vmatpush1.msra.mxu0 0.0
    %972 = vmatprep.subr.mxu0 0.0
    %973 = vmatpush1.msra.mxu0 0.0
    %974 = vmatprep.subr.mxu0 0.0
    %975 = vmatpush1.msra.mxu0 0.0
    %976 = vmatprep.subr.mxu0 0.0
    %977 = vmatpush1.msra.mxu0 0.0
    %978 = vmatprep.subr.mxu0 0.0
    %979 = vmatpush1.msra.mxu0 0.0
    %980 = vmatprep.subr.mxu0 0.0
    %981 = vmatpush1.msra.mxu0 0.0
    %982 = vmatprep.subr.mxu0 0.0
    %983 = vmatpush1.msra.mxu0 %v490
    %984 = vmatprep.subr.mxu0 0.0
    %985 = vmatpush1.msra.mxu0 %v489
    %986 = vmatprep.subr.mxu0 0.0
    %987 = vmatpush1.msra.mxu0 %v488
    %988 = vmatprep.subr.mxu0 0.0
    %989 = vmatpush1.msra.mxu0 %v487
    %990 = vmatprep.subr.mxu0 0.0
    %991 = vmatpush1.msra.mxu0 %v486
    %992 = vmatprep.subr.mxu0 0.0
    %993 = vmatpush1.msra.mxu0 %v485
    %994 = vmatprep.subr.mxu0 0.0
    %995 = vmatpush1.msra.mxu0 %v484
    %996 = vmatprep.subr.mxu0 0.0
    %997 = vmatpush1.msra.mxu0 %v483
    %998 = vmatprep.subr.mxu0 0.0
    %999 = vmatpush2.msra.mxu0 0.0
    %1000 = vmatprep.subr.mxu0 0.0
    %1001 = vmatpush2.msra.mxu0 0.0
    %1002 = vmatprep.subr.mxu0 0.0
    %1003 = vmatpush2.msra.mxu0 0.0
    %1004 = vmatprep.subr.mxu0 0.0
    %1005 = vmatpush2.msra.mxu0 0.0
    %1006 = vmatprep.subr.mxu0 0.0
    %1007 = vmatpush2.msra.mxu0 0.0
    %1008 = vmatprep.subr.mxu0 0.0
    %1009 = vmatpush2.msra.mxu0 0.0
    %1010 = vmatprep.subr.mxu0 0.0
    %1011 = vmatpush2.msra.mxu0 0.0
    %1012 = vmatprep.subr.mxu0 0.0
    %1013 = vmatpush2.msra.mxu0 0.0
    %1014 = vmatprep.subr.mxu0 0.0
    %1015 = vmatpush2.msra.mxu0 0.0
    %1016 = vmatprep.subr.mxu0 0.0
    %1017 = vmatpush2.msra.mxu0 0.0
    %1018 = vmatprep.subr.mxu0 0.0
    %1019 = vmatpush2.msra.mxu0 0.0
    %1020 = vmatprep.subr.mxu0 0.0
    %1021 = vmatpush2.msra.mxu0 0.0
    %1022 = vmatprep.subr.mxu0 0.0
    %1023 = vmatpush2.msra.mxu0 0.0
    %1024 = vmatprep.subr.mxu0 0.0
    %1025 = vmatpush2.msra.mxu0 0.0
    %1026 = vmatprep.subr.mxu0 0.0
    %1027 = vmatpush2.msra.mxu0 0.0
    %1028 = vmatprep.subr.mxu0 0.0
    %1029 = vmatpush2.msra.mxu0 0.0
    %1030 = vmatprep.mubr.f32.mxu0 0.0
    %1031 = vmatmul.mubr.f32.gmra.mxu0 %v818
    %v1032 = vpop.f32.mrf.mxu0
    %v1033 = vadd.f32 0.0, %v1032
    %v1034 = vpop.f32.mrf.mxu0
    %1035 = vdwg.mxu0
    %v1036 = vadd.f32 %v965, %v1033
    %s1037 = scalar_lea.vmem [#allocation2], 200
    %v1038 = vld [vmem:[%s1037] sm:$0xff]
    %1039 = vmatprep.subr.mxu0 0.0
    %1040 = vmatpush1.msra.mxu0 0.0
    %1041 = vmatprep.subr.mxu0 0.0
    %1042 = vmatpush1.msra.mxu0 0.0
    %1043 = vmatprep.subr.mxu0 0.0
    %1044 = vmatpush1.msra.mxu0 0.0
    %1045 = vmatprep.subr.mxu0 0.0
    %1046 = vmatpush1.msra.mxu0 0.0
    %1047 = vmatprep.subr.mxu0 0.0
    %1048 = vmatpush1.msra.mxu0 0.0
    %1049 = vmatprep.subr.mxu0 0.0
    %1050 = vmatpush1.msra.mxu0 0.0
    %1051 = vmatprep.subr.mxu0 0.0
    %1052 = vmatpush1.msra.mxu0 0.0
    %1053 = vmatprep.subr.mxu0 0.0
    %1054 = vmatpush1.msra.mxu0 0.0
    %1055 = vmatprep.subr.mxu0 0.0
    %1056 = vmatpush1.msra.mxu0 %v499
    %1057 = vmatprep.subr.mxu0 0.0
    %1058 = vmatpush1.msra.mxu0 %v498
    %1059 = vmatprep.subr.mxu0 0.0
    %1060 = vmatpush1.msra.mxu0 %v497
    %1061 = vmatprep.subr.mxu0 0.0
    %1062 = vmatpush1.msra.mxu0 %v496
    %1063 = vmatprep.subr.mxu0 0.0
    %1064 = vmatpush1.msra.mxu0 %v495
    %1065 = vmatprep.subr.mxu0 0.0
    %1066 = vmatpush1.msra.mxu0 %v494
    %1067 = vmatprep.subr.mxu0 0.0
    %1068 = vmatpush1.msra.mxu0 %v493
    %1069 = vmatprep.subr.mxu0 0.0
    %1070 = vmatpush1.msra.mxu0 %v492
    %1071 = vmatprep.subr.mxu0 0.0
    %1072 = vmatpush2.msra.mxu0 0.0
    %1073 = vmatprep.subr.mxu0 0.0
    %1074 = vmatpush2.msra.mxu0 0.0
    %1075 = vmatprep.subr.mxu0 0.0
    %1076 = vmatpush2.msra.mxu0 0.0
    %1077 = vmatprep.subr.mxu0 0.0
    %1078 = vmatpush2.msra.mxu0 0.0
    %1079 = vmatprep.subr.mxu0 0.0
    %1080 = vmatpush2.msra.mxu0 0.0
    %1081 = vmatprep.subr.mxu0 0.0
    %1082 = vmatpush2.msra.mxu0 0.0
    %1083 = vmatprep.subr.mxu0 0.0
    %1084 = vmatpush2.msra.mxu0 0.0
    %1085 = vmatprep.subr.mxu0 0.0
    %1086 = vmatpush2.msra.mxu0 0.0
    %1087 = vmatprep.subr.mxu0 0.0
    %1088 = vmatpush2.msra.mxu0 0.0
    %1089 = vmatprep.subr.mxu0 0.0
    %1090 = vmatpush2.msra.mxu0 0.0
    %1091 = vmatprep.subr.mxu0 0.0
    %1092 = vmatpush2.msra.mxu0 0.0
    %1093 = vmatprep.subr.mxu0 0.0
    %1094 = vmatpush2.msra.mxu0 0.0
    %1095 = vmatprep.subr.mxu0 0.0
    %1096 = vmatpush2.msra.mxu0 0.0
    %1097 = vmatprep.subr.mxu0 0.0
    %1098 = vmatpush2.msra.mxu0 0.0
    %1099 = vmatprep.subr.mxu0 0.0
    %1100 = vmatpush2.msra.mxu0 0.0
    %1101 = vmatprep.subr.mxu0 0.0
    %1102 = vmatpush2.msra.mxu0 0.0
    %1103 = vmatprep.mubr.f32.mxu0 0.0
    %1104 = vmatmul.mubr.f32.gmra.mxu0 %v818
    %v1105 = vpop.f32.mrf.mxu0
    %v1106 = vadd.f32 0.0, %v1105
    %v1107 = vpop.f32.mrf.mxu0
    %1108 = vdwg.mxu0
    %v1109 = vadd.f32 %v1038, %v1106
    %v1110 = vxor.u32 %v890, 2147483648
    %v1111 = vmul.f32 %v1110, 1.442695
    %v1112 = vpow.pop %v1111
    %v1113 = vadd.f32 %v1112, 1.0
    %v1114 = vrcp.pop %v1113
    %v1115 = vmul.f32 1.0, %v1114
    %v1116 = vxor.u32 %v963, 2147483648
    %v1117 = vmul.f32 %v1116, 1.442695
    %v1118 = vpow.pop %v1117
    %v1119 = vadd.f32 %v1118, 1.0
    %v1120 = vrcp.pop %v1119
    %v1121 = vmul.f32 1.0, %v1120
    %v1122 = vtanh.pop %v1036
    %v1123 = vxor.u32 %v1109, 2147483648
    %v1124 = vmul.f32 %v1123, 1.442695
    %v1125 = vpow.pop %v1124
    %v1126 = vadd.f32 %v1125, 1.0
    %v1127 = vrcp.pop %v1126
    %v1128 = vmul.f32 1.0, %v1127
    %v1129 = vmul.f32 %v1121, %v812
    %v1130 = vmul.f32 %v1115, %v1122
    %v1131 = vadd.f32 %v1129, %v1130
    %v1132 = vtanh.pop %v1131
    %v1133 = vmul.f32 %v1128, %v1132
    %s1134 = scalar_lea.vmem [#allocation2], 16
    %v1135 = vld [vmem:[%s1134] sm:$0xff]
    %v1137 = vsel %vm219, %v1133, 0
    %1139 = vmatprep.subr.mxu0 0.0
    %1140 = vmatpush1.msra.mxu0 0.0
    %1141 = vmatprep.subr.mxu0 0.0
    %1142 = vmatpush1.msra.mxu0 0.0
    %1143 = vmatprep.subr.mxu0 0.0
    %1144 = vmatpush1.msra.mxu0 0.0
    %1145 = vmatprep.subr.mxu0 0.0
    %1146 = vmatpush1.msra.mxu0 0.0
    %1147 = vmatprep.subr.mxu0 0.0
    %1148 = vmatpush1.msra.mxu0 0.0
    %1149 = vmatprep.subr.mxu0 0.0
    %1150 = vmatpush1.msra.mxu0 0.0
    %1151 = vmatprep.subr.mxu0 0.0
    %1152 = vmatpush1.msra.mxu0 0.0
    %1153 = vmatprep.subr.mxu0 0.0
    %1154 = vmatpush1.msra.mxu0 0.0
    %1155 = vmatprep.subr.mxu0 0.0
    %1156 = vmatpush1.msra.mxu0 %v472
    %1157 = vmatprep.subr.mxu0 0.0
    %1158 = vmatpush1.msra.mxu0 %v471
    %1159 = vmatprep.subr.mxu0 0.0
    %1160 = vmatpush1.msra.mxu0 %v470
    %1161 = vmatprep.subr.mxu0 0.0
    %1162 = vmatpush1.msra.mxu0 %v469
    %1163 = vmatprep.subr.mxu0 0.0
    %1164 = vmatpush1.msra.mxu0 %v468
    %1165 = vmatprep.subr.mxu0 0.0
    %1166 = vmatpush1.msra.mxu0 %v467
    %1167 = vmatprep.subr.mxu0 0.0
    %1168 = vmatpush1.msra.mxu0 %v466
    %1169 = vmatprep.subr.mxu0 0.0
    %1170 = vmatpush1.msra.mxu0 %v465
    %1171 = vmatprep.subr.mxu0 0.0
    %1172 = vmatpush2.msra.mxu0 0.0
    %1173 = vmatprep.subr.mxu0 0.0
    %1174 = vmatpush2.msra.mxu0 0.0
    %1175 = vmatprep.subr.mxu0 0.0
    %1176 = vmatpush2.msra.mxu0 0.0
    %1177 = vmatprep.subr.mxu0 0.0
    %1178 = vmatpush2.msra.mxu0 0.0
    %1179 = vmatprep.subr.mxu0 0.0
    %1180 = vmatpush2.msra.mxu0 0.0
    %1181 = vmatprep.subr.mxu0 0.0
    %1182 = vmatpush2.msra.mxu0 0.0
    %1183 = vmatprep.subr.mxu0 0.0
    %1184 = vmatpush2.msra.mxu0 0.0
    %1185 = vmatprep.subr.mxu0 0.0
    %1186 = vmatpush2.msra.mxu0 0.0
    %1187 = vmatprep.subr.mxu0 0.0
    %1188 = vmatpush2.msra.mxu0 0.0
    %1189 = vmatprep.subr.mxu0 0.0
    %1190 = vmatpush2.msra.mxu0 0.0
    %1191 = vmatprep.subr.mxu0 0.0
    %1192 = vmatpush2.msra.mxu0 0.0
    %1193 = vmatprep.subr.mxu0 0.0
    %1194 = vmatpush2.msra.mxu0 0.0
    %1195 = vmatprep.subr.mxu0 0.0
    %1196 = vmatpush2.msra.mxu0 0.0
    %1197 = vmatprep.subr.mxu0 0.0
    %1198 = vmatpush2.msra.mxu0 0.0
    %1199 = vmatprep.subr.mxu0 0.0
    %1200 = vmatpush2.msra.mxu0 0.0
    %1201 = vmatprep.subr.mxu0 0.0
    %1202 = vmatpush2.msra.mxu0 0.0
    %1203 = vmatprep.mubr.f32.mxu0 0.0
    %1204 = vmatmul.mubr.f32.gmra.mxu0 %v1137
    %v1205 = vpop.f32.mrf.mxu0
    %v1206 = vadd.f32 0.0, %v1205
    %v1207 = vpop.f32.mrf.mxu0
    %1208 = vdwg.mxu0
    %v1209 = vadd.f32 %v1135, %v1206
    %s1210 = scalar_lea.vmem [#allocation2], 80
    %v1211 = vld [vmem:[%s1210] sm:$0xff]
    %1212 = vmatprep.subr.mxu0 0.0
    %1213 = vmatpush1.msra.mxu0 0.0
    %1214 = vmatprep.subr.mxu0 0.0
    %1215 = vmatpush1.msra.mxu0 0.0
    %1216 = vmatprep.subr.mxu0 0.0
    %1217 = vmatpush1.msra.mxu0 0.0
    %1218 = vmatprep.subr.mxu0 0.0
    %1219 = vmatpush1.msra.mxu0 0.0
    %1220 = vmatprep.subr.mxu0 0.0
    %1221 = vmatpush1.msra.mxu0 0.0
    %1222 = vmatprep.subr.mxu0 0.0
    %1223 = vmatpush1.msra.mxu0 0.0
    %1224 = vmatprep.subr.mxu0 0.0
    %1225 = vmatpush1.msra.mxu0 0.0
    %1226 = vmatprep.subr.mxu0 0.0
    %1227 = vmatpush1.msra.mxu0 0.0
    %1228 = vmatprep.subr.mxu0 0.0
    %1229 = vmatpush1.msra.mxu0 %v481
    %1230 = vmatprep.subr.mxu0 0.0
    %1231 = vmatpush1.msra.mxu0 %v480
    %1232 = vmatprep.subr.mxu0 0.0
    %1233 = vmatpush1.msra.mxu0 %v479
    %1234 = vmatprep.subr.mxu0 0.0
    %1235 = vmatpush1.msra.mxu0 %v478
    %1236 = vmatprep.subr.mxu0 0.0
    %1237 = vmatpush1.msra.mxu0 %v477
    %1238 = vmatprep.subr.mxu0 0.0
    %1239 = vmatpush1.msra.mxu0 %v476
    %1240 = vmatprep.subr.mxu0 0.0
    %1241 = vmatpush1.msra.mxu0 %v475
    %1242 = vmatprep.subr.mxu0 0.0
    %1243 = vmatpush1.msra.mxu0 %v474
    %1244 = vmatprep.subr.mxu0 0.0
    %1245 = vmatpush2.msra.mxu0 0.0
    %1246 = vmatprep.subr.mxu0 0.0
    %1247 = vmatpush2.msra.mxu0 0.0
    %1248 = vmatprep.subr.mxu0 0.0
    %1249 = vmatpush2.msra.mxu0 0.0
    %1250 = vmatprep.subr.mxu0 0.0
    %1251 = vmatpush2.msra.mxu0 0.0
    %1252 = vmatprep.subr.mxu0 0.0
    %1253 = vmatpush2.msra.mxu0 0.0
    %1254 = vmatprep.subr.mxu0 0.0
    %1255 = vmatpush2.msra.mxu0 0.0
    %1256 = vmatprep.subr.mxu0 0.0
    %1257 = vmatpush2.msra.mxu0 0.0
    %1258 = vmatprep.subr.mxu0 0.0
    %1259 = vmatpush2.msra.mxu0 0.0
    %1260 = vmatprep.subr.mxu0 0.0
    %1261 = vmatpush2.msra.mxu0 0.0
    %1262 = vmatprep.subr.mxu0 0.0
    %1263 = vmatpush2.msra.mxu0 0.0
    %1264 = vmatprep.subr.mxu0 0.0
    %1265 = vmatpush2.msra.mxu0 0.0
    %1266 = vmatprep.subr.mxu0 0.0
    %1267 = vmatpush2.msra.mxu0 0.0
    %1268 = vmatprep.subr.mxu0 0.0
    %1269 = vmatpush2.msra.mxu0 0.0
    %1270 = vmatprep.subr.mxu0 0.0
    %1271 = vmatpush2.msra.mxu0 0.0
    %1272 = vmatprep.subr.mxu0 0.0
    %1273 = vmatpush2.msra.mxu0 0.0
    %1274 = vmatprep.subr.mxu0 0.0
    %1275 = vmatpush2.msra.mxu0 0.0
    %1276 = vmatprep.mubr.f32.mxu0 0.0
    %1277 = vmatmul.mubr.f32.gmra.mxu0 %v1137
    %v1278 = vpop.f32.mrf.mxu0
    %v1279 = vadd.f32 0.0, %v1278
    %v1280 = vpop.f32.mrf.mxu0
    %1281 = vdwg.mxu0
    %v1282 = vadd.f32 %v1211, %v1279
    %s1283 = scalar_lea.vmem [#allocation2], 144
    %v1284 = vld [vmem:[%s1283] sm:$0xff]
    %1285 = vmatprep.subr.mxu0 0.0
    %1286 = vmatpush1.msra.mxu0 0.0
    %1287 = vmatprep.subr.mxu0 0.0
    %1288 = vmatpush1.msra.mxu0 0.0
    %1289 = vmatprep.subr.mxu0 0.0
    %1290 = vmatpush1.msra.mxu0 0.0
    %1291 = vmatprep.subr.mxu0 0.0
    %1292 = vmatpush1.msra.mxu0 0.0
    %1293 = vmatprep.subr.mxu0 0.0
    %1294 = vmatpush1.msra.mxu0 0.0
    %1295 = vmatprep.subr.mxu0 0.0
    %1296 = vmatpush1.msra.mxu0 0.0
    %1297 = vmatprep.subr.mxu0 0.0
    %1298 = vmatpush1.msra.mxu0 0.0
    %1299 = vmatprep.subr.mxu0 0.0
    %1300 = vmatpush1.msra.mxu0 0.0
    %1301 = vmatprep.subr.mxu0 0.0
    %1302 = vmatpush1.msra.mxu0 %v490
    %1303 = vmatprep.subr.mxu0 0.0
    %1304 = vmatpush1.msra.mxu0 %v489
    %1305 = vmatprep.subr.mxu0 0.0
    %1306 = vmatpush1.msra.mxu0 %v488
    %1307 = vmatprep.subr.mxu0 0.0
    %1308 = vmatpush1.msra.mxu0 %v487
    %1309 = vmatprep.subr.mxu0 0.0
    %1310 = vmatpush1.msra.mxu0 %v486
    %1311 = vmatprep.subr.mxu0 0.0
    %1312 = vmatpush1.msra.mxu0 %v485
    %1313 = vmatprep.subr.mxu0 0.0
    %1314 = vmatpush1.msra.mxu0 %v484
    %1315 = vmatprep.subr.mxu0 0.0
    %1316 = vmatpush1.msra.mxu0 %v483
    %1317 = vmatprep.subr.mxu0 0.0
    %1318 = vmatpush2.msra.mxu0 0.0
    %1319 = vmatprep.subr.mxu0 0.0
    %1320 = vmatpush2.msra.mxu0 0.0
    %1321 = vmatprep.subr.mxu0 0.0
    %1322 = vmatpush2.msra.mxu0 0.0
    %1323 = vmatprep.subr.mxu0 0.0
    %1324 = vmatpush2.msra.mxu0 0.0
    %1325 = vmatprep.subr.mxu0 0.0
    %1326 = vmatpush2.msra.mxu0 0.0
    %1327 = vmatprep.subr.mxu0 0.0
    %1328 = vmatpush2.msra.mxu0 0.0
    %1329 = vmatprep.subr.mxu0 0.0
    %1330 = vmatpush2.msra.mxu0 0.0
    %1331 = vmatprep.subr.mxu0 0.0
    %1332 = vmatpush2.msra.mxu0 0.0
    %1333 = vmatprep.subr.mxu0 0.0
    %1334 = vmatpush2.msra.mxu0 0.0
    %1335 = vmatprep.subr.mxu0 0.0
    %1336 = vmatpush2.msra.mxu0 0.0
    %1337 = vmatprep.subr.mxu0 0.0
    %1338 = vmatpush2.msra.mxu0 0.0
    %1339 = vmatprep.subr.mxu0 0.0
    %1340 = vmatpush2.msra.mxu0 0.0
    %1341 = vmatprep.subr.mxu0 0.0
    %1342 = vmatpush2.msra.mxu0 0.0
    %1343 = vmatprep.subr.mxu0 0.0
    %1344 = vmatpush2.msra.mxu0 0.0
    %1345 = vmatprep.subr.mxu0 0.0
    %1346 = vmatpush2.msra.mxu0 0.0
    %1347 = vmatprep.subr.mxu0 0.0
    %1348 = vmatpush2.msra.mxu0 0.0
    %1349 = vmatprep.mubr.f32.mxu0 0.0
    %1350 = vmatmul.mubr.f32.gmra.mxu0 %v1137
    %v1351 = vpop.f32.mrf.mxu0
    %v1352 = vadd.f32 0.0, %v1351
    %v1353 = vpop.f32.mrf.mxu0
    %1354 = vdwg.mxu0
    %v1355 = vadd.f32 %v1284, %v1352
    %s1356 = scalar_lea.vmem [#allocation2], 208
    %v1357 = vld [vmem:[%s1356] sm:$0xff]
    %1358 = vmatprep.subr.mxu0 0.0
    %1359 = vmatpush1.msra.mxu0 0.0
    %1360 = vmatprep.subr.mxu0 0.0
    %1361 = vmatpush1.msra.mxu0 0.0
    %1362 = vmatprep.subr.mxu0 0.0
    %1363 = vmatpush1.msra.mxu0 0.0
    %1364 = vmatprep.subr.mxu0 0.0
    %1365 = vmatpush1.msra.mxu0 0.0
    %1366 = vmatprep.subr.mxu0 0.0
    %1367 = vmatpush1.msra.mxu0 0.0
    %1368 = vmatprep.subr.mxu0 0.0
    %1369 = vmatpush1.msra.mxu0 0.0
    %1370 = vmatprep.subr.mxu0 0.0
    %1371 = vmatpush1.msra.mxu0 0.0
    %1372 = vmatprep.subr.mxu0 0.0
    %1373 = vmatpush1.msra.mxu0 0.0
    %1374 = vmatprep.subr.mxu0 0.0
    %1375 = vmatpush1.msra.mxu0 %v499
    %1376 = vmatprep.subr.mxu0 0.0
    %1377 = vmatpush1.msra.mxu0 %v498
    %1378 = vmatprep.subr.mxu0 0.0
    %1379 = vmatpush1.msra.mxu0 %v497
    %1380 = vmatprep.subr.mxu0 0.0
    %1381 = vmatpush1.msra.mxu0 %v496
    %1382 = vmatprep.subr.mxu0 0.0
    %1383 = vmatpush1.msra.mxu0 %v495
    %1384 = vmatprep.subr.mxu0 0.0
    %1385 = vmatpush1.msra.mxu0 %v494
    %1386 = vmatprep.subr.mxu0 0.0
    %1387 = vmatpush1.msra.mxu0 %v493
    %1388 = vmatprep.subr.mxu0 0.0
    %1389 = vmatpush1.msra.mxu0 %v492
    %1390 = vmatprep.subr.mxu0 0.0
    %1391 = vmatpush2.msra.mxu0 0.0
    %1392 = vmatprep.subr.mxu0 0.0
    %1393 = vmatpush2.msra.mxu0 0.0
    %1394 = vmatprep.subr.mxu0 0.0
    %1395 = vmatpush2.msra.mxu0 0.0
    %1396 = vmatprep.subr.mxu0 0.0
    %1397 = vmatpush2.msra.mxu0 0.0
    %1398 = vmatprep.subr.mxu0 0.0
    %1399 = vmatpush2.msra.mxu0 0.0
    %1400 = vmatprep.subr.mxu0 0.0
    %1401 = vmatpush2.msra.mxu0 0.0
    %1402 = vmatprep.subr.mxu0 0.0
    %1403 = vmatpush2.msra.mxu0 0.0
    %1404 = vmatprep.subr.mxu0 0.0
    %1405 = vmatpush2.msra.mxu0 0.0
    %1406 = vmatprep.subr.mxu0 0.0
    %1407 = vmatpush2.msra.mxu0 0.0
    %1408 = vmatprep.subr.mxu0 0.0
    %1409 = vmatpush2.msra.mxu0 0.0
    %1410 = vmatprep.subr.mxu0 0.0
    %1411 = vmatpush2.msra.mxu0 0.0
    %1412 = vmatprep.subr.mxu0 0.0
    %1413 = vmatpush2.msra.mxu0 0.0
    %1414 = vmatprep.subr.mxu0 0.0
    %1415 = vmatpush2.msra.mxu0 0.0
    %1416 = vmatprep.subr.mxu0 0.0
    %1417 = vmatpush2.msra.mxu0 0.0
    %1418 = vmatprep.subr.mxu0 0.0
    %1419 = vmatpush2.msra.mxu0 0.0
    %1420 = vmatprep.subr.mxu0 0.0
    %1421 = vmatpush2.msra.mxu0 0.0
    %1422 = vmatprep.mubr.f32.mxu0 0.0
    %1423 = vmatmul.mubr.f32.gmra.mxu0 %v1137
    %v1424 = vpop.f32.mrf.mxu0
    %v1425 = vadd.f32 0.0, %v1424
    %v1426 = vpop.f32.mrf.mxu0
    %1427 = vdwg.mxu0
    %v1428 = vadd.f32 %v1357, %v1425
    %v1429 = vxor.u32 %v1209, 2147483648
    %v1430 = vmul.f32 %v1429, 1.442695
    %v1431 = vpow.pop %v1430
    %v1432 = vadd.f32 %v1431, 1.0
    %v1433 = vrcp.pop %v1432
    %v1434 = vmul.f32 1.0, %v1433
    %v1435 = vxor.u32 %v1282, 2147483648
    %v1436 = vmul.f32 %v1435, 1.442695
    %v1437 = vpow.pop %v1436
    %v1438 = vadd.f32 %v1437, 1.0
    %v1439 = vrcp.pop %v1438
    %v1440 = vmul.f32 1.0, %v1439
    %v1441 = vtanh.pop %v1355
    %v1442 = vxor.u32 %v1428, 2147483648
    %v1443 = vmul.f32 %v1442, 1.442695
    %v1444 = vpow.pop %v1443
    %v1445 = vadd.f32 %v1444, 1.0
    %v1446 = vrcp.pop %v1445
    %v1447 = vmul.f32 1.0, %v1446
    %v1448 = vmul.f32 %v1440, %v1131
    %v1449 = vmul.f32 %v1434, %v1441
    %v1450 = vadd.f32 %v1448, %v1449
    %v1451 = vtanh.pop %v1450
    %v1452 = vmul.f32 %v1447, %v1451
    %s1453 = scalar_lea.vmem [#allocation2], 24
    %v1454 = vld [vmem:[%s1453] sm:$0xff]
    %v1456 = vsel %vm219, %v1452, 0
    %1458 = vmatprep.subr.mxu0 0.0
    %1459 = vmatpush1.msra.mxu0 0.0
    %1460 = vmatprep.subr.mxu0 0.0
    %1461 = vmatpush1.msra.mxu0 0.0
    %1462 = vmatprep.subr.mxu0 0.0
    %1463 = vmatpush1.msra.mxu0 0.0
    %1464 = vmatprep.subr.mxu0 0.0
    %1465 = vmatpush1.msra.mxu0 0.0
    %1466 = vmatprep.subr.mxu0 0.0
    %1467 = vmatpush1.msra.mxu0 0.0
    %1468 = vmatprep.subr.mxu0 0.0
    %1469 = vmatpush1.msra.mxu0 0.0
    %1470 = vmatprep.subr.mxu0 0.0
    %1471 = vmatpush1.msra.mxu0 0.0
    %1472 = vmatprep.subr.mxu0 0.0
    %1473 = vmatpush1.msra.mxu0 0.0
    %1474 = vmatprep.subr.mxu0 0.0
    %1475 = vmatpush1.msra.mxu0 %v472
    %1476 = vmatprep.subr.mxu0 0.0
    %1477 = vmatpush1.msra.mxu0 %v471
    %1478 = vmatprep.subr.mxu0 0.0
    %1479 = vmatpush1.msra.mxu0 %v470
    %1480 = vmatprep.subr.mxu0 0.0
    %1481 = vmatpush1.msra.mxu0 %v469
    %1482 = vmatprep.subr.mxu0 0.0
    %1483 = vmatpush1.msra.mxu0 %v468
    %1484 = vmatprep.subr.mxu0 0.0
    %1485 = vmatpush1.msra.mxu0 %v467
    %1486 = vmatprep.subr.mxu0 0.0
    %1487 = vmatpush1.msra.mxu0 %v466
    %1488 = vmatprep.subr.mxu0 0.0
    %1489 = vmatpush1.msra.mxu0 %v465
    %1490 = vmatprep.subr.mxu0 0.0
    %1491 = vmatpush2.msra.mxu0 0.0
    %1492 = vmatprep.subr.mxu0 0.0
    %1493 = vmatpush2.msra.mxu0 0.0
    %1494 = vmatprep.subr.mxu0 0.0
    %1495 = vmatpush2.msra.mxu0 0.0
    %1496 = vmatprep.subr.mxu0 0.0
    %1497 = vmatpush2.msra.mxu0 0.0
    %1498 = vmatprep.subr.mxu0 0.0
    %1499 = vmatpush2.msra.mxu0 0.0
    %1500 = vmatprep.subr.mxu0 0.0
    %1501 = vmatpush2.msra.mxu0 0.0
    %1502 = vmatprep.subr.mxu0 0.0
    %1503 = vmatpush2.msra.mxu0 0.0
    %1504 = vmatprep.subr.mxu0 0.0
    %1505 = vmatpush2.msra.mxu0 0.0
    %1506 = vmatprep.subr.mxu0 0.0
    %1507 = vmatpush2.msra.mxu0 0.0
    %1508 = vmatprep.subr.mxu0 0.0
    %1509 = vmatpush2.msra.mxu0 0.0
    %1510 = vmatprep.subr.mxu0 0.0
    %1511 = vmatpush2.msra.mxu0 0.0
    %1512 = vmatprep.subr.mxu0 0.0
    %1513 = vmatpush2.msra.mxu0 0.0
    %1514 = vmatprep.subr.mxu0 0.0
    %1515 = vmatpush2.msra.mxu0 0.0
    %1516 = vmatprep.subr.mxu0 0.0
    %1517 = vmatpush2.msra.mxu0 0.0
    %1518 = vmatprep.subr.mxu0 0.0
    %1519 = vmatpush2.msra.mxu0 0.0
    %1520 = vmatprep.subr.mxu0 0.0
    %1521 = vmatpush2.msra.mxu0 0.0
    %1522 = vmatprep.mubr.f32.mxu0 0.0
    %1523 = vmatmul.mubr.f32.gmra.mxu0 %v1456
    %v1524 = vpop.f32.mrf.mxu0
    %v1525 = vadd.f32 0.0, %v1524
    %v1526 = vpop.f32.mrf.mxu0
    %1527 = vdwg.mxu0
    %v1528 = vadd.f32 %v1454, %v1525
    %s1529 = scalar_lea.vmem [#allocation2], 88
    %v1530 = vld [vmem:[%s1529] sm:$0xff]
    %1531 = vmatprep.subr.mxu0 0.0
    %1532 = vmatpush1.msra.mxu0 0.0
    %1533 = vmatprep.subr.mxu0 0.0
    %1534 = vmatpush1.msra.mxu0 0.0
    %1535 = vmatprep.subr.mxu0 0.0
    %1536 = vmatpush1.msra.mxu0 0.0
    %1537 = vmatprep.subr.mxu0 0.0
    %1538 = vmatpush1.msra.mxu0 0.0
    %1539 = vmatprep.subr.mxu0 0.0
    %1540 = vmatpush1.msra.mxu0 0.0
    %1541 = vmatprep.subr.mxu0 0.0
    %1542 = vmatpush1.msra.mxu0 0.0
    %1543 = vmatprep.subr.mxu0 0.0
    %1544 = vmatpush1.msra.mxu0 0.0
    %1545 = vmatprep.subr.mxu0 0.0
    %1546 = vmatpush1.msra.mxu0 0.0
    %1547 = vmatprep.subr.mxu0 0.0
    %1548 = vmatpush1.msra.mxu0 %v481
    %1549 = vmatprep.subr.mxu0 0.0
    %1550 = vmatpush1.msra.mxu0 %v480
    %1551 = vmatprep.subr.mxu0 0.0
    %1552 = vmatpush1.msra.mxu0 %v479
    %1553 = vmatprep.subr.mxu0 0.0
    %1554 = vmatpush1.msra.mxu0 %v478
    %1555 = vmatprep.subr.mxu0 0.0
    %1556 = vmatpush1.msra.mxu0 %v477
    %1557 = vmatprep.subr.mxu0 0.0
    %1558 = vmatpush1.msra.mxu0 %v476
    %1559 = vmatprep.subr.mxu0 0.0
    %1560 = vmatpush1.msra.mxu0 %v475
    %1561 = vmatprep.subr.mxu0 0.0
    %1562 = vmatpush1.msra.mxu0 %v474
    %1563 = vmatprep.subr.mxu0 0.0
    %1564 = vmatpush2.msra.mxu0 0.0
    %1565 = vmatprep.subr.mxu0 0.0
    %1566 = vmatpush2.msra.mxu0 0.0
    %1567 = vmatprep.subr.mxu0 0.0
    %1568 = vmatpush2.msra.mxu0 0.0
    %1569 = vmatprep.subr.mxu0 0.0
    %1570 = vmatpush2.msra.mxu0 0.0
    %1571 = vmatprep.subr.mxu0 0.0
    %1572 = vmatpush2.msra.mxu0 0.0
    %1573 = vmatprep.subr.mxu0 0.0
    %1574 = vmatpush2.msra.mxu0 0.0
    %1575 = vmatprep.subr.mxu0 0.0
    %1576 = vmatpush2.msra.mxu0 0.0
    %1577 = vmatprep.subr.mxu0 0.0
    %1578 = vmatpush2.msra.mxu0 0.0
    %1579 = vmatprep.subr.mxu0 0.0
    %1580 = vmatpush2.msra.mxu0 0.0
    %1581 = vmatprep.subr.mxu0 0.0
    %1582 = vmatpush2.msra.mxu0 0.0
    %1583 = vmatprep.subr.mxu0 0.0
    %1584 = vmatpush2.msra.mxu0 0.0
    %1585 = vmatprep.subr.mxu0 0.0
    %1586 = vmatpush2.msra.mxu0 0.0
    %1587 = vmatprep.subr.mxu0 0.0
    %1588 = vmatpush2.msra.mxu0 0.0
    %1589 = vmatprep.subr.mxu0 0.0
    %1590 = vmatpush2.msra.mxu0 0.0
    %1591 = vmatprep.subr.mxu0 0.0
    %1592 = vmatpush2.msra.mxu0 0.0
    %1593 = vmatprep.subr.mxu0 0.0
    %1594 = vmatpush2.msra.mxu0 0.0
    %1595 = vmatprep.mubr.f32.mxu0 0.0
    %1596 = vmatmul.mubr.f32.gmra.mxu0 %v1456
    %v1597 = vpop.f32.mrf.mxu0
    %v1598 = vadd.f32 0.0, %v1597
    %v1599 = vpop.f32.mrf.mxu0
    %1600 = vdwg.mxu0
    %v1601 = vadd.f32 %v1530, %v1598
    %s1602 = scalar_lea.vmem [#allocation2], 152
    %v1603 = vld [vmem:[%s1602] sm:$0xff]
    %1604 = vmatprep.subr.mxu0 0.0
    %1605 = vmatpush1.msra.mxu0 0.0
    %1606 = vmatprep.subr.mxu0 0.0
    %1607 = vmatpush1.msra.mxu0 0.0
    %1608 = vmatprep.subr.mxu0 0.0
    %1609 = vmatpush1.msra.mxu0 0.0
    %1610 = vmatprep.subr.mxu0 0.0
    %1611 = vmatpush1.msra.mxu0 0.0
    %1612 = vmatprep.subr.mxu0 0.0
    %1613 = vmatpush1.msra.mxu0 0.0
    %1614 = vmatprep.subr.mxu0 0.0
    %1615 = vmatpush1.msra.mxu0 0.0
    %1616 = vmatprep.subr.mxu0 0.0
    %1617 = vmatpush1.msra.mxu0 0.0
    %1618 = vmatprep.subr.mxu0 0.0
    %1619 = vmatpush1.msra.mxu0 0.0
    %1620 = vmatprep.subr.mxu0 0.0
    %1621 = vmatpush1.msra.mxu0 %v490
    %1622 = vmatprep.subr.mxu0 0.0
    %1623 = vmatpush1.msra.mxu0 %v489
    %1624 = vmatprep.subr.mxu0 0.0
    %1625 = vmatpush1.msra.mxu0 %v488
    %1626 = vmatprep.subr.mxu0 0.0
    %1627 = vmatpush1.msra.mxu0 %v487
    %1628 = vmatprep.subr.mxu0 0.0
    %1629 = vmatpush1.msra.mxu0 %v486
    %1630 = vmatprep.subr.mxu0 0.0
    %1631 = vmatpush1.msra.mxu0 %v485
    %1632 = vmatprep.subr.mxu0 0.0
    %1633 = vmatpush1.msra.mxu0 %v484
    %1634 = vmatprep.subr.mxu0 0.0
    %1635 = vmatpush1.msra.mxu0 %v483
    %1636 = vmatprep.subr.mxu0 0.0
    %1637 = vmatpush2.msra.mxu0 0.0
    %1638 = vmatprep.subr.mxu0 0.0
    %1639 = vmatpush2.msra.mxu0 0.0
    %1640 = vmatprep.subr.mxu0 0.0
    %1641 = vmatpush2.msra.mxu0 0.0
    %1642 = vmatprep.subr.mxu0 0.0
    %1643 = vmatpush2.msra.mxu0 0.0
    %1644 = vmatprep.subr.mxu0 0.0
    %1645 = vmatpush2.msra.mxu0 0.0
    %1646 = vmatprep.subr.mxu0 0.0
    %1647 = vmatpush2.msra.mxu0 0.0
    %1648 = vmatprep.subr.mxu0 0.0
    %1649 = vmatpush2.msra.mxu0 0.0
    %1650 = vmatprep.subr.mxu0 0.0
    %1651 = vmatpush2.msra.mxu0 0.0
    %1652 = vmatprep.subr.mxu0 0.0
    %1653 = vmatpush2.msra.mxu0 0.0
    %1654 = vmatprep.subr.mxu0 0.0
    %1655 = vmatpush2.msra.mxu0 0.0
    %1656 = vmatprep.subr.mxu0 0.0
    %1657 = vmatpush2.msra.mxu0 0.0
    %1658 = vmatprep.subr.mxu0 0.0
    %1659 = vmatpush2.msra.mxu0 0.0
    %1660 = vmatprep.subr.mxu0 0.0
    %1661 = vmatpush2.msra.mxu0 0.0
    %1662 = vmatprep.subr.mxu0 0.0
    %1663 = vmatpush2.msra.mxu0 0.0
    %1664 = vmatprep.subr.mxu0 0.0
    %1665 = vmatpush2.msra.mxu0 0.0
    %1666 = vmatprep.subr.mxu0 0.0
    %1667 = vmatpush2.msra.mxu0 0.0
    %1668 = vmatprep.mubr.f32.mxu0 0.0
    %1669 = vmatmul.mubr.f32.gmra.mxu0 %v1456
    %v1670 = vpop.f32.mrf.mxu0
    %v1671 = vadd.f32 0.0, %v1670
    %v1672 = vpop.f32.mrf.mxu0
    %1673 = vdwg.mxu0
    %v1674 = vadd.f32 %v1603, %v1671
    %s1675 = scalar_lea.vmem [#allocation2], 216
    %v1676 = vld [vmem:[%s1675] sm:$0xff]
    %1677 = vmatprep.subr.mxu0 0.0
    %1678 = vmatpush1.msra.mxu0 0.0
    %1679 = vmatprep.subr.mxu0 0.0
    %1680 = vmatpush1.msra.mxu0 0.0
    %1681 = vmatprep.subr.mxu0 0.0
    %1682 = vmatpush1.msra.mxu0 0.0
    %1683 = vmatprep.subr.mxu0 0.0
    %1684 = vmatpush1.msra.mxu0 0.0
    %1685 = vmatprep.subr.mxu0 0.0
    %1686 = vmatpush1.msra.mxu0 0.0
    %1687 = vmatprep.subr.mxu0 0.0
    %1688 = vmatpush1.msra.mxu0 0.0
    %1689 = vmatprep.subr.mxu0 0.0
    %1690 = vmatpush1.msra.mxu0 0.0
    %1691 = vmatprep.subr.mxu0 0.0
    %1692 = vmatpush1.msra.mxu0 0.0
    %1693 = vmatprep.subr.mxu0 0.0
    %1694 = vmatpush1.msra.mxu0 %v499
    %1695 = vmatprep.subr.mxu0 0.0
    %1696 = vmatpush1.msra.mxu0 %v498
    %1697 = vmatprep.subr.mxu0 0.0
    %1698 = vmatpush1.msra.mxu0 %v497
    %1699 = vmatprep.subr.mxu0 0.0
    %1700 = vmatpush1.msra.mxu0 %v496
    %1701 = vmatprep.subr.mxu0 0.0
    %1702 = vmatpush1.msra.mxu0 %v495
    %1703 = vmatprep.subr.mxu0 0.0
    %1704 = vmatpush1.msra.mxu0 %v494
    %1705 = vmatprep.subr.mxu0 0.0
    %1706 = vmatpush1.msra.mxu0 %v493
    %1707 = vmatprep.subr.mxu0 0.0
    %1708 = vmatpush1.msra.mxu0 %v492
    %1709 = vmatprep.subr.mxu0 0.0
    %1710 = vmatpush2.msra.mxu0 0.0
    %1711 = vmatprep.subr.mxu0 0.0
    %1712 = vmatpush2.msra.mxu0 0.0
    %1713 = vmatprep.subr.mxu0 0.0
    %1714 = vmatpush2.msra.mxu0 0.0
    %1715 = vmatprep.subr.mxu0 0.0
    %1716 = vmatpush2.msra.mxu0 0.0
    %1717 = vmatprep.subr.mxu0 0.0
    %1718 = vmatpush2.msra.mxu0 0.0
    %1719 = vmatprep.subr.mxu0 0.0
    %1720 = vmatpush2.msra.mxu0 0.0
    %1721 = vmatprep.subr.mxu0 0.0
    %1722 = vmatpush2.msra.mxu0 0.0
    %1723 = vmatprep.subr.mxu0 0.0
    %1724 = vmatpush2.msra.mxu0 0.0
    %1725 = vmatprep.subr.mxu0 0.0
    %1726 = vmatpush2.msra.mxu0 0.0
    %1727 = vmatprep.subr.mxu0 0.0
    %1728 = vmatpush2.msra.mxu0 0.0
    %1729 = vmatprep.subr.mxu0 0.0
    %1730 = vmatpush2.msra.mxu0 0.0
    %1731 = vmatprep.subr.mxu0 0.0
    %1732 = vmatpush2.msra.mxu0 0.0
    %1733 = vmatprep.subr.mxu0 0.0
    %1734 = vmatpush2.msra.mxu0 0.0
    %1735 = vmatprep.subr.mxu0 0.0
    %1736 = vmatpush2.msra.mxu0 0.0
    %1737 = vmatprep.subr.mxu0 0.0
    %1738 = vmatpush2.msra.mxu0 0.0
    %1739 = vmatprep.subr.mxu0 0.0
    %1740 = vmatpush2.msra.mxu0 0.0
    %1741 = vmatprep.mubr.f32.mxu0 0.0
    %1742 = vmatmul.mubr.f32.gmra.mxu0 %v1456
    %v1743 = vpop.f32.mrf.mxu0
    %v1744 = vadd.f32 0.0, %v1743
    %v1745 = vpop.f32.mrf.mxu0
    %1746 = vdwg.mxu0
    %v1747 = vadd.f32 %v1676, %v1744
    %v1748 = vxor.u32 %v1528, 2147483648
    %v1749 = vmul.f32 %v1748, 1.442695
    %v1750 = vpow.pop %v1749
    %v1751 = vadd.f32 %v1750, 1.0
    %v1752 = vrcp.pop %v1751
    %v1753 = vmul.f32 1.0, %v1752
    %v1754 = vxor.u32 %v1601, 2147483648
    %v1755 = vmul.f32 %v1754, 1.442695
    %v1756 = vpow.pop %v1755
    %v1757 = vadd.f32 %v1756, 1.0
    %v1758 = vrcp.pop %v1757
    %v1759 = vmul.f32 1.0, %v1758
    %v1760 = vtanh.pop %v1674
    %v1761 = vxor.u32 %v1747, 2147483648
    %v1762 = vmul.f32 %v1761, 1.442695
    %v1763 = vpow.pop %v1762
    %v1764 = vadd.f32 %v1763, 1.0
    %v1765 = vrcp.pop %v1764
    %v1766 = vmul.f32 1.0, %v1765
    %v1767 = vmul.f32 %v1759, %v1450
    %v1768 = vmul.f32 %v1753, %v1760
    %v1769 = vadd.f32 %v1767, %v1768
    %v1770 = vtanh.pop %v1769
    %v1771 = vmul.f32 %v1766, %v1770
    %s1772 = scalar_lea.vmem [#allocation2], 32
    %v1773 = vld [vmem:[%s1772] sm:$0xff]
    %v1775 = vsel %vm219, %v1771, 0
    %1777 = vmatprep.subr.mxu0 0.0
    %1778 = vmatpush1.msra.mxu0 0.0
    %1779 = vmatprep.subr.mxu0 0.0
    %1780 = vmatpush1.msra.mxu0 0.0
    %1781 = vmatprep.subr.mxu0 0.0
    %1782 = vmatpush1.msra.mxu0 0.0
    %1783 = vmatprep.subr.mxu0 0.0
    %1784 = vmatpush1.msra.mxu0 0.0
    %1785 = vmatprep.subr.mxu0 0.0
    %1786 = vmatpush1.msra.mxu0 0.0
    %1787 = vmatprep.subr.mxu0 0.0
    %1788 = vmatpush1.msra.mxu0 0.0
    %1789 = vmatprep.subr.mxu0 0.0
    %1790 = vmatpush1.msra.mxu0 0.0
    %1791 = vmatprep.subr.mxu0 0.0
    %1792 = vmatpush1.msra.mxu0 0.0
    %1793 = vmatprep.subr.mxu0 0.0
    %1794 = vmatpush1.msra.mxu0 %v472
    %1795 = vmatprep.subr.mxu0 0.0
    %1796 = vmatpush1.msra.mxu0 %v471
    %1797 = vmatprep.subr.mxu0 0.0
    %1798 = vmatpush1.msra.mxu0 %v470
    %1799 = vmatprep.subr.mxu0 0.0
    %1800 = vmatpush1.msra.mxu0 %v469
    %1801 = vmatprep.subr.mxu0 0.0
    %1802 = vmatpush1.msra.mxu0 %v468
    %1803 = vmatprep.subr.mxu0 0.0
    %1804 = vmatpush1.msra.mxu0 %v467
    %1805 = vmatprep.subr.mxu0 0.0
    %1806 = vmatpush1.msra.mxu0 %v466
    %1807 = vmatprep.subr.mxu0 0.0
    %1808 = vmatpush1.msra.mxu0 %v465
    %1809 = vmatprep.subr.mxu0 0.0
    %1810 = vmatpush2.msra.mxu0 0.0
    %1811 = vmatprep.subr.mxu0 0.0
    %1812 = vmatpush2.msra.mxu0 0.0
    %1813 = vmatprep.subr.mxu0 0.0
    %1814 = vmatpush2.msra.mxu0 0.0
    %1815 = vmatprep.subr.mxu0 0.0
    %1816 = vmatpush2.msra.mxu0 0.0
    %1817 = vmatprep.subr.mxu0 0.0
    %1818 = vmatpush2.msra.mxu0 0.0
    %1819 = vmatprep.subr.mxu0 0.0
    %1820 = vmatpush2.msra.mxu0 0.0
    %1821 = vmatprep.subr.mxu0 0.0
    %1822 = vmatpush2.msra.mxu0 0.0
    %1823 = vmatprep.subr.mxu0 0.0
    %1824 = vmatpush2.msra.mxu0 0.0
    %1825 = vmatprep.subr.mxu0 0.0
    %1826 = vmatpush2.msra.mxu0 0.0
    %1827 = vmatprep.subr.mxu0 0.0
    %1828 = vmatpush2.msra.mxu0 0.0
    %1829 = vmatprep.subr.mxu0 0.0
    %1830 = vmatpush2.msra.mxu0 0.0
    %1831 = vmatprep.subr.mxu0 0.0
    %1832 = vmatpush2.msra.mxu0 0.0
    %1833 = vmatprep.subr.mxu0 0.0
    %1834 = vmatpush2.msra.mxu0 0.0
    %1835 = vmatprep.subr.mxu0 0.0
    %1836 = vmatpush2.msra.mxu0 0.0
    %1837 = vmatprep.subr.mxu0 0.0
    %1838 = vmatpush2.msra.mxu0 0.0
    %1839 = vmatprep.subr.mxu0 0.0
    %1840 = vmatpush2.msra.mxu0 0.0
    %1841 = vmatprep.mubr.f32.mxu0 0.0
    %1842 = vmatmul.mubr.f32.gmra.mxu0 %v1775
    %v1843 = vpop.f32.mrf.mxu0
    %v1844 = vadd.f32 0.0, %v1843
    %v1845 = vpop.f32.mrf.mxu0
    %1846 = vdwg.mxu0
    %v1847 = vadd.f32 %v1773, %v1844
    %s1848 = scalar_lea.vmem [#allocation2], 96
    %v1849 = vld [vmem:[%s1848] sm:$0xff]
    %1850 = vmatprep.subr.mxu0 0.0
    %1851 = vmatpush1.msra.mxu0 0.0
    %1852 = vmatprep.subr.mxu0 0.0
    %1853 = vmatpush1.msra.mxu0 0.0
    %1854 = vmatprep.subr.mxu0 0.0
    %1855 = vmatpush1.msra.mxu0 0.0
    %1856 = vmatprep.subr.mxu0 0.0
    %1857 = vmatpush1.msra.mxu0 0.0
    %1858 = vmatprep.subr.mxu0 0.0
    %1859 = vmatpush1.msra.mxu0 0.0
    %1860 = vmatprep.subr.mxu0 0.0
    %1861 = vmatpush1.msra.mxu0 0.0
    %1862 = vmatprep.subr.mxu0 0.0
    %1863 = vmatpush1.msra.mxu0 0.0
    %1864 = vmatprep.subr.mxu0 0.0
    %1865 = vmatpush1.msra.mxu0 0.0
    %1866 = vmatprep.subr.mxu0 0.0
    %1867 = vmatpush1.msra.mxu0 %v481
    %1868 = vmatprep.subr.mxu0 0.0
    %1869 = vmatpush1.msra.mxu0 %v480
    %1870 = vmatprep.subr.mxu0 0.0
    %1871 = vmatpush1.msra.mxu0 %v479
    %1872 = vmatprep.subr.mxu0 0.0
    %1873 = vmatpush1.msra.mxu0 %v478
    %1874 = vmatprep.subr.mxu0 0.0
    %1875 = vmatpush1.msra.mxu0 %v477
    %1876 = vmatprep.subr.mxu0 0.0
    %1877 = vmatpush1.msra.mxu0 %v476
    %1878 = vmatprep.subr.mxu0 0.0
    %1879 = vmatpush1.msra.mxu0 %v475
    %1880 = vmatprep.subr.mxu0 0.0
    %1881 = vmatpush1.msra.mxu0 %v474
    %1882 = vmatprep.subr.mxu0 0.0
    %1883 = vmatpush2.msra.mxu0 0.0
    %1884 = vmatprep.subr.mxu0 0.0
    %1885 = vmatpush2.msra.mxu0 0.0
    %1886 = vmatprep.subr.mxu0 0.0
    %1887 = vmatpush2.msra.mxu0 0.0
    %1888 = vmatprep.subr.mxu0 0.0
    %1889 = vmatpush2.msra.mxu0 0.0
    %1890 = vmatprep.subr.mxu0 0.0
    %1891 = vmatpush2.msra.mxu0 0.0
    %1892 = vmatprep.subr.mxu0 0.0
    %1893 = vmatpush2.msra.mxu0 0.0
    %1894 = vmatprep.subr.mxu0 0.0
    %1895 = vmatpush2.msra.mxu0 0.0
    %1896 = vmatprep.subr.mxu0 0.0
    %1897 = vmatpush2.msra.mxu0 0.0
    %1898 = vmatprep.subr.mxu0 0.0
    %1899 = vmatpush2.msra.mxu0 0.0
    %1900 = vmatprep.subr.mxu0 0.0
    %1901 = vmatpush2.msra.mxu0 0.0
    %1902 = vmatprep.subr.mxu0 0.0
    %1903 = vmatpush2.msra.mxu0 0.0
    %1904 = vmatprep.subr.mxu0 0.0
    %1905 = vmatpush2.msra.mxu0 0.0
    %1906 = vmatprep.subr.mxu0 0.0
    %1907 = vmatpush2.msra.mxu0 0.0
    %1908 = vmatprep.subr.mxu0 0.0
    %1909 = vmatpush2.msra.mxu0 0.0
    %1910 = vmatprep.subr.mxu0 0.0
    %1911 = vmatpush2.msra.mxu0 0.0
    %1912 = vmatprep.subr.mxu0 0.0
    %1913 = vmatpush2.msra.mxu0 0.0
    %1914 = vmatprep.mubr.f32.mxu0 0.0
    %1915 = vmatmul.mubr.f32.gmra.mxu0 %v1775
    %v1916 = vpop.f32.mrf.mxu0
    %v1917 = vadd.f32 0.0, %v1916
    %v1918 = vpop.f32.mrf.mxu0
    %1919 = vdwg.mxu0
    %v1920 = vadd.f32 %v1849, %v1917
    %s1921 = scalar_lea.vmem [#allocation2], 160
    %v1922 = vld [vmem:[%s1921] sm:$0xff]
    %1923 = vmatprep.subr.mxu0 0.0
    %1924 = vmatpush1.msra.mxu0 0.0
    %1925 = vmatprep.subr.mxu0 0.0
    %1926 = vmatpush1.msra.mxu0 0.0
    %1927 = vmatprep.subr.mxu0 0.0
    %1928 = vmatpush1.msra.mxu0 0.0
    %1929 = vmatprep.subr.mxu0 0.0
    %1930 = vmatpush1.msra.mxu0 0.0
    %1931 = vmatprep.subr.mxu0 0.0
    %1932 = vmatpush1.msra.mxu0 0.0
    %1933 = vmatprep.subr.mxu0 0.0
    %1934 = vmatpush1.msra.mxu0 0.0
    %1935 = vmatprep.subr.mxu0 0.0
    %1936 = vmatpush1.msra.mxu0 0.0
    %1937 = vmatprep.subr.mxu0 0.0
    %1938 = vmatpush1.msra.mxu0 0.0
    %1939 = vmatprep.subr.mxu0 0.0
    %1940 = vmatpush1.msra.mxu0 %v490
    %1941 = vmatprep.subr.mxu0 0.0
    %1942 = vmatpush1.msra.mxu0 %v489
    %1943 = vmatprep.subr.mxu0 0.0
    %1944 = vmatpush1.msra.mxu0 %v488
    %1945 = vmatprep.subr.mxu0 0.0
    %1946 = vmatpush1.msra.mxu0 %v487
    %1947 = vmatprep.subr.mxu0 0.0
    %1948 = vmatpush1.msra.mxu0 %v486
    %1949 = vmatprep.subr.mxu0 0.0
    %1950 = vmatpush1.msra.mxu0 %v485
    %1951 = vmatprep.subr.mxu0 0.0
    %1952 = vmatpush1.msra.mxu0 %v484
    %1953 = vmatprep.subr.mxu0 0.0
    %1954 = vmatpush1.msra.mxu0 %v483
    %1955 = vmatprep.subr.mxu0 0.0
    %1956 = vmatpush2.msra.mxu0 0.0
    %1957 = vmatprep.subr.mxu0 0.0
    %1958 = vmatpush2.msra.mxu0 0.0
    %1959 = vmatprep.subr.mxu0 0.0
    %1960 = vmatpush2.msra.mxu0 0.0
    %1961 = vmatprep.subr.mxu0 0.0
    %1962 = vmatpush2.msra.mxu0 0.0
    %1963 = vmatprep.subr.mxu0 0.0
    %1964 = vmatpush2.msra.mxu0 0.0
    %1965 = vmatprep.subr.mxu0 0.0
    %1966 = vmatpush2.msra.mxu0 0.0
    %1967 = vmatprep.subr.mxu0 0.0
    %1968 = vmatpush2.msra.mxu0 0.0
    %1969 = vmatprep.subr.mxu0 0.0
    %1970 = vmatpush2.msra.mxu0 0.0
    %1971 = vmatprep.subr.mxu0 0.0
    %1972 = vmatpush2.msra.mxu0 0.0
    %1973 = vmatprep.subr.mxu0 0.0
    %1974 = vmatpush2.msra.mxu0 0.0
    %1975 = vmatprep.subr.mxu0 0.0
    %1976 = vmatpush2.msra.mxu0 0.0
    %1977 = vmatprep.subr.mxu0 0.0
    %1978 = vmatpush2.msra.mxu0 0.0
    %1979 = vmatprep.subr.mxu0 0.0
    %1980 = vmatpush2.msra.mxu0 0.0
    %1981 = vmatprep.subr.mxu0 0.0
    %1982 = vmatpush2.msra.mxu0 0.0
    %1983 = vmatprep.subr.mxu0 0.0
    %1984 = vmatpush2.msra.mxu0 0.0
    %1985 = vmatprep.subr.mxu0 0.0
    %1986 = vmatpush2.msra.mxu0 0.0
    %1987 = vmatprep.mubr.f32.mxu0 0.0
    %1988 = vmatmul.mubr.f32.gmra.mxu0 %v1775
    %v1989 = vpop.f32.mrf.mxu0
    %v1990 = vadd.f32 0.0, %v1989
    %v1991 = vpop.f32.mrf.mxu0
    %1992 = vdwg.mxu0
    %v1993 = vadd.f32 %v1922, %v1990
    %s1994 = scalar_lea.vmem [#allocation2], 224
    %v1995 = vld [vmem:[%s1994] sm:$0xff]
    %1996 = vmatprep.subr.mxu0 0.0
    %1997 = vmatpush1.msra.mxu0 0.0
    %1998 = vmatprep.subr.mxu0 0.0
    %1999 = vmatpush1.msra.mxu0 0.0
    %2000 = vmatprep.subr.mxu0 0.0
    %2001 = vmatpush1.msra.mxu0 0.0
    %2002 = vmatprep.subr.mxu0 0.0
    %2003 = vmatpush1.msra.mxu0 0.0
    %2004 = vmatprep.subr.mxu0 0.0
    %2005 = vmatpush1.msra.mxu0 0.0
    %2006 = vmatprep.subr.mxu0 0.0
    %2007 = vmatpush1.msra.mxu0 0.0
    %2008 = vmatprep.subr.mxu0 0.0
    %2009 = vmatpush1.msra.mxu0 0.0
    %2010 = vmatprep.subr.mxu0 0.0
    %2011 = vmatpush1.msra.mxu0 0.0
    %2012 = vmatprep.subr.mxu0 0.0
    %2013 = vmatpush1.msra.mxu0 %v499
    %2014 = vmatprep.subr.mxu0 0.0
    %2015 = vmatpush1.msra.mxu0 %v498
    %2016 = vmatprep.subr.mxu0 0.0
    %2017 = vmatpush1.msra.mxu0 %v497
    %2018 = vmatprep.subr.mxu0 0.0
    %2019 = vmatpush1.msra.mxu0 %v496
    %2020 = vmatprep.subr.mxu0 0.0
    %2021 = vmatpush1.msra.mxu0 %v495
    %2022 = vmatprep.subr.mxu0 0.0
    %2023 = vmatpush1.msra.mxu0 %v494
    %2024 = vmatprep.subr.mxu0 0.0
    %2025 = vmatpush1.msra.mxu0 %v493
    %2026 = vmatprep.subr.mxu0 0.0
    %2027 = vmatpush1.msra.mxu0 %v492
    %2028 = vmatprep.subr.mxu0 0.0
    %2029 = vmatpush2.msra.mxu0 0.0
    %2030 = vmatprep.subr.mxu0 0.0
    %2031 = vmatpush2.msra.mxu0 0.0
    %2032 = vmatprep.subr.mxu0 0.0
    %2033 = vmatpush2.msra.mxu0 0.0
    %2034 = vmatprep.subr.mxu0 0.0
    %2035 = vmatpush2.msra.mxu0 0.0
    %2036 = vmatprep.subr.mxu0 0.0
    %2037 = vmatpush2.msra.mxu0 0.0
    %2038 = vmatprep.subr.mxu0 0.0
    %2039 = vmatpush2.msra.mxu0 0.0
    %2040 = vmatprep.subr.mxu0 0.0
    %2041 = vmatpush2.msra.mxu0 0.0
    %2042 = vmatprep.subr.mxu0 0.0
    %2043 = vmatpush2.msra.mxu0 0.0
    %2044 = vmatprep.subr.mxu0 0.0
    %2045 = vmatpush2.msra.mxu0 0.0
    %2046 = vmatprep.subr.mxu0 0.0
    %2047 = vmatpush2.msra.mxu0 0.0
    %2048 = vmatprep.subr.mxu0 0.0
    %2049 = vmatpush2.msra.mxu0 0.0
    %2050 = vmatprep.subr.mxu0 0.0
    %2051 = vmatpush2.msra.mxu0 0.0
    %2052 = vmatprep.subr.mxu0 0.0
    %2053 = vmatpush2.msra.mxu0 0.0
    %2054 = vmatprep.subr.mxu0 0.0
    %2055 = vmatpush2.msra.mxu0 0.0
    %2056 = vmatprep.subr.mxu0 0.0
    %2057 = vmatpush2.msra.mxu0 0.0
    %2058 = vmatprep.subr.mxu0 0.0
    %2059 = vmatpush2.msra.mxu0 0.0
    %2060 = vmatprep.mubr.f32.mxu0 0.0
    %2061 = vmatmul.mubr.f32.gmra.mxu0 %v1775
    %v2062 = vpop.f32.mrf.mxu0
    %v2063 = vadd.f32 0.0, %v2062
    %v2064 = vpop.f32.mrf.mxu0
    %2065 = vdwg.mxu0
    %v2066 = vadd.f32 %v1995, %v2063
    %v2067 = vxor.u32 %v1847, 2147483648
    %v2068 = vmul.f32 %v2067, 1.442695
    %v2069 = vpow.pop %v2068
    %v2070 = vadd.f32 %v2069, 1.0
    %v2071 = vrcp.pop %v2070
    %v2072 = vmul.f32 1.0, %v2071
    %v2073 = vxor.u32 %v1920, 2147483648
    %v2074 = vmul.f32 %v2073, 1.442695
    %v2075 = vpow.pop %v2074
    %v2076 = vadd.f32 %v2075, 1.0
    %v2077 = vrcp.pop %v2076
    %v2078 = vmul.f32 1.0, %v2077
    %v2079 = vtanh.pop %v1993
    %v2080 = vxor.u32 %v2066, 2147483648
    %v2081 = vmul.f32 %v2080, 1.442695
    %v2082 = vpow.pop %v2081
    %v2083 = vadd.f32 %v2082, 1.0
    %v2084 = vrcp.pop %v2083
    %v2085 = vmul.f32 1.0, %v2084
    %v2086 = vmul.f32 %v2078, %v1769
    %v2087 = vmul.f32 %v2072, %v2079
    %v2088 = vadd.f32 %v2086, %v2087
    %v2089 = vtanh.pop %v2088
    %v2090 = vmul.f32 %v2085, %v2089
    %s2091 = scalar_lea.vmem [#allocation2], 40
    %v2092 = vld [vmem:[%s2091] sm:$0xff]
    %v2094 = vsel %vm219, %v2090, 0
    %2096 = vmatprep.subr.mxu0 0.0
    %2097 = vmatpush1.msra.mxu0 0.0
    %2098 = vmatprep.subr.mxu0 0.0
    %2099 = vmatpush1.msra.mxu0 0.0
    %2100 = vmatprep.subr.mxu0 0.0
    %2101 = vmatpush1.msra.mxu0 0.0
    %2102 = vmatprep.subr.mxu0 0.0
    %2103 = vmatpush1.msra.mxu0 0.0
    %2104 = vmatprep.subr.mxu0 0.0
    %2105 = vmatpush1.msra.mxu0 0.0
    %2106 = vmatprep.subr.mxu0 0.0
    %2107 = vmatpush1.msra.mxu0 0.0
    %2108 = vmatprep.subr.mxu0 0.0
    %2109 = vmatpush1.msra.mxu0 0.0
    %2110 = vmatprep.subr.mxu0 0.0
    %2111 = vmatpush1.msra.mxu0 0.0
    %2112 = vmatprep.subr.mxu0 0.0
    %2113 = vmatpush1.msra.mxu0 %v472
    %2114 = vmatprep.subr.mxu0 0.0
    %2115 = vmatpush1.msra.mxu0 %v471
    %2116 = vmatprep.subr.mxu0 0.0
    %2117 = vmatpush1.msra.mxu0 %v470
    %2118 = vmatprep.subr.mxu0 0.0
    %2119 = vmatpush1.msra.mxu0 %v469
    %2120 = vmatprep.subr.mxu0 0.0
    %2121 = vmatpush1.msra.mxu0 %v468
    %2122 = vmatprep.subr.mxu0 0.0
    %2123 = vmatpush1.msra.mxu0 %v467
    %2124 = vmatprep.subr.mxu0 0.0
    %2125 = vmatpush1.msra.mxu0 %v466
    %2126 = vmatprep.subr.mxu0 0.0
    %2127 = vmatpush1.msra.mxu0 %v465
    %2128 = vmatprep.subr.mxu0 0.0
    %2129 = vmatpush2.msra.mxu0 0.0
    %2130 = vmatprep.subr.mxu0 0.0
    %2131 = vmatpush2.msra.mxu0 0.0
    %2132 = vmatprep.subr.mxu0 0.0
    %2133 = vmatpush2.msra.mxu0 0.0
    %2134 = vmatprep.subr.mxu0 0.0
    %2135 = vmatpush2.msra.mxu0 0.0
    %2136 = vmatprep.subr.mxu0 0.0
    %2137 = vmatpush2.msra.mxu0 0.0
    %2138 = vmatprep.subr.mxu0 0.0
    %2139 = vmatpush2.msra.mxu0 0.0
    %2140 = vmatprep.subr.mxu0 0.0
    %2141 = vmatpush2.msra.mxu0 0.0
    %2142 = vmatprep.subr.mxu0 0.0
    %2143 = vmatpush2.msra.mxu0 0.0
    %2144 = vmatprep.subr.mxu0 0.0
    %2145 = vmatpush2.msra.mxu0 0.0
    %2146 = vmatprep.subr.mxu0 0.0
    %2147 = vmatpush2.msra.mxu0 0.0
    %2148 = vmatprep.subr.mxu0 0.0
    %2149 = vmatpush2.msra.mxu0 0.0
    %2150 = vmatprep.subr.mxu0 0.0
    %2151 = vmatpush2.msra.mxu0 0.0
    %2152 = vmatprep.subr.mxu0 0.0
    %2153 = vmatpush2.msra.mxu0 0.0
    %2154 = vmatprep.subr.mxu0 0.0
    %2155 = vmatpush2.msra.mxu0 0.0
    %2156 = vmatprep.subr.mxu0 0.0
    %2157 = vmatpush2.msra.mxu0 0.0
    %2158 = vmatprep.subr.mxu0 0.0
    %2159 = vmatpush2.msra.mxu0 0.0
    %2160 = vmatprep.mubr.f32.mxu0 0.0
    %2161 = vmatmul.mubr.f32.gmra.mxu0 %v2094
    %v2162 = vpop.f32.mrf.mxu0
    %v2163 = vadd.f32 0.0, %v2162
    %v2164 = vpop.f32.mrf.mxu0
    %2165 = vdwg.mxu0
    %v2166 = vadd.f32 %v2092, %v2163
    %s2167 = scalar_lea.vmem [#allocation2], 104
    %v2168 = vld [vmem:[%s2167] sm:$0xff]
    %2169 = vmatprep.subr.mxu0 0.0
    %2170 = vmatpush1.msra.mxu0 0.0
    %2171 = vmatprep.subr.mxu0 0.0
    %2172 = vmatpush1.msra.mxu0 0.0
    %2173 = vmatprep.subr.mxu0 0.0
    %2174 = vmatpush1.msra.mxu0 0.0
    %2175 = vmatprep.subr.mxu0 0.0
    %2176 = vmatpush1.msra.mxu0 0.0
    %2177 = vmatprep.subr.mxu0 0.0
    %2178 = vmatpush1.msra.mxu0 0.0
    %2179 = vmatprep.subr.mxu0 0.0
    %2180 = vmatpush1.msra.mxu0 0.0
    %2181 = vmatprep.subr.mxu0 0.0
    %2182 = vmatpush1.msra.mxu0 0.0
    %2183 = vmatprep.subr.mxu0 0.0
    %2184 = vmatpush1.msra.mxu0 0.0
    %2185 = vmatprep.subr.mxu0 0.0
    %2186 = vmatpush1.msra.mxu0 %v481
    %2187 = vmatprep.subr.mxu0 0.0
    %2188 = vmatpush1.msra.mxu0 %v480
    %2189 = vmatprep.subr.mxu0 0.0
    %2190 = vmatpush1.msra.mxu0 %v479
    %2191 = vmatprep.subr.mxu0 0.0
    %2192 = vmatpush1.msra.mxu0 %v478
    %2193 = vmatprep.subr.mxu0 0.0
    %2194 = vmatpush1.msra.mxu0 %v477
    %2195 = vmatprep.subr.mxu0 0.0
    %2196 = vmatpush1.msra.mxu0 %v476
    %2197 = vmatprep.subr.mxu0 0.0
    %2198 = vmatpush1.msra.mxu0 %v475
    %2199 = vmatprep.subr.mxu0 0.0
    %2200 = vmatpush1.msra.mxu0 %v474
    %2201 = vmatprep.subr.mxu0 0.0
    %2202 = vmatpush2.msra.mxu0 0.0
    %2203 = vmatprep.subr.mxu0 0.0
    %2204 = vmatpush2.msra.mxu0 0.0
    %2205 = vmatprep.subr.mxu0 0.0
    %2206 = vmatpush2.msra.mxu0 0.0
    %2207 = vmatprep.subr.mxu0 0.0
    %2208 = vmatpush2.msra.mxu0 0.0
    %2209 = vmatprep.subr.mxu0 0.0
    %2210 = vmatpush2.msra.mxu0 0.0
    %2211 = vmatprep.subr.mxu0 0.0
    %2212 = vmatpush2.msra.mxu0 0.0
    %2213 = vmatprep.subr.mxu0 0.0
    %2214 = vmatpush2.msra.mxu0 0.0
    %2215 = vmatprep.subr.mxu0 0.0
    %2216 = vmatpush2.msra.mxu0 0.0
    %2217 = vmatprep.subr.mxu0 0.0
    %2218 = vmatpush2.msra.mxu0 0.0
    %2219 = vmatprep.subr.mxu0 0.0
    %2220 = vmatpush2.msra.mxu0 0.0
    %2221 = vmatprep.subr.mxu0 0.0
    %2222 = vmatpush2.msra.mxu0 0.0
    %2223 = vmatprep.subr.mxu0 0.0
    %2224 = vmatpush2.msra.mxu0 0.0
    %2225 = vmatprep.subr.mxu0 0.0
    %2226 = vmatpush2.msra.mxu0 0.0
    %2227 = vmatprep.subr.mxu0 0.0
    %2228 = vmatpush2.msra.mxu0 0.0
    %2229 = vmatprep.subr.mxu0 0.0
    %2230 = vmatpush2.msra.mxu0 0.0
    %2231 = vmatprep.subr.mxu0 0.0
    %2232 = vmatpush2.msra.mxu0 0.0
    %2233 = vmatprep.mubr.f32.mxu0 0.0
    %2234 = vmatmul.mubr.f32.gmra.mxu0 %v2094
    %v2235 = vpop.f32.mrf.mxu0
    %v2236 = vadd.f32 0.0, %v2235
    %v2237 = vpop.f32.mrf.mxu0
    %2238 = vdwg.mxu0
    %v2239 = vadd.f32 %v2168, %v2236
    %s2240 = scalar_lea.vmem [#allocation2], 168
    %v2241 = vld [vmem:[%s2240] sm:$0xff]
    %2242 = vmatprep.subr.mxu0 0.0
    %2243 = vmatpush1.msra.mxu0 0.0
    %2244 = vmatprep.subr.mxu0 0.0
    %2245 = vmatpush1.msra.mxu0 0.0
    %2246 = vmatprep.subr.mxu0 0.0
    %2247 = vmatpush1.msra.mxu0 0.0
    %2248 = vmatprep.subr.mxu0 0.0
    %2249 = vmatpush1.msra.mxu0 0.0
    %2250 = vmatprep.subr.mxu0 0.0
    %2251 = vmatpush1.msra.mxu0 0.0
    %2252 = vmatprep.subr.mxu0 0.0
    %2253 = vmatpush1.msra.mxu0 0.0
    %2254 = vmatprep.subr.mxu0 0.0
    %2255 = vmatpush1.msra.mxu0 0.0
    %2256 = vmatprep.subr.mxu0 0.0
    %2257 = vmatpush1.msra.mxu0 0.0
    %2258 = vmatprep.subr.mxu0 0.0
    %2259 = vmatpush1.msra.mxu0 %v490
    %2260 = vmatprep.subr.mxu0 0.0
    %2261 = vmatpush1.msra.mxu0 %v489
    %2262 = vmatprep.subr.mxu0 0.0
    %2263 = vmatpush1.msra.mxu0 %v488
    %2264 = vmatprep.subr.mxu0 0.0
    %2265 = vmatpush1.msra.mxu0 %v487
    %2266 = vmatprep.subr.mxu0 0.0
    %2267 = vmatpush1.msra.mxu0 %v486
    %2268 = vmatprep.subr.mxu0 0.0
    %2269 = vmatpush1.msra.mxu0 %v485
    %2270 = vmatprep.subr.mxu0 0.0
    %2271 = vmatpush1.msra.mxu0 %v484
    %2272 = vmatprep.subr.mxu0 0.0
    %2273 = vmatpush1.msra.mxu0 %v483
    %2274 = vmatprep.subr.mxu0 0.0
    %2275 = vmatpush2.msra.mxu0 0.0
    %2276 = vmatprep.subr.mxu0 0.0
    %2277 = vmatpush2.msra.mxu0 0.0
    %2278 = vmatprep.subr.mxu0 0.0
    %2279 = vmatpush2.msra.mxu0 0.0
    %2280 = vmatprep.subr.mxu0 0.0
    %2281 = vmatpush2.msra.mxu0 0.0
    %2282 = vmatprep.subr.mxu0 0.0
    %2283 = vmatpush2.msra.mxu0 0.0
    %2284 = vmatprep.subr.mxu0 0.0
    %2285 = vmatpush2.msra.mxu0 0.0
    %2286 = vmatprep.subr.mxu0 0.0
    %2287 = vmatpush2.msra.mxu0 0.0
    %2288 = vmatprep.subr.mxu0 0.0
    %2289 = vmatpush2.msra.mxu0 0.0
    %2290 = vmatprep.subr.mxu0 0.0
    %2291 = vmatpush2.msra.mxu0 0.0
    %2292 = vmatprep.subr.mxu0 0.0
    %2293 = vmatpush2.msra.mxu0 0.0
    %2294 = vmatprep.subr.mxu0 0.0
    %2295 = vmatpush2.msra.mxu0 0.0
    %2296 = vmatprep.subr.mxu0 0.0
    %2297 = vmatpush2.msra.mxu0 0.0
    %2298 = vmatprep.subr.mxu0 0.0
    %2299 = vmatpush2.msra.mxu0 0.0
    %2300 = vmatprep.subr.mxu0 0.0
    %2301 = vmatpush2.msra.mxu0 0.0
    %2302 = vmatprep.subr.mxu0 0.0
    %2303 = vmatpush2.msra.mxu0 0.0
    %2304 = vmatprep.subr.mxu0 0.0
    %2305 = vmatpush2.msra.mxu0 0.0
    %2306 = vmatprep.mubr.f32.mxu0 0.0
    %2307 = vmatmul.mubr.f32.gmra.mxu0 %v2094
    %v2308 = vpop.f32.mrf.mxu0
    %v2309 = vadd.f32 0.0, %v2308
    %v2310 = vpop.f32.mrf.mxu0
    %2311 = vdwg.mxu0
    %v2312 = vadd.f32 %v2241, %v2309
    %s2313 = scalar_lea.vmem [#allocation2], 232
    %v2314 = vld [vmem:[%s2313] sm:$0xff]
    %2315 = vmatprep.subr.mxu0 0.0
    %2316 = vmatpush1.msra.mxu0 0.0
    %2317 = vmatprep.subr.mxu0 0.0
    %2318 = vmatpush1.msra.mxu0 0.0
    %2319 = vmatprep.subr.mxu0 0.0
    %2320 = vmatpush1.msra.mxu0 0.0
    %2321 = vmatprep.subr.mxu0 0.0
    %2322 = vmatpush1.msra.mxu0 0.0
    %2323 = vmatprep.subr.mxu0 0.0
    %2324 = vmatpush1.msra.mxu0 0.0
    %2325 = vmatprep.subr.mxu0 0.0
    %2326 = vmatpush1.msra.mxu0 0.0
    %2327 = vmatprep.subr.mxu0 0.0
    %2328 = vmatpush1.msra.mxu0 0.0
    %2329 = vmatprep.subr.mxu0 0.0
    %2330 = vmatpush1.msra.mxu0 0.0
    %2331 = vmatprep.subr.mxu0 0.0
    %2332 = vmatpush1.msra.mxu0 %v499
    %2333 = vmatprep.subr.mxu0 0.0
    %2334 = vmatpush1.msra.mxu0 %v498
    %2335 = vmatprep.subr.mxu0 0.0
    %2336 = vmatpush1.msra.mxu0 %v497
    %2337 = vmatprep.subr.mxu0 0.0
    %2338 = vmatpush1.msra.mxu0 %v496
    %2339 = vmatprep.subr.mxu0 0.0
    %2340 = vmatpush1.msra.mxu0 %v495
    %2341 = vmatprep.subr.mxu0 0.0
    %2342 = vmatpush1.msra.mxu0 %v494
    %2343 = vmatprep.subr.mxu0 0.0
    %2344 = vmatpush1.msra.mxu0 %v493
    %2345 = vmatprep.subr.mxu0 0.0
    %2346 = vmatpush1.msra.mxu0 %v492
    %2347 = vmatprep.subr.mxu0 0.0
    %2348 = vmatpush2.msra.mxu0 0.0
    %2349 = vmatprep.subr.mxu0 0.0
    %2350 = vmatpush2.msra.mxu0 0.0
    %2351 = vmatprep.subr.mxu0 0.0
    %2352 = vmatpush2.msra.mxu0 0.0
    %2353 = vmatprep.subr.mxu0 0.0
    %2354 = vmatpush2.msra.mxu0 0.0
    %2355 = vmatprep.subr.mxu0 0.0
    %2356 = vmatpush2.msra.mxu0 0.0
    %2357 = vmatprep.subr.mxu0 0.0
    %2358 = vmatpush2.msra.mxu0 0.0
    %2359 = vmatprep.subr.mxu0 0.0
    %2360 = vmatpush2.msra.mxu0 0.0
    %2361 = vmatprep.subr.mxu0 0.0
    %2362 = vmatpush2.msra.mxu0 0.0
    %2363 = vmatprep.subr.mxu0 0.0
    %2364 = vmatpush2.msra.mxu0 0.0
    %2365 = vmatprep.subr.mxu0 0.0
    %2366 = vmatpush2.msra.mxu0 0.0
    %2367 = vmatprep.subr.mxu0 0.0
    %2368 = vmatpush2.msra.mxu0 0.0
    %2369 = vmatprep.subr.mxu0 0.0
    %2370 = vmatpush2.msra.mxu0 0.0
    %2371 = vmatprep.subr.mxu0 0.0
    %2372 = vmatpush2.msra.mxu0 0.0
    %2373 = vmatprep.subr.mxu0 0.0
    %2374 = vmatpush2.msra.mxu0 0.0
    %2375 = vmatprep.subr.mxu0 0.0
    %2376 = vmatpush2.msra.mxu0 0.0
    %2377 = vmatprep.subr.mxu0 0.0
    %2378 = vmatpush2.msra.mxu0 0.0
    %2379 = vmatprep.mubr.f32.mxu0 0.0
    %2380 = vmatmul.mubr.f32.gmra.mxu0 %v2094
    %v2381 = vpop.f32.mrf.mxu0
    %v2382 = vadd.f32 0.0, %v2381
    %v2383 = vpop.f32.mrf.mxu0
    %2384 = vdwg.mxu0
    %v2385 = vadd.f32 %v2314, %v2382
    %v2386 = vxor.u32 %v2166, 2147483648
    %v2387 = vmul.f32 %v2386, 1.442695
    %v2388 = vpow.pop %v2387
    %v2389 = vadd.f32 %v2388, 1.0
    %v2390 = vrcp.pop %v2389
    %v2391 = vmul.f32 1.0, %v2390
    %v2392 = vxor.u32 %v2239, 2147483648
    %v2393 = vmul.f32 %v2392, 1.442695
    %v2394 = vpow.pop %v2393
    %v2395 = vadd.f32 %v2394, 1.0
    %v2396 = vrcp.pop %v2395
    %v2397 = vmul.f32 1.0, %v2396
    %v2398 = vtanh.pop %v2312
    %v2399 = vxor.u32 %v2385, 2147483648
    %v2400 = vmul.f32 %v2399, 1.442695
    %v2401 = vpow.pop %v2400
    %v2402 = vadd.f32 %v2401, 1.0
    %v2403 = vrcp.pop %v2402
    %v2404 = vmul.f32 1.0, %v2403
    %v2405 = vmul.f32 %v2397, %v2088
    %v2406 = vmul.f32 %v2391, %v2398
    %v2407 = vadd.f32 %v2405, %v2406
    %v2408 = vtanh.pop %v2407
    %v2409 = vmul.f32 %v2404, %v2408
    %s2410 = scalar_lea.vmem [#allocation2], 48
    %v2411 = vld [vmem:[%s2410] sm:$0xff]
    %v2413 = vsel %vm219, %v2409, 0
    %2415 = vmatprep.subr.mxu0 0.0
    %2416 = vmatpush1.msra.mxu0 0.0
    %2417 = vmatprep.subr.mxu0 0.0
    %2418 = vmatpush1.msra.mxu0 0.0
    %2419 = vmatprep.subr.mxu0 0.0
    %2420 = vmatpush1.msra.mxu0 0.0
    %2421 = vmatprep.subr.mxu0 0.0
    %2422 = vmatpush1.msra.mxu0 0.0
    %2423 = vmatprep.subr.mxu0 0.0
    %2424 = vmatpush1.msra.mxu0 0.0
    %2425 = vmatprep.subr.mxu0 0.0
    %2426 = vmatpush1.msra.mxu0 0.0
    %2427 = vmatprep.subr.mxu0 0.0
    %2428 = vmatpush1.msra.mxu0 0.0
    %2429 = vmatprep.subr.mxu0 0.0
    %2430 = vmatpush1.msra.mxu0 0.0
    %2431 = vmatprep.subr.mxu0 0.0
    %2432 = vmatpush1.msra.mxu0 %v472
    %2433 = vmatprep.subr.mxu0 0.0
    %2434 = vmatpush1.msra.mxu0 %v471
    %2435 = vmatprep.subr.mxu0 0.0
    %2436 = vmatpush1.msra.mxu0 %v470
    %2437 = vmatprep.subr.mxu0 0.0
    %2438 = vmatpush1.msra.mxu0 %v469
    %2439 = vmatprep.subr.mxu0 0.0
    %2440 = vmatpush1.msra.mxu0 %v468
    %2441 = vmatprep.subr.mxu0 0.0
    %2442 = vmatpush1.msra.mxu0 %v467
    %2443 = vmatprep.subr.mxu0 0.0
    %2444 = vmatpush1.msra.mxu0 %v466
    %2445 = vmatprep.subr.mxu0 0.0
    %2446 = vmatpush1.msra.mxu0 %v465
    %2447 = vmatprep.subr.mxu0 0.0
    %2448 = vmatpush2.msra.mxu0 0.0
    %2449 = vmatprep.subr.mxu0 0.0
    %2450 = vmatpush2.msra.mxu0 0.0
    %2451 = vmatprep.subr.mxu0 0.0
    %2452 = vmatpush2.msra.mxu0 0.0
    %2453 = vmatprep.subr.mxu0 0.0
    %2454 = vmatpush2.msra.mxu0 0.0
    %2455 = vmatprep.subr.mxu0 0.0
    %2456 = vmatpush2.msra.mxu0 0.0
    %2457 = vmatprep.subr.mxu0 0.0
    %2458 = vmatpush2.msra.mxu0 0.0
    %2459 = vmatprep.subr.mxu0 0.0
    %2460 = vmatpush2.msra.mxu0 0.0
    %2461 = vmatprep.subr.mxu0 0.0
    %2462 = vmatpush2.msra.mxu0 0.0
    %2463 = vmatprep.subr.mxu0 0.0
    %2464 = vmatpush2.msra.mxu0 0.0
    %2465 = vmatprep.subr.mxu0 0.0
    %2466 = vmatpush2.msra.mxu0 0.0
    %2467 = vmatprep.subr.mxu0 0.0
    %2468 = vmatpush2.msra.mxu0 0.0
    %2469 = vmatprep.subr.mxu0 0.0
    %2470 = vmatpush2.msra.mxu0 0.0
    %2471 = vmatprep.subr.mxu0 0.0
    %2472 = vmatpush2.msra.mxu0 0.0
    %2473 = vmatprep.subr.mxu0 0.0
    %2474 = vmatpush2.msra.mxu0 0.0
    %2475 = vmatprep.subr.mxu0 0.0
    %2476 = vmatpush2.msra.mxu0 0.0
    %2477 = vmatprep.subr.mxu0 0.0
    %2478 = vmatpush2.msra.mxu0 0.0
    %2479 = vmatprep.mubr.f32.mxu0 0.0
    %2480 = vmatmul.mubr.f32.gmra.mxu0 %v2413
    %v2481 = vpop.f32.mrf.mxu0
    %v2482 = vadd.f32 0.0, %v2481
    %v2483 = vpop.f32.mrf.mxu0
    %2484 = vdwg.mxu0
    %v2485 = vadd.f32 %v2411, %v2482
    %s2486 = scalar_lea.vmem [#allocation2], 112
    %v2487 = vld [vmem:[%s2486] sm:$0xff]
    %2488 = vmatprep.subr.mxu0 0.0
    %2489 = vmatpush1.msra.mxu0 0.0
    %2490 = vmatprep.subr.mxu0 0.0
    %2491 = vmatpush1.msra.mxu0 0.0
    %2492 = vmatprep.subr.mxu0 0.0
    %2493 = vmatpush1.msra.mxu0 0.0
    %2494 = vmatprep.subr.mxu0 0.0
    %2495 = vmatpush1.msra.mxu0 0.0
    %2496 = vmatprep.subr.mxu0 0.0
    %2497 = vmatpush1.msra.mxu0 0.0
    %2498 = vmatprep.subr.mxu0 0.0
    %2499 = vmatpush1.msra.mxu0 0.0
    %2500 = vmatprep.subr.mxu0 0.0
    %2501 = vmatpush1.msra.mxu0 0.0
    %2502 = vmatprep.subr.mxu0 0.0
    %2503 = vmatpush1.msra.mxu0 0.0
    %2504 = vmatprep.subr.mxu0 0.0
    %2505 = vmatpush1.msra.mxu0 %v481
    %2506 = vmatprep.subr.mxu0 0.0
    %2507 = vmatpush1.msra.mxu0 %v480
    %2508 = vmatprep.subr.mxu0 0.0
    %2509 = vmatpush1.msra.mxu0 %v479
    %2510 = vmatprep.subr.mxu0 0.0
    %2511 = vmatpush1.msra.mxu0 %v478
    %2512 = vmatprep.subr.mxu0 0.0
    %2513 = vmatpush1.msra.mxu0 %v477
    %2514 = vmatprep.subr.mxu0 0.0
    %2515 = vmatpush1.msra.mxu0 %v476
    %2516 = vmatprep.subr.mxu0 0.0
    %2517 = vmatpush1.msra.mxu0 %v475
    %2518 = vmatprep.subr.mxu0 0.0
    %2519 = vmatpush1.msra.mxu0 %v474
    %2520 = vmatprep.subr.mxu0 0.0
    %2521 = vmatpush2.msra.mxu0 0.0
    %2522 = vmatprep.subr.mxu0 0.0
    %2523 = vmatpush2.msra.mxu0 0.0
    %2524 = vmatprep.subr.mxu0 0.0
    %2525 = vmatpush2.msra.mxu0 0.0
    %2526 = vmatprep.subr.mxu0 0.0
    %2527 = vmatpush2.msra.mxu0 0.0
    %2528 = vmatprep.subr.mxu0 0.0
    %2529 = vmatpush2.msra.mxu0 0.0
    %2530 = vmatprep.subr.mxu0 0.0
    %2531 = vmatpush2.msra.mxu0 0.0
    %2532 = vmatprep.subr.mxu0 0.0
    %2533 = vmatpush2.msra.mxu0 0.0
    %2534 = vmatprep.subr.mxu0 0.0
    %2535 = vmatpush2.msra.mxu0 0.0
    %2536 = vmatprep.subr.mxu0 0.0
    %2537 = vmatpush2.msra.mxu0 0.0
    %2538 = vmatprep.subr.mxu0 0.0
    %2539 = vmatpush2.msra.mxu0 0.0
    %2540 = vmatprep.subr.mxu0 0.0
    %2541 = vmatpush2.msra.mxu0 0.0
    %2542 = vmatprep.subr.mxu0 0.0
    %2543 = vmatpush2.msra.mxu0 0.0
    %2544 = vmatprep.subr.mxu0 0.0
    %2545 = vmatpush2.msra.mxu0 0.0
    %2546 = vmatprep.subr.mxu0 0.0
    %2547 = vmatpush2.msra.mxu0 0.0
    %2548 = vmatprep.subr.mxu0 0.0
    %2549 = vmatpush2.msra.mxu0 0.0
    %2550 = vmatprep.subr.mxu0 0.0
    %2551 = vmatpush2.msra.mxu0 0.0
    %2552 = vmatprep.mubr.f32.mxu0 0.0
    %2553 = vmatmul.mubr.f32.gmra.mxu0 %v2413
    %v2554 = vpop.f32.mrf.mxu0
    %v2555 = vadd.f32 0.0, %v2554
    %v2556 = vpop.f32.mrf.mxu0
    %2557 = vdwg.mxu0
    %v2558 = vadd.f32 %v2487, %v2555
    %s2559 = scalar_lea.vmem [#allocation2], 176
    %v2560 = vld [vmem:[%s2559] sm:$0xff]
    %2561 = vmatprep.subr.mxu0 0.0
    %2562 = vmatpush1.msra.mxu0 0.0
    %2563 = vmatprep.subr.mxu0 0.0
    %2564 = vmatpush1.msra.mxu0 0.0
    %2565 = vmatprep.subr.mxu0 0.0
    %2566 = vmatpush1.msra.mxu0 0.0
    %2567 = vmatprep.subr.mxu0 0.0
    %2568 = vmatpush1.msra.mxu0 0.0
    %2569 = vmatprep.subr.mxu0 0.0
    %2570 = vmatpush1.msra.mxu0 0.0
    %2571 = vmatprep.subr.mxu0 0.0
    %2572 = vmatpush1.msra.mxu0 0.0
    %2573 = vmatprep.subr.mxu0 0.0
    %2574 = vmatpush1.msra.mxu0 0.0
    %2575 = vmatprep.subr.mxu0 0.0
    %2576 = vmatpush1.msra.mxu0 0.0
    %2577 = vmatprep.subr.mxu0 0.0
    %2578 = vmatpush1.msra.mxu0 %v490
    %2579 = vmatprep.subr.mxu0 0.0
    %2580 = vmatpush1.msra.mxu0 %v489
    %2581 = vmatprep.subr.mxu0 0.0
    %2582 = vmatpush1.msra.mxu0 %v488
    %2583 = vmatprep.subr.mxu0 0.0
    %2584 = vmatpush1.msra.mxu0 %v487
    %2585 = vmatprep.subr.mxu0 0.0
    %2586 = vmatpush1.msra.mxu0 %v486
    %2587 = vmatprep.subr.mxu0 0.0
    %2588 = vmatpush1.msra.mxu0 %v485
    %2589 = vmatprep.subr.mxu0 0.0
    %2590 = vmatpush1.msra.mxu0 %v484
    %2591 = vmatprep.subr.mxu0 0.0
    %2592 = vmatpush1.msra.mxu0 %v483
    %2593 = vmatprep.subr.mxu0 0.0
    %2594 = vmatpush2.msra.mxu0 0.0
    %2595 = vmatprep.subr.mxu0 0.0
    %2596 = vmatpush2.msra.mxu0 0.0
    %2597 = vmatprep.subr.mxu0 0.0
    %2598 = vmatpush2.msra.mxu0 0.0
    %2599 = vmatprep.subr.mxu0 0.0
    %2600 = vmatpush2.msra.mxu0 0.0
    %2601 = vmatprep.subr.mxu0 0.0
    %2602 = vmatpush2.msra.mxu0 0.0
    %2603 = vmatprep.subr.mxu0 0.0
    %2604 = vmatpush2.msra.mxu0 0.0
    %2605 = vmatprep.subr.mxu0 0.0
    %2606 = vmatpush2.msra.mxu0 0.0
    %2607 = vmatprep.subr.mxu0 0.0
    %2608 = vmatpush2.msra.mxu0 0.0
    %2609 = vmatprep.subr.mxu0 0.0
    %2610 = vmatpush2.msra.mxu0 0.0
    %2611 = vmatprep.subr.mxu0 0.0
    %2612 = vmatpush2.msra.mxu0 0.0
    %2613 = vmatprep.subr.mxu0 0.0
    %2614 = vmatpush2.msra.mxu0 0.0
    %2615 = vmatprep.subr.mxu0 0.0
    %2616 = vmatpush2.msra.mxu0 0.0
    %2617 = vmatprep.subr.mxu0 0.0
    %2618 = vmatpush2.msra.mxu0 0.0
    %2619 = vmatprep.subr.mxu0 0.0
    %2620 = vmatpush2.msra.mxu0 0.0
    %2621 = vmatprep.subr.mxu0 0.0
    %2622 = vmatpush2.msra.mxu0 0.0
    %2623 = vmatprep.subr.mxu0 0.0
    %2624 = vmatpush2.msra.mxu0 0.0
    %2625 = vmatprep.mubr.f32.mxu0 0.0
    %2626 = vmatmul.mubr.f32.gmra.mxu0 %v2413
    %v2627 = vpop.f32.mrf.mxu0
    %v2628 = vadd.f32 0.0, %v2627
    %v2629 = vpop.f32.mrf.mxu0
    %2630 = vdwg.mxu0
    %v2631 = vadd.f32 %v2560, %v2628
    %s2632 = scalar_lea.vmem [#allocation2], 240
    %v2633 = vld [vmem:[%s2632] sm:$0xff]
    %2634 = vmatprep.subr.mxu0 0.0
    %2635 = vmatpush1.msra.mxu0 0.0
    %2636 = vmatprep.subr.mxu0 0.0
    %2637 = vmatpush1.msra.mxu0 0.0
    %2638 = vmatprep.subr.mxu0 0.0
    %2639 = vmatpush1.msra.mxu0 0.0
    %2640 = vmatprep.subr.mxu0 0.0
    %2641 = vmatpush1.msra.mxu0 0.0
    %2642 = vmatprep.subr.mxu0 0.0
    %2643 = vmatpush1.msra.mxu0 0.0
    %2644 = vmatprep.subr.mxu0 0.0
    %2645 = vmatpush1.msra.mxu0 0.0
    %2646 = vmatprep.subr.mxu0 0.0
    %2647 = vmatpush1.msra.mxu0 0.0
    %2648 = vmatprep.subr.mxu0 0.0
    %2649 = vmatpush1.msra.mxu0 0.0
    %2650 = vmatprep.subr.mxu0 0.0
    %2651 = vmatpush1.msra.mxu0 %v499
    %2652 = vmatprep.subr.mxu0 0.0
    %2653 = vmatpush1.msra.mxu0 %v498
    %2654 = vmatprep.subr.mxu0 0.0
    %2655 = vmatpush1.msra.mxu0 %v497
    %2656 = vmatprep.subr.mxu0 0.0
    %2657 = vmatpush1.msra.mxu0 %v496
    %2658 = vmatprep.subr.mxu0 0.0
    %2659 = vmatpush1.msra.mxu0 %v495
    %2660 = vmatprep.subr.mxu0 0.0
    %2661 = vmatpush1.msra.mxu0 %v494
    %2662 = vmatprep.subr.mxu0 0.0
    %2663 = vmatpush1.msra.mxu0 %v493
    %2664 = vmatprep.subr.mxu0 0.0
    %2665 = vmatpush1.msra.mxu0 %v492
    %2666 = vmatprep.subr.mxu0 0.0
    %2667 = vmatpush2.msra.mxu0 0.0
    %2668 = vmatprep.subr.mxu0 0.0
    %2669 = vmatpush2.msra.mxu0 0.0
    %2670 = vmatprep.subr.mxu0 0.0
    %2671 = vmatpush2.msra.mxu0 0.0
    %2672 = vmatprep.subr.mxu0 0.0
    %2673 = vmatpush2.msra.mxu0 0.0
    %2674 = vmatprep.subr.mxu0 0.0
    %2675 = vmatpush2.msra.mxu0 0.0
    %2676 = vmatprep.subr.mxu0 0.0
    %2677 = vmatpush2.msra.mxu0 0.0
    %2678 = vmatprep.subr.mxu0 0.0
    %2679 = vmatpush2.msra.mxu0 0.0
    %2680 = vmatprep.subr.mxu0 0.0
    %2681 = vmatpush2.msra.mxu0 0.0
    %2682 = vmatprep.subr.mxu0 0.0
    %2683 = vmatpush2.msra.mxu0 0.0
    %2684 = vmatprep.subr.mxu0 0.0
    %2685 = vmatpush2.msra.mxu0 0.0
    %2686 = vmatprep.subr.mxu0 0.0
    %2687 = vmatpush2.msra.mxu0 0.0
    %2688 = vmatprep.subr.mxu0 0.0
    %2689 = vmatpush2.msra.mxu0 0.0
    %2690 = vmatprep.subr.mxu0 0.0
    %2691 = vmatpush2.msra.mxu0 0.0
    %2692 = vmatprep.subr.mxu0 0.0
    %2693 = vmatpush2.msra.mxu0 0.0
    %2694 = vmatprep.subr.mxu0 0.0
    %2695 = vmatpush2.msra.mxu0 0.0
    %2696 = vmatprep.subr.mxu0 0.0
    %2697 = vmatpush2.msra.mxu0 0.0
    %2698 = vmatprep.mubr.f32.mxu0 0.0
    %2699 = vmatmul.mubr.f32.gmra.mxu0 %v2413
    %v2700 = vpop.f32.mrf.mxu0
    %v2701 = vadd.f32 0.0, %v2700
    %v2702 = vpop.f32.mrf.mxu0
    %2703 = vdwg.mxu0
    %v2704 = vadd.f32 %v2633, %v2701
    %v2705 = vxor.u32 %v2485, 2147483648
    %v2706 = vmul.f32 %v2705, 1.442695
    %v2707 = vpow.pop %v2706
    %v2708 = vadd.f32 %v2707, 1.0
    %v2709 = vrcp.pop %v2708
    %v2710 = vmul.f32 1.0, %v2709
    %v2711 = vxor.u32 %v2558, 2147483648
    %v2712 = vmul.f32 %v2711, 1.442695
    %v2713 = vpow.pop %v2712
    %v2714 = vadd.f32 %v2713, 1.0
    %v2715 = vrcp.pop %v2714
    %v2716 = vmul.f32 1.0, %v2715
    %v2717 = vtanh.pop %v2631
    %v2718 = vxor.u32 %v2704, 2147483648
    %v2719 = vmul.f32 %v2718, 1.442695
    %v2720 = vpow.pop %v2719
    %v2721 = vadd.f32 %v2720, 1.0
    %v2722 = vrcp.pop %v2721
    %v2723 = vmul.f32 1.0, %v2722
    %v2724 = vmul.f32 %v2716, %v2407
    %v2725 = vmul.f32 %v2710, %v2717
    %v2726 = vadd.f32 %v2724, %v2725
    %v2727 = vtanh.pop %v2726
    %v2728 = vmul.f32 %v2723, %v2727
    %s2729 = scalar_lea.vmem [#allocation2], 56
    %v2730 = vld [vmem:[%s2729] sm:$0xff]
    %v2732 = vsel %vm219, %v2728, 0
    %2734 = vmatprep.subr.mxu0 0.0
    %2735 = vmatpush1.msra.mxu0 0.0
    %2736 = vmatprep.subr.mxu0 0.0
    %2737 = vmatpush1.msra.mxu0 0.0
    %2738 = vmatprep.subr.mxu0 0.0
    %2739 = vmatpush1.msra.mxu0 0.0
    %2740 = vmatprep.subr.mxu0 0.0
    %2741 = vmatpush1.msra.mxu0 0.0
    %2742 = vmatprep.subr.mxu0 0.0
    %2743 = vmatpush1.msra.mxu0 0.0
    %2744 = vmatprep.subr.mxu0 0.0
    %2745 = vmatpush1.msra.mxu0 0.0
    %2746 = vmatprep.subr.mxu0 0.0
    %2747 = vmatpush1.msra.mxu0 0.0
    %2748 = vmatprep.subr.mxu0 0.0
    %2749 = vmatpush1.msra.mxu0 0.0
    %2750 = vmatprep.subr.mxu0 0.0
    %2751 = vmatpush1.msra.mxu0 %v472
    %2752 = vmatprep.subr.mxu0 0.0
    %2753 = vmatpush1.msra.mxu0 %v471
    %2754 = vmatprep.subr.mxu0 0.0
    %2755 = vmatpush1.msra.mxu0 %v470
    %2756 = vmatprep.subr.mxu0 0.0
    %2757 = vmatpush1.msra.mxu0 %v469
    %2758 = vmatprep.subr.mxu0 0.0
    %2759 = vmatpush1.msra.mxu0 %v468
    %2760 = vmatprep.subr.mxu0 0.0
    %2761 = vmatpush1.msra.mxu0 %v467
    %2762 = vmatprep.subr.mxu0 0.0
    %2763 = vmatpush1.msra.mxu0 %v466
    %2764 = vmatprep.subr.mxu0 0.0
    %2765 = vmatpush1.msra.mxu0 %v465
    %2766 = vmatprep.subr.mxu0 0.0
    %2767 = vmatpush2.msra.mxu0 0.0
    %2768 = vmatprep.subr.mxu0 0.0
    %2769 = vmatpush2.msra.mxu0 0.0
    %2770 = vmatprep.subr.mxu0 0.0
    %2771 = vmatpush2.msra.mxu0 0.0
    %2772 = vmatprep.subr.mxu0 0.0
    %2773 = vmatpush2.msra.mxu0 0.0
    %2774 = vmatprep.subr.mxu0 0.0
    %2775 = vmatpush2.msra.mxu0 0.0
    %2776 = vmatprep.subr.mxu0 0.0
    %2777 = vmatpush2.msra.mxu0 0.0
    %2778 = vmatprep.subr.mxu0 0.0
    %2779 = vmatpush2.msra.mxu0 0.0
    %2780 = vmatprep.subr.mxu0 0.0
    %2781 = vmatpush2.msra.mxu0 0.0
    %2782 = vmatprep.subr.mxu0 0.0
    %2783 = vmatpush2.msra.mxu0 0.0
    %2784 = vmatprep.subr.mxu0 0.0
    %2785 = vmatpush2.msra.mxu0 0.0
    %2786 = vmatprep.subr.mxu0 0.0
    %2787 = vmatpush2.msra.mxu0 0.0
    %2788 = vmatprep.subr.mxu0 0.0
    %2789 = vmatpush2.msra.mxu0 0.0
    %2790 = vmatprep.subr.mxu0 0.0
    %2791 = vmatpush2.msra.mxu0 0.0
    %2792 = vmatprep.subr.mxu0 0.0
    %2793 = vmatpush2.msra.mxu0 0.0
    %2794 = vmatprep.subr.mxu0 0.0
    %2795 = vmatpush2.msra.mxu0 0.0
    %2796 = vmatprep.subr.mxu0 0.0
    %2797 = vmatpush2.msra.mxu0 0.0
    %2798 = vmatprep.mubr.f32.mxu0 0.0
    %2799 = vmatmul.mubr.f32.gmra.mxu0 %v2732
    %v2800 = vpop.f32.mrf.mxu0
    %v2801 = vadd.f32 0.0, %v2800
    %v2802 = vpop.f32.mrf.mxu0
    %2803 = vdwg.mxu0
    %v2804 = vadd.f32 %v2730, %v2801
    %s2805 = scalar_lea.vmem [#allocation2], 120
    %v2806 = vld [vmem:[%s2805] sm:$0xff]
    %2807 = vmatprep.subr.mxu0 0.0
    %2808 = vmatpush1.msra.mxu0 0.0
    %2809 = vmatprep.subr.mxu0 0.0
    %2810 = vmatpush1.msra.mxu0 0.0
    %2811 = vmatprep.subr.mxu0 0.0
    %2812 = vmatpush1.msra.mxu0 0.0
    %2813 = vmatprep.subr.mxu0 0.0
    %2814 = vmatpush1.msra.mxu0 0.0
    %2815 = vmatprep.subr.mxu0 0.0
    %2816 = vmatpush1.msra.mxu0 0.0
    %2817 = vmatprep.subr.mxu0 0.0
    %2818 = vmatpush1.msra.mxu0 0.0
    %2819 = vmatprep.subr.mxu0 0.0
    %2820 = vmatpush1.msra.mxu0 0.0
    %2821 = vmatprep.subr.mxu0 0.0
    %2822 = vmatpush1.msra.mxu0 0.0
    %2823 = vmatprep.subr.mxu0 0.0
    %2824 = vmatpush1.msra.mxu0 %v481
    %2825 = vmatprep.subr.mxu0 0.0
    %2826 = vmatpush1.msra.mxu0 %v480
    %2827 = vmatprep.subr.mxu0 0.0
    %2828 = vmatpush1.msra.mxu0 %v479
    %2829 = vmatprep.subr.mxu0 0.0
    %2830 = vmatpush1.msra.mxu0 %v478
    %2831 = vmatprep.subr.mxu0 0.0
    %2832 = vmatpush1.msra.mxu0 %v477
    %2833 = vmatprep.subr.mxu0 0.0
    %2834 = vmatpush1.msra.mxu0 %v476
    %2835 = vmatprep.subr.mxu0 0.0
    %2836 = vmatpush1.msra.mxu0 %v475
    %2837 = vmatprep.subr.mxu0 0.0
    %2838 = vmatpush1.msra.mxu0 %v474
    %2839 = vmatprep.subr.mxu0 0.0
    %2840 = vmatpush2.msra.mxu0 0.0
    %2841 = vmatprep.subr.mxu0 0.0
    %2842 = vmatpush2.msra.mxu0 0.0
    %2843 = vmatprep.subr.mxu0 0.0
    %2844 = vmatpush2.msra.mxu0 0.0
    %2845 = vmatprep.subr.mxu0 0.0
    %2846 = vmatpush2.msra.mxu0 0.0
    %2847 = vmatprep.subr.mxu0 0.0
    %2848 = vmatpush2.msra.mxu0 0.0
    %2849 = vmatprep.subr.mxu0 0.0
    %2850 = vmatpush2.msra.mxu0 0.0
    %2851 = vmatprep.subr.mxu0 0.0
    %2852 = vmatpush2.msra.mxu0 0.0
    %2853 = vmatprep.subr.mxu0 0.0
    %2854 = vmatpush2.msra.mxu0 0.0
    %2855 = vmatprep.subr.mxu0 0.0
    %2856 = vmatpush2.msra.mxu0 0.0
    %2857 = vmatprep.subr.mxu0 0.0
    %2858 = vmatpush2.msra.mxu0 0.0
    %2859 = vmatprep.subr.mxu0 0.0
    %2860 = vmatpush2.msra.mxu0 0.0
    %2861 = vmatprep.subr.mxu0 0.0
    %2862 = vmatpush2.msra.mxu0 0.0
    %2863 = vmatprep.subr.mxu0 0.0
    %2864 = vmatpush2.msra.mxu0 0.0
    %2865 = vmatprep.subr.mxu0 0.0
    %2866 = vmatpush2.msra.mxu0 0.0
    %2867 = vmatprep.subr.mxu0 0.0
    %2868 = vmatpush2.msra.mxu0 0.0
    %2869 = vmatprep.subr.mxu0 0.0
    %2870 = vmatpush2.msra.mxu0 0.0
    %2871 = vmatprep.mubr.f32.mxu0 0.0
    %2872 = vmatmul.mubr.f32.gmra.mxu0 %v2732
    %v2873 = vpop.f32.mrf.mxu0
    %v2874 = vadd.f32 0.0, %v2873
    %v2875 = vpop.f32.mrf.mxu0
    %2876 = vdwg.mxu0
    %v2877 = vadd.f32 %v2806, %v2874
    %s2878 = scalar_lea.vmem [#allocation2], 184
    %v2879 = vld [vmem:[%s2878] sm:$0xff]
    %2880 = vmatprep.subr.mxu0 0.0
    %2881 = vmatpush1.msra.mxu0 0.0
    %2882 = vmatprep.subr.mxu0 0.0
    %2883 = vmatpush1.msra.mxu0 0.0
    %2884 = vmatprep.subr.mxu0 0.0
    %2885 = vmatpush1.msra.mxu0 0.0
    %2886 = vmatprep.subr.mxu0 0.0
    %2887 = vmatpush1.msra.mxu0 0.0
    %2888 = vmatprep.subr.mxu0 0.0
    %2889 = vmatpush1.msra.mxu0 0.0
    %2890 = vmatprep.subr.mxu0 0.0
    %2891 = vmatpush1.msra.mxu0 0.0
    %2892 = vmatprep.subr.mxu0 0.0
    %2893 = vmatpush1.msra.mxu0 0.0
    %2894 = vmatprep.subr.mxu0 0.0
    %2895 = vmatpush1.msra.mxu0 0.0
    %2896 = vmatprep.subr.mxu0 0.0
    %2897 = vmatpush1.msra.mxu0 %v490
    %2898 = vmatprep.subr.mxu0 0.0
    %2899 = vmatpush1.msra.mxu0 %v489
    %2900 = vmatprep.subr.mxu0 0.0
    %2901 = vmatpush1.msra.mxu0 %v488
    %2902 = vmatprep.subr.mxu0 0.0
    %2903 = vmatpush1.msra.mxu0 %v487
    %2904 = vmatprep.subr.mxu0 0.0
    %2905 = vmatpush1.msra.mxu0 %v486
    %2906 = vmatprep.subr.mxu0 0.0
    %2907 = vmatpush1.msra.mxu0 %v485
    %2908 = vmatprep.subr.mxu0 0.0
    %2909 = vmatpush1.msra.mxu0 %v484
    %2910 = vmatprep.subr.mxu0 0.0
    %2911 = vmatpush1.msra.mxu0 %v483
    %2912 = vmatprep.subr.mxu0 0.0
    %2913 = vmatpush2.msra.mxu0 0.0
    %2914 = vmatprep.subr.mxu0 0.0
    %2915 = vmatpush2.msra.mxu0 0.0
    %2916 = vmatprep.subr.mxu0 0.0
    %2917 = vmatpush2.msra.mxu0 0.0
    %2918 = vmatprep.subr.mxu0 0.0
    %2919 = vmatpush2.msra.mxu0 0.0
    %2920 = vmatprep.subr.mxu0 0.0
    %2921 = vmatpush2.msra.mxu0 0.0
    %2922 = vmatprep.subr.mxu0 0.0
    %2923 = vmatpush2.msra.mxu0 0.0
    %2924 = vmatprep.subr.mxu0 0.0
    %2925 = vmatpush2.msra.mxu0 0.0
    %2926 = vmatprep.subr.mxu0 0.0
    %2927 = vmatpush2.msra.mxu0 0.0
    %2928 = vmatprep.subr.mxu0 0.0
    %2929 = vmatpush2.msra.mxu0 0.0
    %2930 = vmatprep.subr.mxu0 0.0
    %2931 = vmatpush2.msra.mxu0 0.0
    %2932 = vmatprep.subr.mxu0 0.0
    %2933 = vmatpush2.msra.mxu0 0.0
    %2934 = vmatprep.subr.mxu0 0.0
    %2935 = vmatpush2.msra.mxu0 0.0
    %2936 = vmatprep.subr.mxu0 0.0
    %2937 = vmatpush2.msra.mxu0 0.0
    %2938 = vmatprep.subr.mxu0 0.0
    %2939 = vmatpush2.msra.mxu0 0.0
    %2940 = vmatprep.subr.mxu0 0.0
    %2941 = vmatpush2.msra.mxu0 0.0
    %2942 = vmatprep.subr.mxu0 0.0
    %2943 = vmatpush2.msra.mxu0 0.0
    %2944 = vmatprep.mubr.f32.mxu0 0.0
    %2945 = vmatmul.mubr.f32.gmra.mxu0 %v2732
    %v2946 = vpop.f32.mrf.mxu0
    %v2947 = vadd.f32 0.0, %v2946
    %v2948 = vpop.f32.mrf.mxu0
    %2949 = vdwg.mxu0
    %v2950 = vadd.f32 %v2879, %v2947
    %s2951 = scalar_lea.vmem [#allocation2], 248
    %v2952 = vld [vmem:[%s2951] sm:$0xff]
    %2953 = vmatprep.subr.mxu0 0.0
    %2954 = vmatpush1.msra.mxu0 0.0
    %2955 = vmatprep.subr.mxu0 0.0
    %2956 = vmatpush1.msra.mxu0 0.0
    %2957 = vmatprep.subr.mxu0 0.0
    %2958 = vmatpush1.msra.mxu0 0.0
    %2959 = vmatprep.subr.mxu0 0.0
    %2960 = vmatpush1.msra.mxu0 0.0
    %2961 = vmatprep.subr.mxu0 0.0
    %2962 = vmatpush1.msra.mxu0 0.0
    %2963 = vmatprep.subr.mxu0 0.0
    %2964 = vmatpush1.msra.mxu0 0.0
    %2965 = vmatprep.subr.mxu0 0.0
    %2966 = vmatpush1.msra.mxu0 0.0
    %2967 = vmatprep.subr.mxu0 0.0
    %2968 = vmatpush1.msra.mxu0 0.0
    %2969 = vmatprep.subr.mxu0 0.0
    %2970 = vmatpush1.msra.mxu0 %v499
    %2971 = vmatprep.subr.mxu0 0.0
    %2972 = vmatpush1.msra.mxu0 %v498
    %2973 = vmatprep.subr.mxu0 0.0
    %2974 = vmatpush1.msra.mxu0 %v497
    %2975 = vmatprep.subr.mxu0 0.0
    %2976 = vmatpush1.msra.mxu0 %v496
    %2977 = vmatprep.subr.mxu0 0.0
    %2978 = vmatpush1.msra.mxu0 %v495
    %2979 = vmatprep.subr.mxu0 0.0
    %2980 = vmatpush1.msra.mxu0 %v494
    %2981 = vmatprep.subr.mxu0 0.0
    %2982 = vmatpush1.msra.mxu0 %v493
    %2983 = vmatprep.subr.mxu0 0.0
    %2984 = vmatpush1.msra.mxu0 %v492
    %2985 = vmatprep.subr.mxu0 0.0
    %2986 = vmatpush2.msra.mxu0 0.0
    %2987 = vmatprep.subr.mxu0 0.0
    %2988 = vmatpush2.msra.mxu0 0.0
    %2989 = vmatprep.subr.mxu0 0.0
    %2990 = vmatpush2.msra.mxu0 0.0
    %2991 = vmatprep.subr.mxu0 0.0
    %2992 = vmatpush2.msra.mxu0 0.0
    %2993 = vmatprep.subr.mxu0 0.0
    %2994 = vmatpush2.msra.mxu0 0.0
    %2995 = vmatprep.subr.mxu0 0.0
    %2996 = vmatpush2.msra.mxu0 0.0
    %2997 = vmatprep.subr.mxu0 0.0
    %2998 = vmatpush2.msra.mxu0 0.0
    %2999 = vmatprep.subr.mxu0 0.0
    %3000 = vmatpush2.msra.mxu0 0.0
    %3001 = vmatprep.subr.mxu0 0.0
    %3002 = vmatpush2.msra.mxu0 0.0
    %3003 = vmatprep.subr.mxu0 0.0
    %3004 = vmatpush2.msra.mxu0 0.0
    %3005 = vmatprep.subr.mxu0 0.0
    %3006 = vmatpush2.msra.mxu0 0.0
    %3007 = vmatprep.subr.mxu0 0.0
    %3008 = vmatpush2.msra.mxu0 0.0
    %3009 = vmatprep.subr.mxu0 0.0
    %3010 = vmatpush2.msra.mxu0 0.0
    %3011 = vmatprep.subr.mxu0 0.0
    %3012 = vmatpush2.msra.mxu0 0.0
    %3013 = vmatprep.subr.mxu0 0.0
    %3014 = vmatpush2.msra.mxu0 0.0
    %3015 = vmatprep.subr.mxu0 0.0
    %3016 = vmatpush2.msra.mxu0 0.0
    %3017 = vmatprep.mubr.f32.mxu0 0.0
    %3018 = vmatmul.mubr.f32.gmra.mxu0 %v2732
    %v3019 = vpop.f32.mrf.mxu0
    %v3020 = vadd.f32 0.0, %v3019
    %v3021 = vpop.f32.mrf.mxu0
    %3022 = vdwg.mxu0
    %v3023 = vadd.f32 %v2952, %v3020
    %v3024 = vxor.u32 %v2804, 2147483648
    %v3025 = vmul.f32 %v3024, 1.442695
    %v3026 = vpow.pop %v3025
    %v3027 = vadd.f32 %v3026, 1.0
    %v3028 = vrcp.pop %v3027
    %v3029 = vmul.f32 1.0, %v3028
    %v3030 = vxor.u32 %v2877, 2147483648
    %v3031 = vmul.f32 %v3030, 1.442695
    %v3032 = vpow.pop %v3031
    %v3033 = vadd.f32 %v3032, 1.0
    %v3034 = vrcp.pop %v3033
    %v3035 = vmul.f32 1.0, %v3034
    %v3036 = vtanh.pop %v2950
    %v3037 = vxor.u32 %v3023, 2147483648
    %v3038 = vmul.f32 %v3037, 1.442695
    %v3039 = vpow.pop %v3038
    %v3040 = vadd.f32 %v3039, 1.0
    %v3041 = vrcp.pop %v3040
    %v3042 = vmul.f32 1.0, %v3041
    %v3043 = vmul.f32 %v3035, %v2726
    %v3044 = vmul.f32 %v3029, %v3036
    %v3045 = vadd.f32 %v3043, %v3044
    %v3046 = vtanh.pop %v3045
    %v3047 = vmul.f32 %v3042, %v3046
    %v3048 = vld [vmem:[%s4] sm:$0x1]
    %v3050 = vlaneseq
    %v3051 = vshrl.u32 %v3050, 7
    %v3052 = vsub.s32 0, %v3051
    %v3053 = vrot.slane %v3048, %v3052
    %v3055 = vmul.f32 %v3047, %v3053
    %v3056 = vsel %vm219, %v3055, 0.0
    %3057 = vadd.xlane.f32.xlu0 %v3056
    %v3058 = vpop.xlane.xlu0 %3057
    %v3059 = vld [vmem:[#allocation3] sm:$0x1]
    %v3061 = vlaneseq
    %v3062 = vshrl.u32 %v3061, 7
    %v3063 = vsub.s32 0, %v3062
    %v3064 = vrot.slane %v3059, %v3063
    %v3066 = vadd.f32 %v3058, %v3064
    %vm3067 = vcmask 7168
    %3068 = vst.msk [vmem:[%s6] sm:$0xff] %vm3067, %v3066
    // Predicated region
    $region30: #{uniswap_price_predictor.1} parent=1 // pred_check
      _
    $region31: #{uniswap_price_predictor.1} parent=1 // pred_check_branch
      %3070 = sbr.rel (0) target = $region33
    $region32: #{uniswap_price_predictor.1} parent=1 // pred_region
      _
    $region33: #{uniswap_price_predictor.1} parent=1 // pred_fallthru
      _
    // Predicated region
    $region34: #{uniswap_price_predictor.1} parent=1 // pred_check
      _
    $region35: #{uniswap_price_predictor.1} parent=1 // pred_check_branch
      %3072 = sbr.rel (0) target = $region37
    $region36: #{uniswap_price_predictor.1} parent=1 // pred_region
      _
    $region37: #{uniswap_price_predictor.1} parent=1 // pred_fallthru
      _
    %3073 = vsyncpa [#allocation5], 1

</llo_original>
